<compile_context>
chip_gen: v6e
topology: v6e:2x2x1
jax: 0.10.0
libtpu: 0.0.40
codegen_flags: <defaults>
</compile_context>

<pallas_src>
import functools

import jax
import jax.numpy as jnp
from jax.experimental import pallas as pl
from jax.experimental.pallas import tpu as pltpu

H, W = 8, 16          # hardcoded in ConvGRUCell (self.height, self.width)
KH, KW = 3, 3         # kernel_size=(3,3), padding=(1,1) -> "same"


# ---------------------------------------------------------------------------
# Kernel A: hoisted x-path conv (fully parallel over time).
#   y[b,t] = conv3x3_same(x[b,t]) @ [Wg_x | Wc_x] + [bg | bc]
# ---------------------------------------------------------------------------
def _x_path_kernel(x_ref, wx_ref, bx_ref, out_ref, xpad_ref, *, input_dim,
                   hidden_dim, b_block):
    m = b_block * H * W
    # Zero the whole padded scratch every step: cheap, and safe even if the
    # "parallel" time axis is sharded across cores (no reliance on a t==0
    # initialization having run on this core).
    xpad_ref[...] = jnp.zeros_like(xpad_ref)
    xpad_ref[:, 1:1 + H, 1:1 + W, :] = x_ref[...].astype(jnp.float32)

    # 3x3 "same" conv as 9 shifted (M, Cin) @ (Cin, 3*hid) matmuls (f32 here:
    # this path runs once, outside the latency-bound recurrence).
    acc = None
    for kh in range(KH):
        for kw in range(KW):
            lhs = xpad_ref[:, kh:kh + H, kw:kw + W, :].reshape(m, input_dim)
            contrib = jnp.dot(lhs, wx_ref[kh, kw],
                              preferred_element_type=jnp.float32)
            acc = contrib if acc is None else acc + contrib
    y = acc + bx_ref[...]                                   # biases folded in
    out_ref[...] = y.reshape(b_block, H, W, 3 * hidden_dim).astype(out_ref.dtype)


def x_path_conv(x_bthwc, wx, bx, input_dim, hidden_dim):
    B, T, Hh, Ww, Cin = x_bthwc.shape
    assert (Hh, Ww) == (H, W) and Cin == input_dim
    kernel = functools.partial(_x_path_kernel, input_dim=input_dim,
                               hidden_dim=hidden_dim, b_block=B)
    return pl.pallas_call(
        kernel,
        out_shape=jax.ShapeDtypeStruct((B, T, H, W, 3 * hidden_dim), jnp.float32),
        grid_spec=pltpu.PrefetchScalarGridSpec(
            num_scalar_prefetch=0,
            grid=(T,),
            in_specs=[
                pl.BlockSpec((B, pl.Squeezed(), H, W, Cin),
                             lambda t: (0, t, 0, 0, 0)),
                pl.BlockSpec((KH, KW, Cin, 3 * hidden_dim),
                             lambda t: (0, 0, 0, 0)),
                pl.BlockSpec((1, 3 * hidden_dim), lambda t: (0, 0)),
            ],
            out_specs=pl.BlockSpec((B, pl.Squeezed(), H, W, 3 * hidden_dim),
                                   lambda t: (0, t, 0, 0, 0)),
            scratch_shapes=[
                pltpu.VMEM((B, H + 2, W + 2, Cin), jnp.float32),
            ],
        ),
        compiler_params=pltpu.CompilerParams(
            dimension_semantics=("parallel",)),
    )(x_bthwc, wx, bx)


# ---------------------------------------------------------------------------
# Kernel B: the recurrence.  One grid point == one ConvGRUCell step applied to
# a b_block-sized batch chunk; the hidden state lives in a zero-padded VMEM
# scratch carried across the inner ("arbitrary") time axis.
# ---------------------------------------------------------------------------
def _convgru_recurrent_kernel(xconv_ref, w1_ref, w2_ref, out_ref, hpad_ref, *,
                              hidden_dim, b_block):
    t = pl.program_id(1)
    m = b_block * H * W
    hid = hidden_dim

    # New batch chunk -> reset the padded carry buffer (h0 == 0 and the zero
    # conv-"same" borders).  Only the interior is written afterwards, so the
    # border stays zero across time steps.  Must stay keyed on t == 0: it runs
    # once per batch chunk whether chunks share a core or are megacore-split.
    @pl.when(t == 0)
    def _():
        hpad_ref[...] = jnp.zeros_like(hpad_ref)

    # Hoisted x-path contribution for this step (biases already included).
    xconv = xconv_ref[...].reshape(m, 3 * hid)                   # f32
    # h_{t-1}: load the interior once, reuse for reset*h and the final mix.
    h_cur = hpad_ref[:, 1:1 + H, 1:1 + W, :].reshape(m, hid)     # f32

    # ---- pass 1: gate conv, h-channel rows (9 shifted bf16 MXU matmuls). ----
    acc1 = xconv[:, :2 * hid]
    for kh in range(KH):
        for kw in range(KW):
            lhs = hpad_ref[:, kh:kh + H, kw:kw + W, :].reshape(m, hid)
            acc1 = acc1 + jnp.dot(lhs.astype(jnp.bfloat16), w1_ref[kh, kw],
                                  preferred_element_type=jnp.float32)

    gates = jax.nn.sigmoid(acc1)            # one EUP pass over both gates
    reset_gate = gates[:, :hid]
    update_gate = gates[:, hid:]
    # TODO(synk): nn.Dropout(p=0.5) on the gates is eval-mode identity here;
    # training-mode stochastic dropout is not implemented.

    # Reuse the padded carry buffer for reset*h (no separate gh scratch).
    hpad_ref[:, 1:1 + H, 1:1 + W, :] = (reset_gate * h_cur).reshape(
        b_block, H, W, hid)

    # ---- pass 2: candidate conv, h-channel rows on reset*h. ----------------
    acc2 = xconv[:, 2 * hid:]
    for kh in range(KH):
        for kw in range(KW):
            lhs = hpad_ref[:, kh:kh + H, kw:kw + W, :].reshape(m, hid)
            acc2 = acc2 + jnp.dot(lhs.astype(jnp.bfloat16), w2_ref[kh, kw],
                                  preferred_element_type=jnp.float32)
    ct = jnp.tanh(acc2)

    # next_h = u*h + (1-u)*ct == ct + u*(h - ct)
    next_h = ct + update_gate * (h_cur - ct)
    next_h_b = next_h.reshape(b_block, H, W, hid)

    hpad_ref[:, 1:1 + H, 1:1 + W, :] = next_h_b     # carry to the next step
    out_ref[...] = next_h_b.astype(out_ref.dtype)


def convgru_recurrence(xconv, w1h, w2h, hidden_dim, b_block):
    B, T = xconv.shape[0], xconv.shape[1]
    assert B % b_block == 0
    kernel = functools.partial(_convgru_recurrent_kernel,
                               hidden_dim=hidden_dim, b_block=b_block)
    return pl.pallas_call(
        kernel,
        out_shape=jax.ShapeDtypeStruct((B, T, H, W, hidden_dim), jnp.float32),
        grid_spec=pltpu.PrefetchScalarGridSpec(
            num_scalar_prefetch=0,
            grid=(B // b_block, T),
            in_specs=[
                pl.BlockSpec((b_block, pl.Squeezed(), H, W, 3 * hidden_dim),
                             lambda b, t: (b, t, 0, 0, 0)),
                pl.BlockSpec((KH, KW, hidden_dim, 2 * hidden_dim),
                             lambda b, t: (0, 0, 0, 0)),
                pl.BlockSpec((KH, KW, hidden_dim, hidden_dim),
                             lambda b, t: (0, 0, 0, 0)),
            ],
            out_specs=pl.BlockSpec((b_block, pl.Squeezed(), H, W, hidden_dim),
                                   lambda b, t: (b, t, 0, 0, 0)),
            scratch_shapes=[
                # padded hidden-state carry (f32; matmul operands cast to bf16)
                pltpu.VMEM((b_block, H + 2, W + 2, hidden_dim), jnp.float32),
            ],
        ),
        # batch chunks are independent -> "parallel" (megacore when extent>=2);
        # time carries the recurrence in scratch -> "arbitrary".
        compiler_params=pltpu.CompilerParams(
            dimension_semantics=("parallel", "arbitrary")),
    )(xconv, w1h, w2h)


def _pick_b_block(B, hidden_dim, vmem_budget_bytes=32 << 20):
    """Batch-chunk size: split across dual-TC chips, cap by a VMEM budget."""
    kind = ""
    try:
        kind = jax.devices()[0].device_kind.lower()
    except Exception:
        pass
    dual_tc = any(tag in kind for tag in ("v7", "v4", "v5p"))
    b_block = B // 2 if (dual_tc and B >= 2 and B % 2 == 0) else B

    def footprint(bb):      # coarse lane-padded estimate, per core
        pad = lambda c: max(c, 128)
        hpad = bb * (H + 2) * (W + 2) * pad(hidden_dim) * 4
        xin = 2 * bb * H * W * pad(3 * hidden_dim) * 4      # double-buffered in
        out = 2 * bb * H * W * pad(hidden_dim) * 4          # double-buffered out
        return hpad + xin + out

    while b_block > 1 and (B % b_block or footprint(b_block) > vmem_budget_bytes):
        b_block -= 1
    return max(b_block, 1)


# ---------------------------------------------------------------------------
# ConvGRU wrapper (parameter setup + axis plumbing; mirrors the nn.Module).
# ---------------------------------------------------------------------------
class ConvGRUPallas:
    def __init__(self, input_size, input_dim, hidden_dim, kernel_size,
                 num_layers, batch_first=False, key=None):
        assert num_layers == 1, "demo mirrors the reference with num_layers=1"
        assert tuple(kernel_size) == (KH, KW)
        assert tuple(input_size) == (H, W)
        self.input_dim = input_dim
        self.hidden_dim = hidden_dim
        self.batch_first = batch_first

        cin = input_dim + hidden_dim
        bound = float((cin * KH * KW) ** -0.5)   # PyTorch Conv2d default init
        k0, k1, k2, k3 = jax.random.split(key, 4)
        # PyTorch Conv2d weight layout: (out, in, kh, kw).
        self.wg = jax.random.uniform(k0, (2 * hidden_dim, cin, KH, KW),
                                     jnp.float32, -bound, bound)
        self.bg = jax.random.uniform(k1, (2 * hidden_dim,), jnp.float32,
                                     -bound, bound)
        self.wc = jax.random.uniform(k2, (hidden_dim, cin, KH, KW),
                                     jnp.float32, -bound, bound)
        self.bc = jax.random.uniform(k3, (hidden_dim,), jnp.float32,
                                     -bound, bound)

        # ---- kernel weight packing ------------------------------------
        wgt = jnp.transpose(self.wg, (2, 3, 1, 0))   # (3,3,cin,2*hid)
        wct = jnp.transpose(self.wc, (2, 3, 1, 0))   # (3,3,cin,hid)
        # Hoisted x-path weight: x rows of [ConvGates | Conv_ct] (f32) + biases.
        self.wx = jnp.concatenate([wgt[:, :, :input_dim, :],
                                   wct[:, :, :input_dim, :]], axis=-1)
        self.bx = jnp.concatenate([self.bg, self.bc]).reshape(1, 3 * hidden_dim)
        # Recurrent h-path weights: bf16 matmul operands, f32 accumulation.
        self.w1h = wgt[:, :, input_dim:, :].astype(jnp.bfloat16)  # (3,3,hid,2h)
        self.w2h = wct[:, :, input_dim:, :].astype(jnp.bfloat16)  # (3,3,hid,hid)

    def __call__(self, input_tensor):
        # input_tensor: (t, b, c, h, w) when batch_first=False (PyTorch NCHW).
        if not self.batch_first:
            input_tensor = jnp.transpose(input_tensor, (1, 0, 2, 3, 4))
        x = jnp.transpose(input_tensor, (0, 1, 3, 4, 2))        # (b, t, h, w, c)
        B = x.shape[0]

        xconv = x_path_conv(x, self.wx, self.bx, self.input_dim,
                            self.hidden_dim)                    # (b,t,h,w,3*hid)
        b_block = _pick_b_block(B, self.hidden_dim)
        h_seq = convgru_recurrence(xconv, self.w1h, self.w2h, self.hidden_dim,
                                   b_block)                     # (b,t,h,w,hid)

        # layer_output = stack(dim=1).permute(1,0,2,3,4) -> (t, b, hid, h, w)
        layer_output = jnp.transpose(h_seq, (1, 0, 4, 2, 3))
        # last_state = [h_T, c] with c == 0 (cell returns (next_h, 0))
        last_h = jnp.transpose(h_seq[:, -1], (0, 3, 1, 2))      # (b, hid, h, w)
        return [layer_output], [[last_h, 0]]


# ---------------------------------------------------------------------------
# Pure-JAX reference (same math, lax.conv at HIGHEST precision).
# ---------------------------------------------------------------------------
def _ref_conv2d_same(x_nhwc, w_oihw, bias):
    w_hwio = jnp.transpose(w_oihw, (2, 3, 1, 0))
    y = jax.lax.conv_general_dilated(
        x_nhwc, w_hwio, window_strides=(1, 1), padding="SAME",
        dimension_numbers=("NHWC", "HWIO", "NHWC"),
        precision=jax.lax.Precision.HIGHEST)
    return y + bias


def ref_convgru_forward(input_tbchw, model):
    x = jnp.transpose(input_tbchw, (1, 0, 3, 4, 2))   # (b,t,h,w,c)
    B, T = x.shape[0], x.shape[1]
    hid = model.hidden_dim
    h = jnp.zeros((B, H, W, hid), jnp.float32)
    outs = []
    for t in range(T):
        xt = x[:, t]
        c1 = _ref_conv2d_same(jnp.concatenate([xt, h], -1), model.wg, model.bg)
        reset = jax.nn.sigmoid(c1[..., :hid])
        update = jax.nn.sigmoid(c1[..., hid:])
        p1 = _ref_conv2d_same(jnp.concatenate([xt, reset * h], -1),
                              model.wc, model.bc)
        ct = jnp.tanh(p1)
        h = update * h + (1.0 - update) * ct
        outs.append(h)
    h_seq = jnp.stack(outs, axis=1)                    # (b,t,h,w,hid)
    return jnp.transpose(h_seq, (1, 0, 4, 2, 3))       # (t,b,hid,h,w)


if __name__ == "__main__":
    T, B, C = 8, 2, 4
    HIDDEN = 32

    key = jax.random.PRNGKey(0)
    k_x, k_p = jax.random.split(key)
    # (t, b, c, h, w) -- batch_first=False, matches the reference layout.
    x = jax.random.normal(k_x, (T, B, C, H, W), jnp.float32)

    model = ConvGRUPallas(input_size=(H, W), input_dim=C, hidden_dim=HIDDEN,
                          kernel_size=(3, 3), num_layers=1, batch_first=False,
                          key=k_p)

    layer_outputs, last_states = model(x)
    layer_out = jax.block_until_ready(layer_outputs[0])   # (t, b, hid, h, w)
    last_h = jax.block_until_ready(last_states[0][0])     # (b, hid, h, w)

    assert layer_out.shape == (T, B, HIDDEN, H, W)
    assert last_h.shape == (B, HIDDEN, H, W)

    ref = jax.block_until_ready(ref_convgru_forward(x, model))
    max_err = float(jnp.max(jnp.abs(layer_out - ref)))
    # bf16 matmul operands in the recurrent h-path (review item) -> slightly
    # looser tolerance than a bf16x3/HIGHEST f32 comparison would need.
    assert jnp.allclose(layer_out, ref, atol=5e-3, rtol=5e-3), max_err
    assert jnp.allclose(last_h, ref[-1], atol=5e-3, rtol=5e-3), max_err

    print("KERNEL_OK")
</pallas_src>

<mosaic_0001>
module attributes {stable_mosaic.version = 11 : i64} {
  func.func @_x_path_kernel(%arg0: i32, %arg1: memref<2x1x8x16x4xf32, #tpu.memory_space<vmem>>, %arg2: memref<3x3x4x96xf32, #tpu.memory_space<vmem>>, %arg3: memref<1x96xf32, #tpu.memory_space<vmem>>, %arg4: memref<2x1x8x16x96xf32, #tpu.memory_space<vmem>>, %arg5: memref<2x10x18x4xf32, #tpu.memory_space<vmem>>) attributes {dimension_semantics = [#tpu.dimension_semantics<parallel>], iteration_bounds = array<i64: 8>, scalar_prefetch = 0 : i64, scratch_operands = 1 : i64, tpu.core_type = #tpu.core_type<tc>, window_params = [{transform_indices = @transform_0, window_bounds = array<i64: 2, 1, 8, 16, 4>}, {pipeline_mode = #tpu.pipeline_mode<synchronous>, transform_indices = @transform_1, window_bounds = array<i64: 3, 3, 4, 96>}, {pipeline_mode = #tpu.pipeline_mode<synchronous>, transform_indices = @transform_2, window_bounds = array<i64: 1, 96>}, {transform_indices = @transform_3, window_bounds = array<i64: 2, 1, 8, 16, 96>}]} {
    %cst = arith.constant 0.000000e+00 : f32
    %0 = vector.broadcast %cst : f32 to vector<2x10x18x4xf32>
    %c0 = arith.constant 0 : index
    %c0_0 = arith.constant 0 : index
    %c0_1 = arith.constant 0 : index
    %c0_2 = arith.constant 0 : index
    %1 = vector.load %arg5[%c0, %c0_0, %c0_1, %c0_2] : memref<2x10x18x4xf32, #tpu.memory_space<vmem>>, vector<2x10x18x4xf32>
    tpu.vector_store %arg5[%c0, %c0_0, %c0_1, %c0_2], %0 {strides = array<i32>} : memref<2x10x18x4xf32, #tpu.memory_space<vmem>>, vector<2x10x18x4xf32>,
    %c0_3 = arith.constant 0 : index
    %c0_4 = arith.constant 0 : index
    %c0_5 = arith.constant 0 : index
    %c0_6 = arith.constant 0 : index
    %c0_7 = arith.constant 0 : index
    %2 = vector.load %arg1[%c0_3, %c0_4, %c0_5, %c0_6, %c0_7] : memref<2x1x8x16x4xf32, #tpu.memory_space<vmem>>, vector<2x1x8x16x4xf32>
    %3 = vector.shape_cast %2 : vector<2x1x8x16x4xf32> to vector<2x8x16x4xf32>
    %c0_8 = arith.constant 0 : index
    %c1 = arith.constant 1 : index
    %c1_9 = arith.constant 1 : index
    %c0_10 = arith.constant 0 : index
    %4 = vector.load %arg5[%c0_8, %c1, %c1_9, %c0_10] : memref<2x10x18x4xf32, #tpu.memory_space<vmem>>, vector<2x8x16x4xf32>
    tpu.vector_store %arg5[%c0_8, %c1, %c1_9, %c0_10], %3 {strides = array<i32>} : memref<2x10x18x4xf32, #tpu.memory_space<vmem>>, vector<2x8x16x4xf32>,
    %c0_11 = arith.constant 0 : index
    %c0_12 = arith.constant 0 : index
    %c0_13 = arith.constant 0 : index
    %c0_14 = arith.constant 0 : index
    %5 = vector.load %arg5[%c0_11, %c0_12, %c0_13, %c0_14] : memref<2x10x18x4xf32, #tpu.memory_space<vmem>>, vector<2x8x16x4xf32>
    %6 = vector.shape_cast %5 : vector<2x8x16x4xf32> to vector<256x4xf32>
    %c0_15 = arith.constant 0 : index
    %c0_16 = arith.constant 0 : index
    %c0_17 = arith.constant 0 : index
    %c0_18 = arith.constant 0 : index
    %7 = vector.load %arg2[%c0_15, %c0_16, %c0_17, %c0_18] : memref<3x3x4x96xf32, #tpu.memory_space<vmem>>, vector<1x1x4x96xf32>
    %8 = vector.shape_cast %7 : vector<1x1x4x96xf32> to vector<4x96xf32>
    %cst_19 = arith.constant dense<0.000000e+00> : vector<256x96xf32>
    %9 = tpu.matmul %6, %8, %cst_19 {dimension_numbers = #tpu.dot_dimension_numbers<[1], [0], [0], [1], [0, 0, 1, 1], [], []>} : vector<256x4xf32>, vector<4x96xf32>, vector<256x96xf32> -> vector<256x96xf32>
    %c0_20 = arith.constant 0 : index
    %c0_21 = arith.constant 0 : index
    %c1_22 = arith.constant 1 : index
    %c0_23 = arith.constant 0 : index
    %10 = vector.load %arg5[%c0_20, %c0_21, %c1_22, %c0_23] : memref<2x10x18x4xf32, #tpu.memory_space<vmem>>, vector<2x8x16x4xf32>
    %11 = vector.shape_cast %10 : vector<2x8x16x4xf32> to vector<256x4xf32>
    %c0_24 = arith.constant 0 : index
    %c1_25 = arith.constant 1 : index
    %c0_26 = arith.constant 0 : index
    %c0_27 = arith.constant 0 : index
    %12 = vector.load %arg2[%c0_24, %c1_25, %c0_26, %c0_27] : memref<3x3x4x96xf32, #tpu.memory_space<vmem>>, vector<1x1x4x96xf32>
    %13 = vector.shape_cast %12 : vector<1x1x4x96xf32> to vector<4x96xf32>
    %cst_28 = arith.constant dense<0.000000e+00> : vector<256x96xf32>
    %14 = tpu.matmul %11, %13, %cst_28 {dimension_numbers = #tpu.dot_dimension_numbers<[1], [0], [0], [1], [0, 0, 1, 1], [], []>} : vector<256x4xf32>, vector<4x96xf32>, vector<256x96xf32> -> vector<256x96xf32>
    %15 = arith.addf %9, %14 : vector<256x96xf32>
    %c0_29 = arith.constant 0 : index
    %c0_30 = arith.constant 0 : index
    %c2 = arith.constant 2 : index
    %c0_31 = arith.constant 0 : index
    %16 = vector.load %arg5[%c0_29, %c0_30, %c2, %c0_31] : memref<2x10x18x4xf32, #tpu.memory_space<vmem>>, vector<2x8x16x4xf32>
    %17 = vector.shape_cast %16 : vector<2x8x16x4xf32> to vector<256x4xf32>
    %c0_32 = arith.constant 0 : index
    %c2_33 = arith.constant 2 : index
    %c0_34 = arith.constant 0 : index
    %c0_35 = arith.constant 0 : index
    %18 = vector.load %arg2[%c0_32, %c2_33, %c0_34, %c0_35] : memref<3x3x4x96xf32, #tpu.memory_space<vmem>>, vector<1x1x4x96xf32>
    %19 = vector.shape_cast %18 : vector<1x1x4x96xf32> to vector<4x96xf32>
    %cst_36 = arith.constant dense<0.000000e+00> : vector<256x96xf32>
    %20 = tpu.matmul %17, %19, %cst_36 {dimension_numbers = #tpu.dot_dimension_numbers<[1], [0], [0], [1], [0, 0, 1, 1], [], []>} : vector<256x4xf32>, vector<4x96xf32>, vector<256x96xf32> -> vector<256x96xf32>
    %21 = arith.addf %15, %20 : vector<256x96xf32>
    %c0_37 = arith.constant 0 : index
    %c1_38 = arith.constant 1 : index
    %c0_39 = arith.constant 0 : index
    %c0_40 = arith.constant 0 : index
    %22 = vector.load %arg5[%c0_37, %c1_38, %c0_39, %c0_40] : memref<2x10x18x4xf32, #tpu.memory_space<vmem>>, vector<2x8x16x4xf32>
    %23 = vector.shape_cast %22 : vector<2x8x16x4xf32> to vector<256x4xf32>
    %c1_41 = arith.constant 1 : index
    %c0_42 = arith.constant 0 : index
    %c0_43 = arith.constant 0 : index
    %c0_44 = arith.constant 0 : index
    %24 = vector.load %arg2[%c1_41, %c0_42, %c0_43, %c0_44] : memref<3x3x4x96xf32, #tpu.memory_space<vmem>>, vector<1x1x4x96xf32>
    %25 = vector.shape_cast %24 : vector<1x1x4x96xf32> to vector<4x96xf32>
    %cst_45 = arith.constant dense<0.000000e+00> : vector<256x96xf32>
    %26 = tpu.matmul %23, %25, %cst_45 {dimension_numbers = #tpu.dot_dimension_numbers<[1], [0], [0], [1], [0, 0, 1, 1], [], []>} : vector<256x4xf32>, vector<4x96xf32>, vector<256x96xf32> -> vector<256x96xf32>
    %27 = arith.addf %21, %26 : vector<256x96xf32>
    %c0_46 = arith.constant 0 : index
    %c1_47 = arith.constant 1 : index
    %c1_48 = arith.constant 1 : index
    %c0_49 = arith.constant 0 : index
    %28 = vector.load %arg5[%c0_46, %c1_47, %c1_48, %c0_49] : memref<2x10x18x4xf32, #tpu.memory_space<vmem>>, vector<2x8x16x4xf32>
    %29 = vector.shape_cast %28 : vector<2x8x16x4xf32> to vector<256x4xf32>
    %c1_50 = arith.constant 1 : index
    %c1_51 = arith.constant 1 : index
    %c0_52 = arith.constant 0 : index
    %c0_53 = arith.constant 0 : index
    %30 = vector.load %arg2[%c1_50, %c1_51, %c0_52, %c0_53] : memref<3x3x4x96xf32, #tpu.memory_space<vmem>>, vector<1x1x4x96xf32>
    %31 = vector.shape_cast %30 : vector<1x1x4x96xf32> to vector<4x96xf32>
    %cst_54 = arith.constant dense<0.000000e+00> : vector<256x96xf32>
    %32 = tpu.matmul %29, %31, %cst_54 {dimension_numbers = #tpu.dot_dimension_numbers<[1], [0], [0], [1], [0, 0, 1, 1], [], []>} : vector<256x4xf32>, vector<4x96xf32>, vector<256x96xf32> -> vector<256x96xf32>
    %33 = arith.addf %27, %32 : vector<256x96xf32>
    %c0_55 = arith.constant 0 : index
    %c1_56 = arith.constant 1 : index
    %c2_57 = arith.constant 2 : index
    %c0_58 = arith.constant 0 : index
    %34 = vector.load %arg5[%c0_55, %c1_56, %c2_57, %c0_58] : memref<2x10x18x4xf32, #tpu.memory_space<vmem>>, vector<2x8x16x4xf32>
    %35 = vector.shape_cast %34 : vector<2x8x16x4xf32> to vector<256x4xf32>
    %c1_59 = arith.constant 1 : index
    %c2_60 = arith.constant 2 : index
    %c0_61 = arith.constant 0 : index
    %c0_62 = arith.constant 0 : index
    %36 = vector.load %arg2[%c1_59, %c2_60, %c0_61, %c0_62] : memref<3x3x4x96xf32, #tpu.memory_space<vmem>>, vector<1x1x4x96xf32>
    %37 = vector.shape_cast %36 : vector<1x1x4x96xf32> to vector<4x96xf32>
    %cst_63 = arith.constant dense<0.000000e+00> : vector<256x96xf32>
    %38 = tpu.matmul %35, %37, %cst_63 {dimension_numbers = #tpu.dot_dimension_numbers<[1], [0], [0], [1], [0, 0, 1, 1], [], []>} : vector<256x4xf32>, vector<4x96xf32>, vector<256x96xf32> -> vector<256x96xf32>
    %39 = arith.addf %33, %38 : vector<256x96xf32>
    %c0_64 = arith.constant 0 : index
    %c2_65 = arith.constant 2 : index
    %c0_66 = arith.constant 0 : index
    %c0_67 = arith.constant 0 : index
    %40 = vector.load %arg5[%c0_64, %c2_65, %c0_66, %c0_67] : memref<2x10x18x4xf32, #tpu.memory_space<vmem>>, vector<2x8x16x4xf32>
    %41 = vector.shape_cast %40 : vector<2x8x16x4xf32> to vector<256x4xf32>
    %c2_68 = arith.constant 2 : index
    %c0_69 = arith.constant 0 : index
    %c0_70 = arith.constant 0 : index
    %c0_71 = arith.constant 0 : index
    %42 = vector.load %arg2[%c2_68, %c0_69, %c0_70, %c0_71] : memref<3x3x4x96xf32, #tpu.memory_space<vmem>>, vector<1x1x4x96xf32>
    %43 = vector.shape_cast %42 : vector<1x1x4x96xf32> to vector<4x96xf32>
    %cst_72 = arith.constant dense<0.000000e+00> : vector<256x96xf32>
    %44 = tpu.matmul %41, %43, %cst_72 {dimension_numbers = #tpu.dot_dimension_numbers<[1], [0], [0], [1], [0, 0, 1, 1], [], []>} : vector<256x4xf32>, vector<4x96xf32>, vector<256x96xf32> -> vector<256x96xf32>
    %45 = arith.addf %39, %44 : vector<256x96xf32>
    %c0_73 = arith.constant 0 : index
    %c2_74 = arith.constant 2 : index
    %c1_75 = arith.constant 1 : index
    %c0_76 = arith.constant 0 : index
    %46 = vector.load %arg5[%c0_73, %c2_74, %c1_75, %c0_76] : memref<2x10x18x4xf32, #tpu.memory_space<vmem>>, vector<2x8x16x4xf32>
    %47 = vector.shape_cast %46 : vector<2x8x16x4xf32> to vector<256x4xf32>
    %c2_77 = arith.constant 2 : index
    %c1_78 = arith.constant 1 : index
    %c0_79 = arith.constant 0 : index
    %c0_80 = arith.constant 0 : index
    %48 = vector.load %arg2[%c2_77, %c1_78, %c0_79, %c0_80] : memref<3x3x4x96xf32, #tpu.memory_space<vmem>>, vector<1x1x4x96xf32>
    %49 = vector.shape_cast %48 : vector<1x1x4x96xf32> to vector<4x96xf32>
    %cst_81 = arith.constant dense<0.000000e+00> : vector<256x96xf32>
    %50 = tpu.matmul %47, %49, %cst_81 {dimension_numbers = #tpu.dot_dimension_numbers<[1], [0], [0], [1], [0, 0, 1, 1], [], []>} : vector<256x4xf32>, vector<4x96xf32>, vector<256x96xf32> -> vector<256x96xf32>
    %51 = arith.addf %45, %50 : vector<256x96xf32>
    %c0_82 = arith.constant 0 : index
    %c2_83 = arith.constant 2 : index
    %c2_84 = arith.constant 2 : index
    %c0_85 = arith.constant 0 : index
    %52 = vector.load %arg5[%c0_82, %c2_83, %c2_84, %c0_85] : memref<2x10x18x4xf32, #tpu.memory_space<vmem>>, vector<2x8x16x4xf32>
    %53 = vector.shape_cast %52 : vector<2x8x16x4xf32> to vector<256x4xf32>
    %c2_86 = arith.constant 2 : index
    %c2_87 = arith.constant 2 : index
    %c0_88 = arith.constant 0 : index
    %c0_89 = arith.constant 0 : index
    %54 = vector.load %arg2[%c2_86, %c2_87, %c0_88, %c0_89] : memref<3x3x4x96xf32, #tpu.memory_space<vmem>>, vector<1x1x4x96xf32>
    %55 = vector.shape_cast %54 : vector<1x1x4x96xf32> to vector<4x96xf32>
    %cst_90 = arith.constant dense<0.000000e+00> : vector<256x96xf32>
    %56 = tpu.matmul %53, %55, %cst_90 {dimension_numbers = #tpu.dot_dimension_numbers<[1], [0], [0], [1], [0, 0, 1, 1], [], []>} : vector<256x4xf32>, vector<4x96xf32>, vector<256x96xf32> -> vector<256x96xf32>
    %57 = arith.addf %51, %56 : vector<256x96xf32>
    %c0_91 = arith.constant 0 : index
    %c0_92 = arith.constant 0 : index
    %58 = vector.load %arg3[%c0_91, %c0_92] : memref<1x96xf32, #tpu.memory_space<vmem>>, vector<1x96xf32>
    %59 = vector.broadcast %58 : vector<1x96xf32> to vector<256x96xf32>
    %60 = arith.addf %57, %59 : vector<256x96xf32>
    %61 = vector.shape_cast %60 : vector<256x96xf32> to vector<2x8x16x96xf32>
    %c0_93 = arith.constant 0 : index
    %c0_94 = arith.constant 0 : index
    %c0_95 = arith.constant 0 : index
    %c0_96 = arith.constant 0 : index
    %c0_97 = arith.constant 0 : index
    %62 = vector.load %arg4[%c0_93, %c0_94, %c0_95, %c0_96, %c0_97] : memref<2x1x8x16x96xf32, #tpu.memory_space<vmem>>, vector<2x1x8x16x96xf32>
    %63 = vector.shape_cast %62 : vector<2x1x8x16x96xf32> to vector<2x8x16x96xf32>
    %64 = vector.shape_cast %61 : vector<2x8x16x96xf32> to vector<2x1x8x16x96xf32>
    tpu.vector_store %arg4[%c0_93, %c0_94, %c0_95, %c0_96, %c0_97], %64 {strides = array<i32>} : memref<2x1x8x16x96xf32, #tpu.memory_space<vmem>>, vector<2x1x8x16x96xf32>,
    return
  }
  func.func @transform_0(%arg0: i32) -> (i32, i32, i32, i32, i32) {
    %c0_i32 = arith.constant 0 : i32
    %c0_i32_0 = arith.constant 0 : i32
    %c0_i32_1 = arith.constant 0 : i32
    %c0_i32_2 = arith.constant 0 : i32
    %c0_i32_3 = arith.constant 0 : i32
    return %c0_i32, %arg0, %c0_i32_0, %c0_i32_1, %c0_i32_2 : i32, i32, i32, i32, i32
  }
  func.func @transform_1(%arg0: i32) -> (i32, i32, i32, i32) {
    %c0_i32 = arith.constant 0 : i32
    %c0_i32_0 = arith.constant 0 : i32
    %c0_i32_1 = arith.constant 0 : i32
    %c0_i32_2 = arith.constant 0 : i32
    %c0_i32_3 = arith.constant 0 : i32
    return %c0_i32, %c0_i32_0, %c0_i32_1, %c0_i32_2 : i32, i32, i32, i32
  }
  func.func @transform_2(%arg0: i32) -> (i32, i32) {
    %c0_i32 = arith.constant 0 : i32
    %c0_i32_0 = arith.constant 0 : i32
    %c0_i32_1 = arith.constant 0 : i32
    return %c0_i32, %c0_i32_0 : i32, i32
  }
  func.func @transform_3(%arg0: i32) -> (i32, i32, i32, i32, i32) {
    %c0_i32 = arith.constant 0 : i32
    %c0_i32_0 = arith.constant 0 : i32
    %c0_i32_1 = arith.constant 0 : i32
    %c0_i32_2 = arith.constant 0 : i32
    %c0_i32_3 = arith.constant 0 : i32
    return %c0_i32, %arg0, %c0_i32_0, %c0_i32_1, %c0_i32_2 : i32, i32, i32, i32, i32
  }
}

</mosaic_0001>

<llo_original>
// kernel: tpu_custom_call.1
$region0: #{tpu_custom_call.1}
  #allocation0 [shape = 'u32[]', space=smem, size = 0x4, offset = 0x4, fixed_abs, tag = 'smem constant byte address 0x4 - core index']
  #allocation1 [shape = 'u32[144,128]{1,0:T(1,128)}', space=vmem, size = 0x12000, scoped, tag = 'internal scratch']
  #allocation2 [shape = 'f32[2,10,18,4]{3,2,1,0:T(8,128)}', space=vmem, size = 0x3c000, scoped, tag = 'scratch operand']
  #allocation6 [shape = 's32[]', space=sflag, size = 0x4, offset = 0, fixed_abs, tag = 'sflag constant byte address 0x0 - dummy sync flag']
  %s0 = inlined_call_operand.vmem [shape: f32[2,8,8,16,4], index: 0, kind: input, shape index: {}]
  %s1 = inlined_call_operand.vmem [shape: f32[3,3,4,96], index: 1, kind: input, shape index: {}]
  %s2 = inlined_call_operand.vmem [shape: f32[1,96], index: 2, kind: input, shape index: {}]
  %s3 = inlined_call_operand.hbm [shape: f32[2,8,8,16,96], index: 3, kind: output, shape index: {}]
  %s4 = sld [smem:[#allocation0]]
  $region83: #{tpu_custom_call.1} parent=0
    _
  %s6 = ssub.s32 1, %s4
  %s7 = scalar_select 0, %s6, %s4
  $region1: #{tpu_custom_call.1} parent=0
    #allocation3 [shape = 'u8[262144]{0}', space=vmem, size = 0x40000, scoped, tag = 'input window, operand 0']
    #allocation4 [shape = 'u8[262144]{0}', space=vmem, size = 0x40000, scoped, tag = 'output window, operand 0']
    #allocation5 [shape = 's32[2]{0}', space=sflag, size = 0x8, scoped, tag = 'scoped memory for tpu_custom_call.1']
    %8 = vsyncpa [#allocation5], 0
    %s9 = scalar_lea.sflag [#allocation5], 1
    %10 = vsyncpa %s9, 0
    loop: start=0, step=1, limit=10
    $region2: #{tpu_custom_call.1} parent=1 // loop_pre_header
      _
    $region3: #{tpu_custom_call.1} parent=1 // loop_header
      %s12 = sphi 0, %s16
      %p13 = scmp.ge.s32.totalorder %s12, 10
      %s22 = sphi 0, %s24
      %s25 = sphi 0, %s22
      %s26 = sphi 0, %s25
      %s42 = sphi 0, %s26
      %s46 = sphi 0, %s46
      %s48 = sphi 0, %s46
      %s49 = sphi 0, %s48
      %s63 = sphi 0, %s49
      %s67 = sphi 0, %s67
      %s69 = sphi 0, %s67
      %s70 = sphi 0, %s69
      %s84 = sphi 0, %s70
      %s90 = sphi 0, %s92
      %s93 = sphi 0, %s90
      %s94 = sphi 0, %s93
      %s110 = sphi 0, %s94
    $region4: #{tpu_custom_call.1} parent=1 // loop_header_branch
      %15 = sbr.rel (%p13) target = $region8
    $region5: #{tpu_custom_call.1} parent=1 // loop_body
      %s17 = ssub.s32 %s12, 1
      %s18 = ssub.s32 %s12, 2
      %s19 = sadd.s32 %s12, 1
      %s20 = ssub.s32 %s12, %s19
      %p21 = scmp.eq.s32.totalorder %s20, 0
      %s23 = sadd.s32 %s22, 1
      %s24 = scalar_select %p21, %s22, %s23
      %p27 = pneg %p21
      %p28 = scmp.eq.s32.totalorder %s12, 7
      %p29 = por %p27, %p28
      %p30 = scmp.ne.s32.totalorder %s22, %s25
      %p31 = scmp.eq.s32.totalorder %s12, 0
      %p32 = por %p30, %p31
      %p33 = scmp.ne.s32.totalorder %s22, %s25
      %p34 = scmp.eq.s32.totalorder %s17, 7
      %p35 = por %p33, %p34
      %p36 = scmp.ne.s32.totalorder %s25, %s26
      %p37 = scmp.eq.s32.totalorder %s17, 0
      %p38 = por %p36, %p37
      %p39 = scmp.ne.s32.totalorder %s25, %s26
      %p40 = scmp.eq.s32.totalorder %s18, 7
      %p41 = por %p39, %p40
      %p43 = scmp.ne.s32.totalorder %s26, %s42
      %p44 = scmp.eq.s32.totalorder %s18, 0
      %p45 = por %p43, %p44
      %s47 = sadd.s32 %s46, 1
      %p50 = scmp.eq.s32.totalorder %s12, 7
      %p51 = scmp.ne.s32.totalorder %s46, %s48
      %p52 = scmp.eq.s32.totalorder %s12, 0
      %p53 = por %p51, %p52
      %p54 = scmp.ne.s32.totalorder %s46, %s48
      %p55 = scmp.eq.s32.totalorder %s17, 7
      %p56 = por %p54, %p55
      %p57 = scmp.ne.s32.totalorder %s48, %s49
      %p58 = scmp.eq.s32.totalorder %s17, 0
      %p59 = por %p57, %p58
      %p60 = scmp.ne.s32.totalorder %s48, %s49
      %p61 = scmp.eq.s32.totalorder %s18, 7
      %p62 = por %p60, %p61
      %p64 = scmp.ne.s32.totalorder %s49, %s63
      %p65 = scmp.eq.s32.totalorder %s18, 0
      %p66 = por %p64, %p65
      %s68 = sadd.s32 %s67, 1
      %p71 = scmp.eq.s32.totalorder %s12, 7
      %p72 = scmp.ne.s32.totalorder %s67, %s69
      %p73 = scmp.eq.s32.totalorder %s12, 0
      %p74 = por %p72, %p73
      %p75 = scmp.ne.s32.totalorder %s67, %s69
      %p76 = scmp.eq.s32.totalorder %s17, 7
      %p77 = por %p75, %p76
      %p78 = scmp.ne.s32.totalorder %s69, %s70
      %p79 = scmp.eq.s32.totalorder %s17, 0
      %p80 = por %p78, %p79
      %p81 = scmp.ne.s32.totalorder %s69, %s70
      %p82 = scmp.eq.s32.totalorder %s18, 7
      %p83 = por %p81, %p82
      %p85 = scmp.ne.s32.totalorder %s70, %s84
      %p86 = scmp.eq.s32.totalorder %s18, 0
      %p87 = por %p85, %p86
      %s88 = ssub.s32 %s12, %s19
      %p89 = scmp.eq.s32.totalorder %s88, 0
      %s91 = sadd.s32 %s90, 1
      %s92 = scalar_select %p89, %s90, %s91
      %p95 = pneg %p89
      %p96 = scmp.eq.s32.totalorder %s12, 7
      %p97 = por %p95, %p96
      %p98 = scmp.ne.s32.totalorder %s90, %s93
      %p99 = scmp.eq.s32.totalorder %s12, 0
      %p100 = por %p98, %p99
      %p101 = scmp.ne.s32.totalorder %s90, %s93
      %p102 = scmp.eq.s32.totalorder %s17, 7
      %p103 = por %p101, %p102
      %p104 = scmp.ne.s32.totalorder %s93, %s94
      %p105 = scmp.eq.s32.totalorder %s17, 0
      %p106 = por %p104, %p105
      %p107 = scmp.ne.s32.totalorder %s93, %s94
      %p108 = scmp.eq.s32.totalorder %s18, 7
      %p109 = por %p107, %p108
      %p111 = scmp.ne.s32.totalorder %s94, %s110
      %p112 = scmp.eq.s32.totalorder %s18, 0
      %p113 = por %p111, %p112
      %p114 = scmp.le.s32.totalorder 1, %s12
      %p115 = scmp.lt.s32.totalorder %s12, 9
      %p116 = pnand %p114, %p115
      %p117 = pneg %p116
      // Predicated region
      $region9: #{tpu_custom_call.1} parent=5 // pred_check
        _
      $region10: #{tpu_custom_call.1} parent=5 // pred_check_branch
        %119 = sbr.rel (%p116) target = $region12
      $region11: #{tpu_custom_call.1} parent=5 // pred_region
        %s120 = ssub.s32 %s12, 1
        // Predicated region
        $region13: #{tpu_custom_call.1} parent=11 // pred_check
          %p121 = pneg %p59
        $region14: #{tpu_custom_call.1} parent=11 // pred_check_branch
          %123 = sbr.rel (%p121) target = $region16
        $region15: #{tpu_custom_call.1} parent=11 // pred_region
          _
        $region16: #{tpu_custom_call.1} parent=11 // pred_fallthru
          _
        // Predicated region
        $region17: #{tpu_custom_call.1} parent=11 // pred_check
          %p124 = pneg %p80
        $region18: #{tpu_custom_call.1} parent=11 // pred_check_branch
          %126 = sbr.rel (%p124) target = $region20
        $region19: #{tpu_custom_call.1} parent=11 // pred_region
          _
        $region20: #{tpu_custom_call.1} parent=11 // pred_fallthru
          _
      $region12: #{tpu_custom_call.1} parent=5 // pred_fallthru
        _
      %p127 = scmp.lt.s32.totalorder %s12, 8
      // Predicated region
      $region21: #{tpu_custom_call.1} parent=5 // pred_check
        %p128 = pneg %p127
      $region22: #{tpu_custom_call.1} parent=5 // pred_check_branch
        %130 = sbr.rel (%p128) target = $region24
      $region23: #{tpu_custom_call.1} parent=5 // pred_region
        // Predicated region
        $region25: #{tpu_custom_call.1} parent=23 // pred_check
          %p131 = pneg %p32
        $region26: #{tpu_custom_call.1} parent=23 // pred_check_branch
          %133 = sbr.rel (%p131) target = $region28
        $region27: #{tpu_custom_call.1} parent=23 // pred_region
          %s134 = sand.u32 %s22, 1
          %s135 = sand.u32 %s22, 1
          %s136 = smul.addr %s135, 256
          %s137 = scalar_lea.vmem [#allocation3], %s136
          %s138 = smul.addr %s12, 16
          %s139 = smul.addr %s138, 8
          %s140 = scalar_lea.vmem %s0, %s139
          // Predicated region
          $region29: #{tpu_custom_call.1} parent=27 // pred_check
            _
          $region30: #{tpu_custom_call.1} parent=27 // pred_check_branch
            %142 = sbr.rel (0) target = $region32
          $region31: #{tpu_custom_call.1} parent=27 // pred_region
            // Predicated region
            $region33: #{tpu_custom_call.1} parent=31 // pred_check
              _
            $region34: #{tpu_custom_call.1} parent=31 // pred_check_branch
              %144 = sbr.rel (0) target = $region36
            $region35: #{tpu_custom_call.1} parent=31 // pred_region
              // Predicated region
              $region48: #{tpu_custom_call.1} parent=35 // pred_check
                _
              $region49: #{tpu_custom_call.1} parent=35 // pred_check_branch
                %222 = sbr.rel (0) target = $region51
              $region50: #{tpu_custom_call.1} parent=35 // pred_region
                loop: start=0, step=1, limit=1
                $region52: #{tpu_custom_call.1} parent=50 // loop_pre_header
                  _
                $region53: #{tpu_custom_call.1} parent=50 // loop_header
                  %s224 = sphi 0, %s228
                  %p225 = scmp.ge.s32.totalorder %s224, 1
                  %s229 = sphi %s140, %s140
                  %s230 = sphi %s137, %s137
                $region54: #{tpu_custom_call.1} parent=50 // loop_header_branch
                  %227 = sbr.rel (%p225) target = $region58
                $region55: #{tpu_custom_call.1} parent=50 // loop_body
                  %v231 = vld [vmem:[%s229] sm:$0xff]
                  %232 = vst [vmem:[%s230] sm:$0xff] %v231
                  %v233 = vld [vmem:[%s229 + $0x8] sm:$0xff]
                  %234 = vst [vmem:[%s230 + $0x8] sm:$0xff] %v233
                  %v235 = vld [vmem:[%s229 + $0x10] sm:$0xff]
                  %236 = vst [vmem:[%s230 + $0x10] sm:$0xff] %v235
                  %v237 = vld [vmem:[%s229 + $0x18] sm:$0xff]
                  %238 = vst [vmem:[%s230 + $0x18] sm:$0xff] %v237
                  %v239 = vld [vmem:[%s229 + $0x20] sm:$0xff]
                  %240 = vst [vmem:[%s230 + $0x20] sm:$0xff] %v239
                  %v241 = vld [vmem:[%s229 + $0x28] sm:$0xff]
                  %242 = vst [vmem:[%s230 + $0x28] sm:$0xff] %v241
                  %v243 = vld [vmem:[%s229 + $0x30] sm:$0xff]
                  %244 = vst [vmem:[%s230 + $0x30] sm:$0xff] %v243
                  %v245 = vld [vmem:[%s229 + $0x38] sm:$0xff]
                  %246 = vst [vmem:[%s230 + $0x38] sm:$0xff] %v245
                  %v247 = vld [vmem:[%s229 + $0x40] sm:$0xff]
                  %248 = vst [vmem:[%s230 + $0x40] sm:$0xff] %v247
                  %v249 = vld [vmem:[%s229 + $0x48] sm:$0xff]
                  %250 = vst [vmem:[%s230 + $0x48] sm:$0xff] %v249
                  %v251 = vld [vmem:[%s229 + $0x50] sm:$0xff]
                  %252 = vst [vmem:[%s230 + $0x50] sm:$0xff] %v251
                  %v253 = vld [vmem:[%s229 + $0x58] sm:$0xff]
                  %254 = vst [vmem:[%s230 + $0x58] sm:$0xff] %v253
                  %v255 = vld [vmem:[%s229 + $0x60] sm:$0xff]
                  %256 = vst [vmem:[%s230 + $0x60] sm:$0xff] %v255
                  %v257 = vld [vmem:[%s229 + $0x68] sm:$0xff]
                  %258 = vst [vmem:[%s230 + $0x68] sm:$0xff] %v257
                  %v259 = vld [vmem:[%s229 + $0x70] sm:$0xff]
                  %260 = vst [vmem:[%s230 + $0x70] sm:$0xff] %v259
                  %v261 = vld [vmem:[%s229 + $0x78] sm:$0xff]
                  %262 = vst [vmem:[%s230 + $0x78] sm:$0xff] %v261
                  %v263 = vld [vmem:[%s229 + $0x400] sm:$0xff]
                  %264 = vst [vmem:[%s230 + $0x80] sm:$0xff] %v263
                  %v265 = vld [vmem:[%s229 + $0x408] sm:$0xff]
                  %266 = vst [vmem:[%s230 + $0x88] sm:$0xff] %v265
                  %v267 = vld [vmem:[%s229 + $0x410] sm:$0xff]
                  %268 = vst [vmem:[%s230 + $0x90] sm:$0xff] %v267
                  %v269 = vld [vmem:[%s229 + $0x418] sm:$0xff]
                  %270 = vst [vmem:[%s230 + $0x98] sm:$0xff] %v269
                  %v271 = vld [vmem:[%s229 + $0x420] sm:$0xff]
                  %272 = vst [vmem:[%s230 + $0xa0] sm:$0xff] %v271
                  %v273 = vld [vmem:[%s229 + $0x428] sm:$0xff]
                  %274 = vst [vmem:[%s230 + $0xa8] sm:$0xff] %v273
                  %v275 = vld [vmem:[%s229 + $0x430] sm:$0xff]
                  %276 = vst [vmem:[%s230 + $0xb0] sm:$0xff] %v275
                  %v277 = vld [vmem:[%s229 + $0x438] sm:$0xff]
                  %278 = vst [vmem:[%s230 + $0xb8] sm:$0xff] %v277
                  %v279 = vld [vmem:[%s229 + $0x440] sm:$0xff]
                  %280 = vst [vmem:[%s230 + $0xc0] sm:$0xff] %v279
                  %v281 = vld [vmem:[%s229 + $0x448] sm:$0xff]
                  %282 = vst [vmem:[%s230 + $0xc8] sm:$0xff] %v281
                  %v283 = vld [vmem:[%s229 + $0x450] sm:$0xff]
                  %284 = vst [vmem:[%s230 + $0xd0] sm:$0xff] %v283
                  %v285 = vld [vmem:[%s229 + $0x458] sm:$0xff]
                  %286 = vst [vmem:[%s230 + $0xd8] sm:$0xff] %v285
                  %v287 = vld [vmem:[%s229 + $0x460] sm:$0xff]
                  %288 = vst [vmem:[%s230 + $0xe0] sm:$0xff] %v287
                  %v289 = vld [vmem:[%s229 + $0x468] sm:$0xff]
                  %290 = vst [vmem:[%s230 + $0xe8] sm:$0xff] %v289
                  %v291 = vld [vmem:[%s229 + $0x470] sm:$0xff]
                  %292 = vst [vmem:[%s230 + $0xf0] sm:$0xff] %v291
                  %v293 = vld [vmem:[%s229 + $0x478] sm:$0xff]
                  %294 = vst [vmem:[%s230 + $0xf8] sm:$0xff] %v293
                $region56: #{tpu_custom_call.1} parent=50 // loop_footer
                  %s228 = sadd.s32 1, %s224
                $region57: #{tpu_custom_call.1} parent=50 // loop_footer_branch
                  %223 = sbr.rel target = $region53
                $region58: #{tpu_custom_call.1} parent=50 // loop_exit
                  _
              $region51: #{tpu_custom_call.1} parent=35 // pred_fallthru
                _
              // Predicated region
              $region59: #{tpu_custom_call.1} parent=35 // pred_check
                _
              $region60: #{tpu_custom_call.1} parent=35 // pred_check_branch
                %296 = sbr.rel target = $region62
              $region61: #{tpu_custom_call.1} parent=35 // pred_region
                _
              $region62: #{tpu_custom_call.1} parent=35 // pred_fallthru
                _
            $region36: #{tpu_custom_call.1} parent=31 // pred_fallthru
              _
            // Predicated region
            $region37: #{tpu_custom_call.1} parent=31 // pred_check
              _
            $region38: #{tpu_custom_call.1} parent=31 // pred_check_branch
              %146 = sbr.rel target = $region40
            $region39: #{tpu_custom_call.1} parent=31 // pred_region
              %s148 = ssub.s32 256, 1
              loop: start=0, step=1, limit=1
              $region41: #{tpu_custom_call.1} parent=39 // loop_pre_header
                _
              $region42: #{tpu_custom_call.1} parent=39 // loop_header
                %s150 = sphi 0, %s154
                %p151 = scmp.ge.s32.totalorder %s150, 1
                %s155 = sphi %s140, %s140
                %s156 = sphi %s137, %s137
              $region43: #{tpu_custom_call.1} parent=39 // loop_header_branch
                %153 = sbr.rel (%p151) target = $region47
              $region44: #{tpu_custom_call.1} parent=39 // loop_body
                %v157 = vld [vmem:[%s155] sm:%s148]
                %158 = vst [vmem:[%s156] sm:%s148] %v157
                %v159 = vld [vmem:[%s155 + $0x8] sm:%s148]
                %160 = vst [vmem:[%s156 + $0x8] sm:%s148] %v159
                %v161 = vld [vmem:[%s155 + $0x10] sm:%s148]
                %162 = vst [vmem:[%s156 + $0x10] sm:%s148] %v161
                %v163 = vld [vmem:[%s155 + $0x18] sm:%s148]
                %164 = vst [vmem:[%s156 + $0x18] sm:%s148] %v163
                %v165 = vld [vmem:[%s155 + $0x20] sm:%s148]
                %166 = vst [vmem:[%s156 + $0x20] sm:%s148] %v165
                %v167 = vld [vmem:[%s155 + $0x28] sm:%s148]
                %168 = vst [vmem:[%s156 + $0x28] sm:%s148] %v167
                %v169 = vld [vmem:[%s155 + $0x30] sm:%s148]
                %170 = vst [vmem:[%s156 + $0x30] sm:%s148] %v169
                %v171 = vld [vmem:[%s155 + $0x38] sm:%s148]
                %172 = vst [vmem:[%s156 + $0x38] sm:%s148] %v171
                %v173 = vld [vmem:[%s155 + $0x40] sm:%s148]
                %174 = vst [vmem:[%s156 + $0x40] sm:%s148] %v173
                %v175 = vld [vmem:[%s155 + $0x48] sm:%s148]
                %176 = vst [vmem:[%s156 + $0x48] sm:%s148] %v175
                %v177 = vld [vmem:[%s155 + $0x50] sm:%s148]
                %178 = vst [vmem:[%s156 + $0x50] sm:%s148] %v177
                %v179 = vld [vmem:[%s155 + $0x58] sm:%s148]
                %180 = vst [vmem:[%s156 + $0x58] sm:%s148] %v179
                %v181 = vld [vmem:[%s155 + $0x60] sm:%s148]
                %182 = vst [vmem:[%s156 + $0x60] sm:%s148] %v181
                %v183 = vld [vmem:[%s155 + $0x68] sm:%s148]
                %184 = vst [vmem:[%s156 + $0x68] sm:%s148] %v183
                %v185 = vld [vmem:[%s155 + $0x70] sm:%s148]
                %186 = vst [vmem:[%s156 + $0x70] sm:%s148] %v185
                %v187 = vld [vmem:[%s155 + $0x78] sm:%s148]
                %188 = vst [vmem:[%s156 + $0x78] sm:%s148] %v187
                %v189 = vld [vmem:[%s155 + $0x400] sm:%s148]
                %190 = vst [vmem:[%s156 + $0x80] sm:%s148] %v189
                %v191 = vld [vmem:[%s155 + $0x408] sm:%s148]
                %192 = vst [vmem:[%s156 + $0x88] sm:%s148] %v191
                %v193 = vld [vmem:[%s155 + $0x410] sm:%s148]
                %194 = vst [vmem:[%s156 + $0x90] sm:%s148] %v193
                %v195 = vld [vmem:[%s155 + $0x418] sm:%s148]
                %196 = vst [vmem:[%s156 + $0x98] sm:%s148] %v195
                %v197 = vld [vmem:[%s155 + $0x420] sm:%s148]
                %198 = vst [vmem:[%s156 + $0xa0] sm:%s148] %v197
                %v199 = vld [vmem:[%s155 + $0x428] sm:%s148]
                %200 = vst [vmem:[%s156 + $0xa8] sm:%s148] %v199
                %v201 = vld [vmem:[%s155 + $0x430] sm:%s148]
                %202 = vst [vmem:[%s156 + $0xb0] sm:%s148] %v201
                %v203 = vld [vmem:[%s155 + $0x438] sm:%s148]
                %204 = vst [vmem:[%s156 + $0xb8] sm:%s148] %v203
                %v205 = vld [vmem:[%s155 + $0x440] sm:%s148]
                %206 = vst [vmem:[%s156 + $0xc0] sm:%s148] %v205
                %v207 = vld [vmem:[%s155 + $0x448] sm:%s148]
                %208 = vst [vmem:[%s156 + $0xc8] sm:%s148] %v207
                %v209 = vld [vmem:[%s155 + $0x450] sm:%s148]
                %210 = vst [vmem:[%s156 + $0xd0] sm:%s148] %v209
                %v211 = vld [vmem:[%s155 + $0x458] sm:%s148]
                %212 = vst [vmem:[%s156 + $0xd8] sm:%s148] %v211
                %v213 = vld [vmem:[%s155 + $0x460] sm:%s148]
                %214 = vst [vmem:[%s156 + $0xe0] sm:%s148] %v213
                %v215 = vld [vmem:[%s155 + $0x468] sm:%s148]
                %216 = vst [vmem:[%s156 + $0xe8] sm:%s148] %v215
                %v217 = vld [vmem:[%s155 + $0x470] sm:%s148]
                %218 = vst [vmem:[%s156 + $0xf0] sm:%s148] %v217
                %v219 = vld [vmem:[%s155 + $0x478] sm:%s148]
                %220 = vst [vmem:[%s156 + $0xf8] sm:%s148] %v219
              $region45: #{tpu_custom_call.1} parent=39 // loop_footer
                %s154 = sadd.s32 1, %s150
              $region46: #{tpu_custom_call.1} parent=39 // loop_footer_branch
                %149 = sbr.rel target = $region42
              $region47: #{tpu_custom_call.1} parent=39 // loop_exit
                _
            $region40: #{tpu_custom_call.1} parent=31 // pred_fallthru
              _
          $region32: #{tpu_custom_call.1} parent=27 // pred_fallthru
            _
          %297 = vnop
        $region28: #{tpu_custom_call.1} parent=23 // pred_fallthru
          _
      $region24: #{tpu_custom_call.1} parent=5 // pred_fallthru
        _
      %p298 = scmp.le.s32.totalorder 1, %s12
      %p299 = scmp.lt.s32.totalorder %s12, 9
      %p300 = pnand %p298, %p299
      %p301 = pneg %p300
      // Predicated region
      $region63: #{tpu_custom_call.1} parent=5 // pred_check
        _
      $region64: #{tpu_custom_call.1} parent=5 // pred_check_branch
        %303 = sbr.rel (%p300) target = $region66
      $region65: #{tpu_custom_call.1} parent=5 // pred_region
        %s304 = ssub.s32 %s12, 1
        %s305 = sand.u32 %s25, 1
        %s306 = sand.u32 %s25, 1
        %s307 = smul.addr %s306, 256
        %s308 = scalar_lea.vmem [#allocation3], %s307
        // Predicated region
        $region67: #{tpu_custom_call.1} parent=65 // pred_check
          %p309 = pneg %p38
        $region68: #{tpu_custom_call.1} parent=65 // pred_check_branch
          %311 = sbr.rel (%p309) target = $region70
        $region69: #{tpu_custom_call.1} parent=65 // pred_region
          _
        $region70: #{tpu_custom_call.1} parent=65 // pred_fallthru
          _
        %s312 = sand.u32 %s25, 1
        %s313 = sand.u32 %s25, 1
        %s314 = smul.addr %s313, 256
        %s315 = scalar_lea.vmem [#allocation3], %s314
        %p316 = pneg %p38
        %p317 = pneg %p35
        %p318 = pneg %p59
        %p319 = pneg %p56
        %p320 = pneg %p80
        %p321 = pneg %p77
        %p322 = pneg %p106
        %p323 = pneg %p103
        %s324 = sand.u32 %s93, 1
        %s325 = scalar_lea.sflag [#allocation5], %s324
        %s326 = sand.u32 %s93, 1
        %s327 = smul.addr %s326, 256
        %s328 = scalar_lea.vmem [#allocation4], %s327
        %vm329 = vcmask 31744
        %330 = vst.msk [vmem:[#allocation2] sm:$0xff] %vm329, 0.0
        %331 = vst.msk [vmem:[#allocation2 + $0x8] sm:$0xff] %vm329, 0.0
        %vm332 = vcmask 25600
        %333 = vst.msk [vmem:[#allocation2 + $0x10] sm:$0x3] %vm332, 0.0
        %334 = vst.msk [vmem:[#allocation2 + $0x18] sm:$0xff] %vm329, 0.0
        %335 = vst.msk [vmem:[#allocation2 + $0x20] sm:$0xff] %vm329, 0.0
        %336 = vst.msk [vmem:[#allocation2 + $0x28] sm:$0x3] %vm332, 0.0
        %337 = vst.msk [vmem:[#allocation2 + $0x30] sm:$0xff] %vm329, 0.0
        %338 = vst.msk [vmem:[#allocation2 + $0x38] sm:$0xff] %vm329, 0.0
        %339 = vst.msk [vmem:[#allocation2 + $0x40] sm:$0x3] %vm332, 0.0
        %340 = vst.msk [vmem:[#allocation2 + $0x48] sm:$0xff] %vm329, 0.0
        %341 = vst.msk [vmem:[#allocation2 + $0x50] sm:$0xff] %vm329, 0.0
        %342 = vst.msk [vmem:[#allocation2 + $0x58] sm:$0x3] %vm332, 0.0
        %343 = vst.msk [vmem:[#allocation2 + $0x60] sm:$0xff] %vm329, 0.0
        %344 = vst.msk [vmem:[#allocation2 + $0x68] sm:$0xff] %vm329, 0.0
        %345 = vst.msk [vmem:[#allocation2 + $0x70] sm:$0x3] %vm332, 0.0
        %346 = vst.msk [vmem:[#allocation2 + $0x78] sm:$0xff] %vm329, 0.0
        %347 = vst.msk [vmem:[#allocation2 + $0x80] sm:$0xff] %vm329, 0.0
        %348 = vst.msk [vmem:[#allocation2 + $0x88] sm:$0x3] %vm332, 0.0
        %349 = vst.msk [vmem:[#allocation2 + $0x90] sm:$0xff] %vm329, 0.0
        %350 = vst.msk [vmem:[#allocation2 + $0x98] sm:$0xff] %vm329, 0.0
        %351 = vst.msk [vmem:[#allocation2 + $0xa0] sm:$0x3] %vm332, 0.0
        %352 = vst.msk [vmem:[#allocation2 + $0xa8] sm:$0xff] %vm329, 0.0
        %353 = vst.msk [vmem:[#allocation2 + $0xb0] sm:$0xff] %vm329, 0.0
        %354 = vst.msk [vmem:[#allocation2 + $0xb8] sm:$0x3] %vm332, 0.0
        %355 = vst.msk [vmem:[#allocation2 + $0xc0] sm:$0xff] %vm329, 0.0
        %356 = vst.msk [vmem:[#allocation2 + $0xc8] sm:$0xff] %vm329, 0.0
        %357 = vst.msk [vmem:[#allocation2 + $0xd0] sm:$0x3] %vm332, 0.0
        %358 = vst.msk [vmem:[#allocation2 + $0xd8] sm:$0xff] %vm329, 0.0
        %359 = vst.msk [vmem:[#allocation2 + $0xe0] sm:$0xff] %vm329, 0.0
        %360 = vst.msk [vmem:[#allocation2 + $0xe8] sm:$0x3] %vm332, 0.0
        %361 = vst.msk [vmem:[#allocation2 + $0xf0] sm:$0xff] %vm329, 0.0
        %362 = vst.msk [vmem:[#allocation2 + $0xf8] sm:$0xff] %vm329, 0.0
        %363 = vst.msk [vmem:[#allocation2 + $0x100] sm:$0x3] %vm332, 0.0
        %364 = vst.msk [vmem:[#allocation2 + $0x108] sm:$0xff] %vm329, 0.0
        %365 = vst.msk [vmem:[#allocation2 + $0x110] sm:$0xff] %vm329, 0.0
        %366 = vst.msk [vmem:[#allocation2 + $0x118] sm:$0x3] %vm332, 0.0
        %367 = vst.msk [vmem:[#allocation2 + $0x120] sm:$0xff] %vm329, 0.0
        %368 = vst.msk [vmem:[#allocation2 + $0x128] sm:$0xff] %vm329, 0.0
        %369 = vst.msk [vmem:[#allocation2 + $0x130] sm:$0x3] %vm332, 0.0
        %370 = vst.msk [vmem:[#allocation2 + $0x138] sm:$0xff] %vm329, 0.0
        %371 = vst.msk [vmem:[#allocation2 + $0x140] sm:$0xff] %vm329, 0.0
        %372 = vst.msk [vmem:[#allocation2 + $0x148] sm:$0x3] %vm332, 0.0
        %373 = vst.msk [vmem:[#allocation2 + $0x150] sm:$0xff] %vm329, 0.0
        %374 = vst.msk [vmem:[#allocation2 + $0x158] sm:$0xff] %vm329, 0.0
        %375 = vst.msk [vmem:[#allocation2 + $0x160] sm:$0x3] %vm332, 0.0
        %376 = vst.msk [vmem:[#allocation2 + $0x168] sm:$0xff] %vm329, 0.0
        %377 = vst.msk [vmem:[#allocation2 + $0x170] sm:$0xff] %vm329, 0.0
        %378 = vst.msk [vmem:[#allocation2 + $0x178] sm:$0x3] %vm332, 0.0
        %379 = vst.msk [vmem:[#allocation2 + $0x180] sm:$0xff] %vm329, 0.0
        %380 = vst.msk [vmem:[#allocation2 + $0x188] sm:$0xff] %vm329, 0.0
        %381 = vst.msk [vmem:[#allocation2 + $0x190] sm:$0x3] %vm332, 0.0
        %382 = vst.msk [vmem:[#allocation2 + $0x198] sm:$0xff] %vm329, 0.0
        %383 = vst.msk [vmem:[#allocation2 + $0x1a0] sm:$0xff] %vm329, 0.0
        %384 = vst.msk [vmem:[#allocation2 + $0x1a8] sm:$0x3] %vm332, 0.0
        %385 = vst.msk [vmem:[#allocation2 + $0x1b0] sm:$0xff] %vm329, 0.0
        %386 = vst.msk [vmem:[#allocation2 + $0x1b8] sm:$0xff] %vm329, 0.0
        %387 = vst.msk [vmem:[#allocation2 + $0x1c0] sm:$0x3] %vm332, 0.0
        %388 = vst.msk [vmem:[#allocation2 + $0x1c8] sm:$0xff] %vm329, 0.0
        %389 = vst.msk [vmem:[#allocation2 + $0x1d0] sm:$0xff] %vm329, 0.0
        %390 = vst.msk [vmem:[#allocation2 + $0x1d8] sm:$0x3] %vm332, 0.0
        %v391 = vld [vmem:[%s308] sm:$0xff]
        %v392 = vld [vmem:[%s308 + $0x8] sm:$0xff]
        %v393 = vld [vmem:[%s308 + $0x10] sm:$0xff]
        %v394 = vld [vmem:[%s308 + $0x18] sm:$0xff]
        %v395 = vld [vmem:[%s308 + $0x20] sm:$0xff]
        %v396 = vld [vmem:[%s308 + $0x28] sm:$0xff]
        %v397 = vld [vmem:[%s308 + $0x30] sm:$0xff]
        %v398 = vld [vmem:[%s308 + $0x38] sm:$0xff]
        %v399 = vld [vmem:[%s308 + $0x40] sm:$0xff]
        %v400 = vld [vmem:[%s308 + $0x48] sm:$0xff]
        %v401 = vld [vmem:[%s308 + $0x50] sm:$0xff]
        %v402 = vld [vmem:[%s308 + $0x58] sm:$0xff]
        %v403 = vld [vmem:[%s308 + $0x60] sm:$0xff]
        %v404 = vld [vmem:[%s308 + $0x68] sm:$0xff]
        %v405 = vld [vmem:[%s308 + $0x70] sm:$0xff]
        %v406 = vld [vmem:[%s308 + $0x78] sm:$0xff]
        %v407 = vld [vmem:[%s308 + $0x80] sm:$0xff]
        %v408 = vld [vmem:[%s308 + $0x88] sm:$0xff]
        %v409 = vld [vmem:[%s308 + $0x90] sm:$0xff]
        %v410 = vld [vmem:[%s308 + $0x98] sm:$0xff]
        %v411 = vld [vmem:[%s308 + $0xa0] sm:$0xff]
        %v412 = vld [vmem:[%s308 + $0xa8] sm:$0xff]
        %v413 = vld [vmem:[%s308 + $0xb0] sm:$0xff]
        %v414 = vld [vmem:[%s308 + $0xb8] sm:$0xff]
        %v415 = vld [vmem:[%s308 + $0xc0] sm:$0xff]
        %v416 = vld [vmem:[%s308 + $0xc8] sm:$0xff]
        %v417 = vld [vmem:[%s308 + $0xd0] sm:$0xff]
        %v418 = vld [vmem:[%s308 + $0xd8] sm:$0xff]
        %v419 = vld [vmem:[%s308 + $0xe0] sm:$0xff]
        %v420 = vld [vmem:[%s308 + $0xe8] sm:$0xff]
        %v421 = vld [vmem:[%s308 + $0xf0] sm:$0xff]
        %v422 = vld [vmem:[%s308 + $0xf8] sm:$0xff]
        %s423 = scalar_lea.vmem [#allocation2], 24
        %424 = vst.msk [vmem:[%s423 + $0x1] sm:$0xff] %vm329, %v391
        %425 = vst.msk [vmem:[%s423 + $0x9] sm:$0xff] %vm329, %v392
        %426 = vst.msk [vmem:[%s423 + $0x19] sm:$0xff] %vm329, %v393
        %427 = vst.msk [vmem:[%s423 + $0x21] sm:$0xff] %vm329, %v394
        %428 = vst.msk [vmem:[%s423 + $0x31] sm:$0xff] %vm329, %v395
        %429 = vst.msk [vmem:[%s423 + $0x39] sm:$0xff] %vm329, %v396
        %430 = vst.msk [vmem:[%s423 + $0x49] sm:$0xff] %vm329, %v397
        %431 = vst.msk [vmem:[%s423 + $0x51] sm:$0xff] %vm329, %v398
        %432 = vst.msk [vmem:[%s423 + $0x61] sm:$0xff] %vm329, %v399
        %433 = vst.msk [vmem:[%s423 + $0x69] sm:$0xff] %vm329, %v400
        %434 = vst.msk [vmem:[%s423 + $0x79] sm:$0xff] %vm329, %v401
        %435 = vst.msk [vmem:[%s423 + $0x81] sm:$0xff] %vm329, %v402
        %436 = vst.msk [vmem:[%s423 + $0x91] sm:$0xff] %vm329, %v403
        %437 = vst.msk [vmem:[%s423 + $0x99] sm:$0xff] %vm329, %v404
        %438 = vst.msk [vmem:[%s423 + $0xa9] sm:$0xff] %vm329, %v405
        %439 = vst.msk [vmem:[%s423 + $0xb1] sm:$0xff] %vm329, %v406
        %440 = vst.msk [vmem:[%s423 + $0xf1] sm:$0xff] %vm329, %v407
        %441 = vst.msk [vmem:[%s423 + $0xf9] sm:$0xff] %vm329, %v408
        %442 = vst.msk [vmem:[%s423 + $0x109] sm:$0xff] %vm329, %v409
        %443 = vst.msk [vmem:[%s423 + $0x111] sm:$0xff] %vm329, %v410
        %444 = vst.msk [vmem:[%s423 + $0x121] sm:$0xff] %vm329, %v411
        %445 = vst.msk [vmem:[%s423 + $0x129] sm:$0xff] %vm329, %v412
        %446 = vst.msk [vmem:[%s423 + $0x139] sm:$0xff] %vm329, %v413
        %447 = vst.msk [vmem:[%s423 + $0x141] sm:$0xff] %vm329, %v414
        %448 = vst.msk [vmem:[%s423 + $0x151] sm:$0xff] %vm329, %v415
        %449 = vst.msk [vmem:[%s423 + $0x159] sm:$0xff] %vm329, %v416
        %450 = vst.msk [vmem:[%s423 + $0x169] sm:$0xff] %vm329, %v417
        %451 = vst.msk [vmem:[%s423 + $0x171] sm:$0xff] %vm329, %v418
        %452 = vst.msk [vmem:[%s423 + $0x181] sm:$0xff] %vm329, %v419
        %453 = vst.msk [vmem:[%s423 + $0x189] sm:$0xff] %vm329, %v420
        %454 = vst.msk [vmem:[%s423 + $0x199] sm:$0xff] %vm329, %v421
        %455 = vst.msk [vmem:[%s423 + $0x1a1] sm:$0xff] %vm329, %v422
        %v456 = vld [vmem:[#allocation2] sm:$0xff]
        %v457 = vld [vmem:[#allocation2 + $0x8] sm:$0xff]
        %v458 = vld [vmem:[#allocation2 + $0x18] sm:$0xff]
        %v459 = vld [vmem:[#allocation2 + $0x20] sm:$0xff]
        %v460 = vld [vmem:[#allocation2 + $0x30] sm:$0xff]
        %v461 = vld [vmem:[#allocation2 + $0x38] sm:$0xff]
        %v462 = vld [vmem:[#allocation2 + $0x48] sm:$0xff]
        %v463 = vld [vmem:[#allocation2 + $0x50] sm:$0xff]
        %v464 = vld [vmem:[#allocation2 + $0x60] sm:$0xff]
        %v465 = vld [vmem:[#allocation2 + $0x68] sm:$0xff]
        %v466 = vld [vmem:[#allocation2 + $0x78] sm:$0xff]
        %v467 = vld [vmem:[#allocation2 + $0x80] sm:$0xff]
        %v468 = vld [vmem:[#allocation2 + $0x90] sm:$0xff]
        %v469 = vld [vmem:[#allocation2 + $0x98] sm:$0xff]
        %v470 = vld [vmem:[#allocation2 + $0xa8] sm:$0xff]
        %v471 = vld [vmem:[#allocation2 + $0xb0] sm:$0xff]
        %v472 = vld [vmem:[#allocation2 + $0xf0] sm:$0xff]
        %v473 = vld [vmem:[#allocation2 + $0xf8] sm:$0xff]
        %v474 = vld [vmem:[#allocation2 + $0x108] sm:$0xff]
        %v475 = vld [vmem:[#allocation2 + $0x110] sm:$0xff]
        %v476 = vld [vmem:[#allocation2 + $0x120] sm:$0xff]
        %v477 = vld [vmem:[#allocation2 + $0x128] sm:$0xff]
        %v478 = vld [vmem:[#allocation2 + $0x138] sm:$0xff]
        %v479 = vld [vmem:[#allocation2 + $0x140] sm:$0xff]
        %v480 = vld [vmem:[#allocation2 + $0x150] sm:$0xff]
        %v481 = vld [vmem:[#allocation2 + $0x158] sm:$0xff]
        %v482 = vld [vmem:[#allocation2 + $0x168] sm:$0xff]
        %v483 = vld [vmem:[#allocation2 + $0x170] sm:$0xff]
        %v484 = vld [vmem:[#allocation2 + $0x180] sm:$0xff]
        %v485 = vld [vmem:[#allocation2 + $0x188] sm:$0xff]
        %v486 = vld [vmem:[#allocation2 + $0x198] sm:$0xff]
        %v487 = vld [vmem:[#allocation2 + $0x1a0] sm:$0xff]
        %v488 = vld [vmem:[%s1] sm:$0xf]
        %v489 = vld [vmem:[#allocation2 + $0x1] sm:$0xff]
        %v490 = vld [vmem:[#allocation2 + $0x9] sm:$0xff]
        %v491 = vld [vmem:[#allocation2 + $0x19] sm:$0xff]
        %v492 = vld [vmem:[#allocation2 + $0x21] sm:$0xff]
        %v493 = vld [vmem:[#allocation2 + $0x31] sm:$0xff]
        %v494 = vld [vmem:[#allocation2 + $0x39] sm:$0xff]
        %v495 = vld [vmem:[#allocation2 + $0x49] sm:$0xff]
        %v496 = vld [vmem:[#allocation2 + $0x51] sm:$0xff]
        %v497 = vld [vmem:[#allocation2 + $0x61] sm:$0xff]
        %v498 = vld [vmem:[#allocation2 + $0x69] sm:$0xff]
        %v499 = vld [vmem:[#allocation2 + $0x79] sm:$0xff]
        %v500 = vld [vmem:[#allocation2 + $0x81] sm:$0xff]
        %v501 = vld [vmem:[#allocation2 + $0x91] sm:$0xff]
        %v502 = vld [vmem:[#allocation2 + $0x99] sm:$0xff]
        %v503 = vld [vmem:[#allocation2 + $0xa9] sm:$0xff]
        %v504 = vld [vmem:[#allocation2 + $0xb1] sm:$0xff]
        %v505 = vld [vmem:[#allocation2 + $0xf1] sm:$0xff]
        %v506 = vld [vmem:[#allocation2 + $0xf9] sm:$0xff]
        %v507 = vld [vmem:[#allocation2 + $0x109] sm:$0xff]
        %v508 = vld [vmem:[#allocation2 + $0x111] sm:$0xff]
        %v509 = vld [vmem:[#allocation2 + $0x121] sm:$0xff]
        %v510 = vld [vmem:[#allocation2 + $0x129] sm:$0xff]
        %v511 = vld [vmem:[#allocation2 + $0x139] sm:$0xff]
        %v512 = vld [vmem:[#allocation2 + $0x141] sm:$0xff]
        %v513 = vld [vmem:[#allocation2 + $0x151] sm:$0xff]
        %v514 = vld [vmem:[#allocation2 + $0x159] sm:$0xff]
        %v515 = vld [vmem:[#allocation2 + $0x169] sm:$0xff]
        %v516 = vld [vmem:[#allocation2 + $0x171] sm:$0xff]
        %v517 = vld [vmem:[#allocation2 + $0x181] sm:$0xff]
        %v518 = vld [vmem:[#allocation2 + $0x189] sm:$0xff]
        %v519 = vld [vmem:[#allocation2 + $0x199] sm:$0xff]
        %v520 = vld [vmem:[#allocation2 + $0x1a1] sm:$0xff]
        %s521 = scalar_lea.vmem %s1, 4
        %v522 = vld [vmem:[%s521] sm:$0xf]
        %v524 = vsel %vm329, %v489, 0
        %v527 = vsel %vm329, %v490, 0
        %v530 = vsel %vm329, %v491, 0
        %v533 = vsel %vm329, %v492, 0
        %v536 = vsel %vm329, %v493, 0
        %v539 = vsel %vm329, %v494, 0
        %v542 = vsel %vm329, %v495, 0
        %v545 = vsel %vm329, %v496, 0
        %v548 = vsel %vm329, %v497, 0
        %v551 = vsel %vm329, %v498, 0
        %v554 = vsel %vm329, %v499, 0
        %v557 = vsel %vm329, %v500, 0
        %v560 = vsel %vm329, %v501, 0
        %v563 = vsel %vm329, %v502, 0
        %v566 = vsel %vm329, %v503, 0
        %v569 = vsel %vm329, %v504, 0
        %v572 = vsel %vm329, %v505, 0
        %v575 = vsel %vm329, %v506, 0
        %v578 = vsel %vm329, %v507, 0
        %v581 = vsel %vm329, %v508, 0
        %v584 = vsel %vm329, %v509, 0
        %v587 = vsel %vm329, %v510, 0
        %v590 = vsel %vm329, %v511, 0
        %v593 = vsel %vm329, %v512, 0
        %v596 = vsel %vm329, %v513, 0
        %v599 = vsel %vm329, %v514, 0
        %v602 = vsel %vm329, %v515, 0
        %v605 = vsel %vm329, %v516, 0
        %v608 = vsel %vm329, %v517, 0
        %v611 = vsel %vm329, %v518, 0
        %v614 = vsel %vm329, %v519, 0
        %v617 = vsel %vm329, %v520, 0
        %vm619 = vcmask 1043456
        %v621 = vsel %vm619, %v522, 0
        %623 = vmatprep.subr.mxu0 0.0
        %624 = vmatpush1.msra.mxu0 0.0
        %625 = vmatprep.subr.mxu0 0.0
        %626 = vmatpush1.msra.mxu0 0.0
        %627 = vmatprep.subr.mxu0 0.0
        %628 = vmatpush1.msra.mxu0 0.0
        %629 = vmatprep.subr.mxu0 0.0
        %630 = vmatpush1.msra.mxu0 0.0
        %631 = vmatprep.subr.mxu0 0.0
        %632 = vmatpush1.msra.mxu0 0.0
        %633 = vmatprep.subr.mxu0 0.0
        %634 = vmatpush1.msra.mxu0 0.0
        %635 = vmatprep.subr.mxu0 0.0
        %636 = vmatpush1.msra.mxu0 0.0
        %637 = vmatprep.subr.mxu0 0.0
        %638 = vmatpush1.msra.mxu0 0.0
        %639 = vmatprep.subr.mxu0 0.0
        %640 = vmatpush1.msra.mxu0 0.0
        %641 = vmatprep.subr.mxu0 0.0
        %642 = vmatpush1.msra.mxu0 0.0
        %643 = vmatprep.subr.mxu0 0.0
        %644 = vmatpush1.msra.mxu0 0.0
        %645 = vmatprep.subr.mxu0 0.0
        %646 = vmatpush1.msra.mxu0 0.0
        %647 = vmatprep.subr.mxu0 0.0
        %648 = vmatpush1.msra.mxu0 0.0
        %649 = vmatprep.subr.mxu0 0.0
        %650 = vmatpush1.msra.mxu0 0.0
        %651 = vmatprep.subr.mxu0 0.0
        %652 = vmatpush1.msra.mxu0 0.0
        %653 = vmatprep.subr.mxu0 0.0
        %654 = vmatpush1.msra.mxu0 %v621
        %655 = vmatprep.subr.mxu0 0.0
        %656 = vmatpush2.msra.mxu0 0.0
        %657 = vmatprep.subr.mxu0 0.0
        %658 = vmatpush2.msra.mxu0 0.0
        %659 = vmatprep.subr.mxu0 0.0
        %660 = vmatpush2.msra.mxu0 0.0
        %661 = vmatprep.subr.mxu0 0.0
        %662 = vmatpush2.msra.mxu0 0.0
        %663 = vmatprep.subr.mxu0 0.0
        %664 = vmatpush2.msra.mxu0 0.0
        %665 = vmatprep.subr.mxu0 0.0
        %666 = vmatpush2.msra.mxu0 0.0
        %667 = vmatprep.subr.mxu0 0.0
        %668 = vmatpush2.msra.mxu0 0.0
        %669 = vmatprep.subr.mxu0 0.0
        %670 = vmatpush2.msra.mxu0 0.0
        %671 = vmatprep.subr.mxu0 0.0
        %672 = vmatpush2.msra.mxu0 0.0
        %673 = vmatprep.subr.mxu0 0.0
        %674 = vmatpush2.msra.mxu0 0.0
        %675 = vmatprep.subr.mxu0 0.0
        %676 = vmatpush2.msra.mxu0 0.0
        %677 = vmatprep.subr.mxu0 0.0
        %678 = vmatpush2.msra.mxu0 0.0
        %679 = vmatprep.subr.mxu0 0.0
        %680 = vmatpush2.msra.mxu0 0.0
        %681 = vmatprep.subr.mxu0 0.0
        %682 = vmatpush2.msra.mxu0 0.0
        %683 = vmatprep.subr.mxu0 0.0
        %684 = vmatpush2.msra.mxu0 0.0
        %685 = vmatprep.subr.mxu0 0.0
        %686 = vmatpush2.msra.mxu0 0.0
        %687 = vmatprep.mubr.f32.mxu0 0.0
        %688 = vmatmul.mubr.f32.gmra.mxu0 %v524
        %v689 = vpop.f32.mrf.mxu0
        %v690 = vadd.f32 0.0, %v689
        %v691 = vpop.f32.mrf.mxu0
        %692 = vmatprep.mubr.f32.mxu0 0.0
        %693 = vmatmul.mubr.f32.gmra.mxu0 %v527
        %v694 = vpop.f32.mrf.mxu0
        %v695 = vadd.f32 0.0, %v694
        %v696 = vpop.f32.mrf.mxu0
        %697 = vmatprep.mubr.f32.mxu0 0.0
        %698 = vmatmul.mubr.f32.gmra.mxu0 %v530
        %v699 = vpop.f32.mrf.mxu0
        %v700 = vadd.f32 0.0, %v699
        %v701 = vpop.f32.mrf.mxu0
        %702 = vmatprep.mubr.f32.mxu0 0.0
        %703 = vmatmul.mubr.f32.gmra.mxu0 %v533
        %v704 = vpop.f32.mrf.mxu0
        %v705 = vadd.f32 0.0, %v704
        %v706 = vpop.f32.mrf.mxu0
        %707 = vmatprep.mubr.f32.mxu0 0.0
        %708 = vmatmul.mubr.f32.gmra.mxu0 %v536
        %v709 = vpop.f32.mrf.mxu0
        %v710 = vadd.f32 0.0, %v709
        %v711 = vpop.f32.mrf.mxu0
        %712 = vmatprep.mubr.f32.mxu0 0.0
        %713 = vmatmul.mubr.f32.gmra.mxu0 %v539
        %v714 = vpop.f32.mrf.mxu0
        %v715 = vadd.f32 0.0, %v714
        %v716 = vpop.f32.mrf.mxu0
        %717 = vmatprep.mubr.f32.mxu0 0.0
        %718 = vmatmul.mubr.f32.gmra.mxu0 %v542
        %v719 = vpop.f32.mrf.mxu0
        %v720 = vadd.f32 0.0, %v719
        %v721 = vpop.f32.mrf.mxu0
        %722 = vmatprep.mubr.f32.mxu0 0.0
        %723 = vmatmul.mubr.f32.gmra.mxu0 %v545
        %v724 = vpop.f32.mrf.mxu0
        %v725 = vadd.f32 0.0, %v724
        %v726 = vpop.f32.mrf.mxu0
        %727 = vmatprep.mubr.f32.mxu0 0.0
        %728 = vmatmul.mubr.f32.gmra.mxu0 %v548
        %v729 = vpop.f32.mrf.mxu0
        %v730 = vadd.f32 0.0, %v729
        %v731 = vpop.f32.mrf.mxu0
        %732 = vmatprep.mubr.f32.mxu0 0.0
        %733 = vmatmul.mubr.f32.gmra.mxu0 %v551
        %v734 = vpop.f32.mrf.mxu0
        %v735 = vadd.f32 0.0, %v734
        %v736 = vpop.f32.mrf.mxu0
        %737 = vmatprep.mubr.f32.mxu0 0.0
        %738 = vmatmul.mubr.f32.gmra.mxu0 %v554
        %v739 = vpop.f32.mrf.mxu0
        %v740 = vadd.f32 0.0, %v739
        %v741 = vpop.f32.mrf.mxu0
        %742 = vmatprep.mubr.f32.mxu0 0.0
        %743 = vmatmul.mubr.f32.gmra.mxu0 %v557
        %v744 = vpop.f32.mrf.mxu0
        %v745 = vadd.f32 0.0, %v744
        %v746 = vpop.f32.mrf.mxu0
        %747 = vmatprep.mubr.f32.mxu0 0.0
        %748 = vmatmul.mubr.f32.gmra.mxu0 %v560
        %v749 = vpop.f32.mrf.mxu0
        %v750 = vadd.f32 0.0, %v749
        %v751 = vpop.f32.mrf.mxu0
        %752 = vmatprep.mubr.f32.mxu0 0.0
        %753 = vmatmul.mubr.f32.gmra.mxu0 %v563
        %v754 = vpop.f32.mrf.mxu0
        %v755 = vadd.f32 0.0, %v754
        %v756 = vpop.f32.mrf.mxu0
        %757 = vmatprep.mubr.f32.mxu0 0.0
        %758 = vmatmul.mubr.f32.gmra.mxu0 %v566
        %v759 = vpop.f32.mrf.mxu0
        %v760 = vadd.f32 0.0, %v759
        %v761 = vpop.f32.mrf.mxu0
        %762 = vmatprep.mubr.f32.mxu0 0.0
        %763 = vmatmul.mubr.f32.gmra.mxu0 %v569
        %v764 = vpop.f32.mrf.mxu0
        %v765 = vadd.f32 0.0, %v764
        %v766 = vpop.f32.mrf.mxu0
        %767 = vmatprep.mubr.f32.mxu0 0.0
        %768 = vmatmul.mubr.f32.gmra.mxu0 %v572
        %v769 = vpop.f32.mrf.mxu0
        %v770 = vadd.f32 0.0, %v769
        %v771 = vpop.f32.mrf.mxu0
        %772 = vmatprep.mubr.f32.mxu0 0.0
        %773 = vmatmul.mubr.f32.gmra.mxu0 %v575
        %v774 = vpop.f32.mrf.mxu0
        %v775 = vadd.f32 0.0, %v774
        %v776 = vpop.f32.mrf.mxu0
        %777 = vmatprep.mubr.f32.mxu0 0.0
        %778 = vmatmul.mubr.f32.gmra.mxu0 %v578
        %v779 = vpop.f32.mrf.mxu0
        %v780 = vadd.f32 0.0, %v779
        %v781 = vpop.f32.mrf.mxu0
        %782 = vmatprep.mubr.f32.mxu0 0.0
        %783 = vmatmul.mubr.f32.gmra.mxu0 %v581
        %v784 = vpop.f32.mrf.mxu0
        %v785 = vadd.f32 0.0, %v784
        %v786 = vpop.f32.mrf.mxu0
        %787 = vmatprep.mubr.f32.mxu0 0.0
        %788 = vmatmul.mubr.f32.gmra.mxu0 %v584
        %v789 = vpop.f32.mrf.mxu0
        %v790 = vadd.f32 0.0, %v789
        %v791 = vpop.f32.mrf.mxu0
        %792 = vmatprep.mubr.f32.mxu0 0.0
        %793 = vmatmul.mubr.f32.gmra.mxu0 %v587
        %v794 = vpop.f32.mrf.mxu0
        %v795 = vadd.f32 0.0, %v794
        %v796 = vpop.f32.mrf.mxu0
        %797 = vmatprep.mubr.f32.mxu0 0.0
        %798 = vmatmul.mubr.f32.gmra.mxu0 %v590
        %v799 = vpop.f32.mrf.mxu0
        %v800 = vadd.f32 0.0, %v799
        %v801 = vpop.f32.mrf.mxu0
        %802 = vmatprep.mubr.f32.mxu0 0.0
        %803 = vmatmul.mubr.f32.gmra.mxu0 %v593
        %v804 = vpop.f32.mrf.mxu0
        %v805 = vadd.f32 0.0, %v804
        %v806 = vpop.f32.mrf.mxu0
        %807 = vmatprep.mubr.f32.mxu0 0.0
        %808 = vmatmul.mubr.f32.gmra.mxu0 %v596
        %v809 = vpop.f32.mrf.mxu0
        %v810 = vadd.f32 0.0, %v809
        %v811 = vpop.f32.mrf.mxu0
        %812 = vmatprep.mubr.f32.mxu0 0.0
        %813 = vmatmul.mubr.f32.gmra.mxu0 %v599
        %v814 = vpop.f32.mrf.mxu0
        %v815 = vadd.f32 0.0, %v814
        %v816 = vpop.f32.mrf.mxu0
        %817 = vmatprep.mubr.f32.mxu0 0.0
        %818 = vmatmul.mubr.f32.gmra.mxu0 %v602
        %v819 = vpop.f32.mrf.mxu0
        %v820 = vadd.f32 0.0, %v819
        %v821 = vpop.f32.mrf.mxu0
        %822 = vmatprep.mubr.f32.mxu0 0.0
        %823 = vmatmul.mubr.f32.gmra.mxu0 %v605
        %v824 = vpop.f32.mrf.mxu0
        %v825 = vadd.f32 0.0, %v824
        %v826 = vpop.f32.mrf.mxu0
        %827 = vmatprep.mubr.f32.mxu0 0.0
        %828 = vmatmul.mubr.f32.gmra.mxu0 %v608
        %v829 = vpop.f32.mrf.mxu0
        %v830 = vadd.f32 0.0, %v829
        %v831 = vpop.f32.mrf.mxu0
        %832 = vmatprep.mubr.f32.mxu0 0.0
        %833 = vmatmul.mubr.f32.gmra.mxu0 %v611
        %v834 = vpop.f32.mrf.mxu0
        %v835 = vadd.f32 0.0, %v834
        %v836 = vpop.f32.mrf.mxu0
        %837 = vmatprep.mubr.f32.mxu0 0.0
        %838 = vmatmul.mubr.f32.gmra.mxu0 %v614
        %v839 = vpop.f32.mrf.mxu0
        %v840 = vadd.f32 0.0, %v839
        %v841 = vpop.f32.mrf.mxu0
        %842 = vmatprep.mubr.f32.mxu0 0.0
        %843 = vmatmul.mubr.f32.gmra.mxu0 %v617
        %v844 = vpop.f32.mrf.mxu0
        %v845 = vadd.f32 0.0, %v844
        %v846 = vpop.f32.mrf.mxu0
        %847 = vdwg.mxu0
        %v849 = vsel %vm329, %v456, 0
        %v852 = vsel %vm329, %v457, 0
        %v855 = vsel %vm329, %v458, 0
        %v858 = vsel %vm329, %v459, 0
        %v861 = vsel %vm329, %v460, 0
        %v864 = vsel %vm329, %v461, 0
        %v867 = vsel %vm329, %v462, 0
        %v870 = vsel %vm329, %v463, 0
        %v873 = vsel %vm329, %v464, 0
        %v876 = vsel %vm329, %v465, 0
        %v879 = vsel %vm329, %v466, 0
        %v882 = vsel %vm329, %v467, 0
        %v885 = vsel %vm329, %v468, 0
        %v888 = vsel %vm329, %v469, 0
        %v891 = vsel %vm329, %v470, 0
        %v894 = vsel %vm329, %v471, 0
        %v897 = vsel %vm329, %v472, 0
        %v900 = vsel %vm329, %v473, 0
        %v903 = vsel %vm329, %v474, 0
        %v906 = vsel %vm329, %v475, 0
        %v909 = vsel %vm329, %v476, 0
        %v912 = vsel %vm329, %v477, 0
        %v915 = vsel %vm329, %v478, 0
        %v918 = vsel %vm329, %v479, 0
        %v921 = vsel %vm329, %v480, 0
        %v924 = vsel %vm329, %v481, 0
        %v927 = vsel %vm329, %v482, 0
        %v930 = vsel %vm329, %v483, 0
        %v933 = vsel %vm329, %v484, 0
        %v936 = vsel %vm329, %v485, 0
        %v939 = vsel %vm329, %v486, 0
        %v942 = vsel %vm329, %v487, 0
        %v945 = vsel %vm619, %v488, 0
        %947 = vmatprep.subr.mxu0 0.0
        %948 = vmatpush1.msra.mxu0 0.0
        %949 = vmatprep.subr.mxu0 0.0
        %950 = vmatpush1.msra.mxu0 0.0
        %951 = vmatprep.subr.mxu0 0.0
        %952 = vmatpush1.msra.mxu0 0.0
        %953 = vmatprep.subr.mxu0 0.0
        %954 = vmatpush1.msra.mxu0 0.0
        %955 = vmatprep.subr.mxu0 0.0
        %956 = vmatpush1.msra.mxu0 0.0
        %957 = vmatprep.subr.mxu0 0.0
        %958 = vmatpush1.msra.mxu0 0.0
        %959 = vmatprep.subr.mxu0 0.0
        %960 = vmatpush1.msra.mxu0 0.0
        %961 = vmatprep.subr.mxu0 0.0
        %962 = vmatpush1.msra.mxu0 0.0
        %963 = vmatprep.subr.mxu0 0.0
        %964 = vmatpush1.msra.mxu0 0.0
        %965 = vmatprep.subr.mxu0 0.0
        %966 = vmatpush1.msra.mxu0 0.0
        %967 = vmatprep.subr.mxu0 0.0
        %968 = vmatpush1.msra.mxu0 0.0
        %969 = vmatprep.subr.mxu0 0.0
        %970 = vmatpush1.msra.mxu0 0.0
        %971 = vmatprep.subr.mxu0 0.0
        %972 = vmatpush1.msra.mxu0 0.0
        %973 = vmatprep.subr.mxu0 0.0
        %974 = vmatpush1.msra.mxu0 0.0
        %975 = vmatprep.subr.mxu0 0.0
        %976 = vmatpush1.msra.mxu0 0.0
        %977 = vmatprep.subr.mxu0 0.0
        %978 = vmatpush1.msra.mxu0 %v945
        %979 = vmatprep.subr.mxu0 0.0
        %980 = vmatpush2.msra.mxu0 0.0
        %981 = vmatprep.subr.mxu0 0.0
        %982 = vmatpush2.msra.mxu0 0.0
        %983 = vmatprep.subr.mxu0 0.0
        %984 = vmatpush2.msra.mxu0 0.0
        %985 = vmatprep.subr.mxu0 0.0
        %986 = vmatpush2.msra.mxu0 0.0
        %987 = vmatprep.subr.mxu0 0.0
        %988 = vmatpush2.msra.mxu0 0.0
        %989 = vmatprep.subr.mxu0 0.0
        %990 = vmatpush2.msra.mxu0 0.0
        %991 = vmatprep.subr.mxu0 0.0
        %992 = vmatpush2.msra.mxu0 0.0
        %993 = vmatprep.subr.mxu0 0.0
        %994 = vmatpush2.msra.mxu0 0.0
        %995 = vmatprep.subr.mxu0 0.0
        %996 = vmatpush2.msra.mxu0 0.0
        %997 = vmatprep.subr.mxu0 0.0
        %998 = vmatpush2.msra.mxu0 0.0
        %999 = vmatprep.subr.mxu0 0.0
        %1000 = vmatpush2.msra.mxu0 0.0
        %1001 = vmatprep.subr.mxu0 0.0
        %1002 = vmatpush2.msra.mxu0 0.0
        %1003 = vmatprep.subr.mxu0 0.0
        %1004 = vmatpush2.msra.mxu0 0.0
        %1005 = vmatprep.subr.mxu0 0.0
        %1006 = vmatpush2.msra.mxu0 0.0
        %1007 = vmatprep.subr.mxu0 0.0
        %1008 = vmatpush2.msra.mxu0 0.0
        %1009 = vmatprep.subr.mxu0 0.0
        %1010 = vmatpush2.msra.mxu0 0.0
        %1011 = vmatprep.mubr.f32.mxu0 0.0
        %1012 = vmatmul.mubr.f32.gmra.mxu0 %v849
        %v1013 = vpop.f32.mrf.mxu0
        %v1014 = vadd.f32 %v690, %v1013
        %v1015 = vpop.f32.mrf.mxu0
        %1016 = vmatprep.mubr.f32.mxu0 0.0
        %1017 = vmatmul.mubr.f32.gmra.mxu0 %v852
        %v1018 = vpop.f32.mrf.mxu0
        %v1019 = vadd.f32 %v695, %v1018
        %v1020 = vpop.f32.mrf.mxu0
        %1021 = vmatprep.mubr.f32.mxu0 0.0
        %1022 = vmatmul.mubr.f32.gmra.mxu0 %v855
        %v1023 = vpop.f32.mrf.mxu0
        %v1024 = vadd.f32 %v700, %v1023
        %v1025 = vpop.f32.mrf.mxu0
        %1026 = vmatprep.mubr.f32.mxu0 0.0
        %1027 = vmatmul.mubr.f32.gmra.mxu0 %v858
        %v1028 = vpop.f32.mrf.mxu0
        %v1029 = vadd.f32 %v705, %v1028
        %v1030 = vpop.f32.mrf.mxu0
        %1031 = vmatprep.mubr.f32.mxu0 0.0
        %1032 = vmatmul.mubr.f32.gmra.mxu0 %v861
        %v1033 = vpop.f32.mrf.mxu0
        %v1034 = vadd.f32 %v710, %v1033
        %v1035 = vpop.f32.mrf.mxu0
        %1036 = vmatprep.mubr.f32.mxu0 0.0
        %1037 = vmatmul.mubr.f32.gmra.mxu0 %v864
        %v1038 = vpop.f32.mrf.mxu0
        %v1039 = vadd.f32 %v715, %v1038
        %v1040 = vpop.f32.mrf.mxu0
        %1041 = vmatprep.mubr.f32.mxu0 0.0
        %1042 = vmatmul.mubr.f32.gmra.mxu0 %v867
        %v1043 = vpop.f32.mrf.mxu0
        %v1044 = vadd.f32 %v720, %v1043
        %v1045 = vpop.f32.mrf.mxu0
        %1046 = vmatprep.mubr.f32.mxu0 0.0
        %1047 = vmatmul.mubr.f32.gmra.mxu0 %v870
        %v1048 = vpop.f32.mrf.mxu0
        %v1049 = vadd.f32 %v725, %v1048
        %v1050 = vpop.f32.mrf.mxu0
        %1051 = vmatprep.mubr.f32.mxu0 0.0
        %1052 = vmatmul.mubr.f32.gmra.mxu0 %v873
        %v1053 = vpop.f32.mrf.mxu0
        %v1054 = vadd.f32 %v730, %v1053
        %v1055 = vpop.f32.mrf.mxu0
        %1056 = vmatprep.mubr.f32.mxu0 0.0
        %1057 = vmatmul.mubr.f32.gmra.mxu0 %v876
        %v1058 = vpop.f32.mrf.mxu0
        %v1059 = vadd.f32 %v735, %v1058
        %v1060 = vpop.f32.mrf.mxu0
        %1061 = vmatprep.mubr.f32.mxu0 0.0
        %1062 = vmatmul.mubr.f32.gmra.mxu0 %v879
        %v1063 = vpop.f32.mrf.mxu0
        %v1064 = vadd.f32 %v740, %v1063
        %v1065 = vpop.f32.mrf.mxu0
        %1066 = vmatprep.mubr.f32.mxu0 0.0
        %1067 = vmatmul.mubr.f32.gmra.mxu0 %v882
        %v1068 = vpop.f32.mrf.mxu0
        %v1069 = vadd.f32 %v745, %v1068
        %v1070 = vpop.f32.mrf.mxu0
        %1071 = vmatprep.mubr.f32.mxu0 0.0
        %1072 = vmatmul.mubr.f32.gmra.mxu0 %v885
        %v1073 = vpop.f32.mrf.mxu0
        %v1074 = vadd.f32 %v750, %v1073
        %v1075 = vpop.f32.mrf.mxu0
        %1076 = vmatprep.mubr.f32.mxu0 0.0
        %1077 = vmatmul.mubr.f32.gmra.mxu0 %v888
        %v1078 = vpop.f32.mrf.mxu0
        %v1079 = vadd.f32 %v755, %v1078
        %v1080 = vpop.f32.mrf.mxu0
        %1081 = vmatprep.mubr.f32.mxu0 0.0
        %1082 = vmatmul.mubr.f32.gmra.mxu0 %v891
        %v1083 = vpop.f32.mrf.mxu0
        %v1084 = vadd.f32 %v760, %v1083
        %v1085 = vpop.f32.mrf.mxu0
        %1086 = vmatprep.mubr.f32.mxu0 0.0
        %1087 = vmatmul.mubr.f32.gmra.mxu0 %v894
        %v1088 = vpop.f32.mrf.mxu0
        %v1089 = vadd.f32 %v765, %v1088
        %v1090 = vpop.f32.mrf.mxu0
        %1091 = vmatprep.mubr.f32.mxu0 0.0
        %1092 = vmatmul.mubr.f32.gmra.mxu0 %v897
        %v1093 = vpop.f32.mrf.mxu0
        %v1094 = vadd.f32 %v770, %v1093
        %v1095 = vpop.f32.mrf.mxu0
        %1096 = vmatprep.mubr.f32.mxu0 0.0
        %1097 = vmatmul.mubr.f32.gmra.mxu0 %v900
        %v1098 = vpop.f32.mrf.mxu0
        %v1099 = vadd.f32 %v775, %v1098
        %v1100 = vpop.f32.mrf.mxu0
        %1101 = vmatprep.mubr.f32.mxu0 0.0
        %1102 = vmatmul.mubr.f32.gmra.mxu0 %v903
        %v1103 = vpop.f32.mrf.mxu0
        %v1104 = vadd.f32 %v780, %v1103
        %v1105 = vpop.f32.mrf.mxu0
        %1106 = vmatprep.mubr.f32.mxu0 0.0
        %1107 = vmatmul.mubr.f32.gmra.mxu0 %v906
        %v1108 = vpop.f32.mrf.mxu0
        %v1109 = vadd.f32 %v785, %v1108
        %v1110 = vpop.f32.mrf.mxu0
        %1111 = vmatprep.mubr.f32.mxu0 0.0
        %1112 = vmatmul.mubr.f32.gmra.mxu0 %v909
        %v1113 = vpop.f32.mrf.mxu0
        %v1114 = vadd.f32 %v790, %v1113
        %v1115 = vpop.f32.mrf.mxu0
        %1116 = vmatprep.mubr.f32.mxu0 0.0
        %1117 = vmatmul.mubr.f32.gmra.mxu0 %v912
        %v1118 = vpop.f32.mrf.mxu0
        %v1119 = vadd.f32 %v795, %v1118
        %v1120 = vpop.f32.mrf.mxu0
        %1121 = vmatprep.mubr.f32.mxu0 0.0
        %1122 = vmatmul.mubr.f32.gmra.mxu0 %v915
        %v1123 = vpop.f32.mrf.mxu0
        %v1124 = vadd.f32 %v800, %v1123
        %v1125 = vpop.f32.mrf.mxu0
        %1126 = vmatprep.mubr.f32.mxu0 0.0
        %1127 = vmatmul.mubr.f32.gmra.mxu0 %v918
        %v1128 = vpop.f32.mrf.mxu0
        %v1129 = vadd.f32 %v805, %v1128
        %v1130 = vpop.f32.mrf.mxu0
        %1131 = vmatprep.mubr.f32.mxu0 0.0
        %1132 = vmatmul.mubr.f32.gmra.mxu0 %v921
        %v1133 = vpop.f32.mrf.mxu0
        %v1134 = vadd.f32 %v810, %v1133
        %v1135 = vpop.f32.mrf.mxu0
        %1136 = vmatprep.mubr.f32.mxu0 0.0
        %1137 = vmatmul.mubr.f32.gmra.mxu0 %v924
        %v1138 = vpop.f32.mrf.mxu0
        %v1139 = vadd.f32 %v815, %v1138
        %v1140 = vpop.f32.mrf.mxu0
        %1141 = vmatprep.mubr.f32.mxu0 0.0
        %1142 = vmatmul.mubr.f32.gmra.mxu0 %v927
        %v1143 = vpop.f32.mrf.mxu0
        %v1144 = vadd.f32 %v820, %v1143
        %v1145 = vpop.f32.mrf.mxu0
        %1146 = vmatprep.mubr.f32.mxu0 0.0
        %1147 = vmatmul.mubr.f32.gmra.mxu0 %v930
        %v1148 = vpop.f32.mrf.mxu0
        %v1149 = vadd.f32 %v825, %v1148
        %v1150 = vpop.f32.mrf.mxu0
        %1151 = vmatprep.mubr.f32.mxu0 0.0
        %1152 = vmatmul.mubr.f32.gmra.mxu0 %v933
        %v1153 = vpop.f32.mrf.mxu0
        %v1154 = vadd.f32 %v830, %v1153
        %v1155 = vpop.f32.mrf.mxu0
        %1156 = vmatprep.mubr.f32.mxu0 0.0
        %1157 = vmatmul.mubr.f32.gmra.mxu0 %v936
        %v1158 = vpop.f32.mrf.mxu0
        %v1159 = vadd.f32 %v835, %v1158
        %v1160 = vpop.f32.mrf.mxu0
        %1161 = vmatprep.mubr.f32.mxu0 0.0
        %1162 = vmatmul.mubr.f32.gmra.mxu0 %v939
        %v1163 = vpop.f32.mrf.mxu0
        %v1164 = vadd.f32 %v840, %v1163
        %v1165 = vpop.f32.mrf.mxu0
        %1166 = vmatprep.mubr.f32.mxu0 0.0
        %1167 = vmatmul.mubr.f32.gmra.mxu0 %v942
        %v1168 = vpop.f32.mrf.mxu0
        %v1169 = vadd.f32 %v845, %v1168
        %v1170 = vpop.f32.mrf.mxu0
        %1171 = vdwg.mxu0
        %v1172 = vld [vmem:[#allocation2 + $0x2] sm:$0xff]
        %v1173 = vld [vmem:[#allocation2 + $0xa] sm:$0xff]
        %v1174 = vld [vmem:[#allocation2 + $0x1a] sm:$0xff]
        %v1175 = vld [vmem:[#allocation2 + $0x22] sm:$0xff]
        %v1176 = vld [vmem:[#allocation2 + $0x32] sm:$0xff]
        %v1177 = vld [vmem:[#allocation2 + $0x3a] sm:$0xff]
        %v1178 = vld [vmem:[#allocation2 + $0x4a] sm:$0xff]
        %v1179 = vld [vmem:[#allocation2 + $0x52] sm:$0xff]
        %v1180 = vld [vmem:[#allocation2 + $0x62] sm:$0xff]
        %v1181 = vld [vmem:[#allocation2 + $0x6a] sm:$0xff]
        %v1182 = vld [vmem:[#allocation2 + $0x7a] sm:$0xff]
        %v1183 = vld [vmem:[#allocation2 + $0x82] sm:$0xff]
        %v1184 = vld [vmem:[#allocation2 + $0x92] sm:$0xff]
        %v1185 = vld [vmem:[#allocation2 + $0x9a] sm:$0xff]
        %v1186 = vld [vmem:[#allocation2 + $0xaa] sm:$0xff]
        %v1187 = vld [vmem:[#allocation2 + $0xb2] sm:$0xff]
        %v1188 = vld [vmem:[#allocation2 + $0xf2] sm:$0xff]
        %v1189 = vld [vmem:[#allocation2 + $0xfa] sm:$0xff]
        %v1190 = vld [vmem:[#allocation2 + $0x10a] sm:$0xff]
        %v1191 = vld [vmem:[#allocation2 + $0x112] sm:$0xff]
        %v1192 = vld [vmem:[#allocation2 + $0x122] sm:$0xff]
        %v1193 = vld [vmem:[#allocation2 + $0x12a] sm:$0xff]
        %v1194 = vld [vmem:[#allocation2 + $0x13a] sm:$0xff]
        %v1195 = vld [vmem:[#allocation2 + $0x142] sm:$0xff]
        %v1196 = vld [vmem:[#allocation2 + $0x152] sm:$0xff]
        %v1197 = vld [vmem:[#allocation2 + $0x15a] sm:$0xff]
        %v1198 = vld [vmem:[#allocation2 + $0x16a] sm:$0xff]
        %v1199 = vld [vmem:[#allocation2 + $0x172] sm:$0xff]
        %v1200 = vld [vmem:[#allocation2 + $0x182] sm:$0xff]
        %v1201 = vld [vmem:[#allocation2 + $0x18a] sm:$0xff]
        %v1202 = vld [vmem:[#allocation2 + $0x19a] sm:$0xff]
        %v1203 = vld [vmem:[#allocation2 + $0x1a2] sm:$0xff]
        %s1204 = scalar_lea.vmem %s1, 8
        %v1205 = vld [vmem:[%s1204] sm:$0xf]
        %v1207 = vsel %vm329, %v1172, 0
        %v1210 = vsel %vm329, %v1173, 0
        %v1213 = vsel %vm329, %v1174, 0
        %v1216 = vsel %vm329, %v1175, 0
        %v1219 = vsel %vm329, %v1176, 0
        %v1222 = vsel %vm329, %v1177, 0
        %v1225 = vsel %vm329, %v1178, 0
        %v1228 = vsel %vm329, %v1179, 0
        %v1231 = vsel %vm329, %v1180, 0
        %v1234 = vsel %vm329, %v1181, 0
        %v1237 = vsel %vm329, %v1182, 0
        %v1240 = vsel %vm329, %v1183, 0
        %v1243 = vsel %vm329, %v1184, 0
        %v1246 = vsel %vm329, %v1185, 0
        %v1249 = vsel %vm329, %v1186, 0
        %v1252 = vsel %vm329, %v1187, 0
        %v1255 = vsel %vm329, %v1188, 0
        %v1258 = vsel %vm329, %v1189, 0
        %v1261 = vsel %vm329, %v1190, 0
        %v1264 = vsel %vm329, %v1191, 0
        %v1267 = vsel %vm329, %v1192, 0
        %v1270 = vsel %vm329, %v1193, 0
        %v1273 = vsel %vm329, %v1194, 0
        %v1276 = vsel %vm329, %v1195, 0
        %v1279 = vsel %vm329, %v1196, 0
        %v1282 = vsel %vm329, %v1197, 0
        %v1285 = vsel %vm329, %v1198, 0
        %v1288 = vsel %vm329, %v1199, 0
        %v1291 = vsel %vm329, %v1200, 0
        %v1294 = vsel %vm329, %v1201, 0
        %v1297 = vsel %vm329, %v1202, 0
        %v1300 = vsel %vm329, %v1203, 0
        %v1303 = vsel %vm619, %v1205, 0
        %1305 = vmatprep.subr.mxu0 0.0
        %1306 = vmatpush1.msra.mxu0 0.0
        %1307 = vmatprep.subr.mxu0 0.0
        %1308 = vmatpush1.msra.mxu0 0.0
        %1309 = vmatprep.subr.mxu0 0.0
        %1310 = vmatpush1.msra.mxu0 0.0
        %1311 = vmatprep.subr.mxu0 0.0
        %1312 = vmatpush1.msra.mxu0 0.0
        %1313 = vmatprep.subr.mxu0 0.0
        %1314 = vmatpush1.msra.mxu0 0.0
        %1315 = vmatprep.subr.mxu0 0.0
        %1316 = vmatpush1.msra.mxu0 0.0
        %1317 = vmatprep.subr.mxu0 0.0
        %1318 = vmatpush1.msra.mxu0 0.0
        %1319 = vmatprep.subr.mxu0 0.0
        %1320 = vmatpush1.msra.mxu0 0.0
        %1321 = vmatprep.subr.mxu0 0.0
        %1322 = vmatpush1.msra.mxu0 0.0
        %1323 = vmatprep.subr.mxu0 0.0
        %1324 = vmatpush1.msra.mxu0 0.0
        %1325 = vmatprep.subr.mxu0 0.0
        %1326 = vmatpush1.msra.mxu0 0.0
        %1327 = vmatprep.subr.mxu0 0.0
        %1328 = vmatpush1.msra.mxu0 0.0
        %1329 = vmatprep.subr.mxu0 0.0
        %1330 = vmatpush1.msra.mxu0 0.0
        %1331 = vmatprep.subr.mxu0 0.0
        %1332 = vmatpush1.msra.mxu0 0.0
        %1333 = vmatprep.subr.mxu0 0.0
        %1334 = vmatpush1.msra.mxu0 0.0
        %1335 = vmatprep.subr.mxu0 0.0
        %1336 = vmatpush1.msra.mxu0 %v1303
        %1337 = vmatprep.subr.mxu0 0.0
        %1338 = vmatpush2.msra.mxu0 0.0
        %1339 = vmatprep.subr.mxu0 0.0
        %1340 = vmatpush2.msra.mxu0 0.0
        %1341 = vmatprep.subr.mxu0 0.0
        %1342 = vmatpush2.msra.mxu0 0.0
        %1343 = vmatprep.subr.mxu0 0.0
        %1344 = vmatpush2.msra.mxu0 0.0
        %1345 = vmatprep.subr.mxu0 0.0
        %1346 = vmatpush2.msra.mxu0 0.0
        %1347 = vmatprep.subr.mxu0 0.0
        %1348 = vmatpush2.msra.mxu0 0.0
        %1349 = vmatprep.subr.mxu0 0.0
        %1350 = vmatpush2.msra.mxu0 0.0
        %1351 = vmatprep.subr.mxu0 0.0
        %1352 = vmatpush2.msra.mxu0 0.0
        %1353 = vmatprep.subr.mxu0 0.0
        %1354 = vmatpush2.msra.mxu0 0.0
        %1355 = vmatprep.subr.mxu0 0.0
        %1356 = vmatpush2.msra.mxu0 0.0
        %1357 = vmatprep.subr.mxu0 0.0
        %1358 = vmatpush2.msra.mxu0 0.0
        %1359 = vmatprep.subr.mxu0 0.0
        %1360 = vmatpush2.msra.mxu0 0.0
        %1361 = vmatprep.subr.mxu0 0.0
        %1362 = vmatpush2.msra.mxu0 0.0
        %1363 = vmatprep.subr.mxu0 0.0
        %1364 = vmatpush2.msra.mxu0 0.0
        %1365 = vmatprep.subr.mxu0 0.0
        %1366 = vmatpush2.msra.mxu0 0.0
        %1367 = vmatprep.subr.mxu0 0.0
        %1368 = vmatpush2.msra.mxu0 0.0
        %1369 = vmatprep.mubr.f32.mxu0 0.0
        %1370 = vmatmul.mubr.f32.gmra.mxu0 %v1207
        %v1371 = vpop.f32.mrf.mxu0
        %v1372 = vadd.f32 0.0, %v1371
        %v1373 = vpop.f32.mrf.mxu0
        %1374 = vmatprep.mubr.f32.mxu0 0.0
        %1375 = vmatmul.mubr.f32.gmra.mxu0 %v1210
        %v1376 = vpop.f32.mrf.mxu0
        %v1377 = vadd.f32 0.0, %v1376
        %v1378 = vpop.f32.mrf.mxu0
        %1379 = vmatprep.mubr.f32.mxu0 0.0
        %1380 = vmatmul.mubr.f32.gmra.mxu0 %v1213
        %v1381 = vpop.f32.mrf.mxu0
        %v1382 = vadd.f32 0.0, %v1381
        %v1383 = vpop.f32.mrf.mxu0
        %1384 = vmatprep.mubr.f32.mxu0 0.0
        %1385 = vmatmul.mubr.f32.gmra.mxu0 %v1216
        %v1386 = vpop.f32.mrf.mxu0
        %v1387 = vadd.f32 0.0, %v1386
        %v1388 = vpop.f32.mrf.mxu0
        %1389 = vmatprep.mubr.f32.mxu0 0.0
        %1390 = vmatmul.mubr.f32.gmra.mxu0 %v1219
        %v1391 = vpop.f32.mrf.mxu0
        %v1392 = vadd.f32 0.0, %v1391
        %v1393 = vpop.f32.mrf.mxu0
        %1394 = vmatprep.mubr.f32.mxu0 0.0
        %1395 = vmatmul.mubr.f32.gmra.mxu0 %v1222
        %v1396 = vpop.f32.mrf.mxu0
        %v1397 = vadd.f32 0.0, %v1396
        %v1398 = vpop.f32.mrf.mxu0
        %1399 = vmatprep.mubr.f32.mxu0 0.0
        %1400 = vmatmul.mubr.f32.gmra.mxu0 %v1225
        %v1401 = vpop.f32.mrf.mxu0
        %v1402 = vadd.f32 0.0, %v1401
        %v1403 = vpop.f32.mrf.mxu0
        %1404 = vmatprep.mubr.f32.mxu0 0.0
        %1405 = vmatmul.mubr.f32.gmra.mxu0 %v1228
        %v1406 = vpop.f32.mrf.mxu0
        %v1407 = vadd.f32 0.0, %v1406
        %v1408 = vpop.f32.mrf.mxu0
        %1409 = vmatprep.mubr.f32.mxu0 0.0
        %1410 = vmatmul.mubr.f32.gmra.mxu0 %v1231
        %v1411 = vpop.f32.mrf.mxu0
        %v1412 = vadd.f32 0.0, %v1411
        %v1413 = vpop.f32.mrf.mxu0
        %1414 = vmatprep.mubr.f32.mxu0 0.0
        %1415 = vmatmul.mubr.f32.gmra.mxu0 %v1234
        %v1416 = vpop.f32.mrf.mxu0
        %v1417 = vadd.f32 0.0, %v1416
        %v1418 = vpop.f32.mrf.mxu0
        %1419 = vmatprep.mubr.f32.mxu0 0.0
        %1420 = vmatmul.mubr.f32.gmra.mxu0 %v1237
        %v1421 = vpop.f32.mrf.mxu0
        %v1422 = vadd.f32 0.0, %v1421
        %v1423 = vpop.f32.mrf.mxu0
        %1424 = vmatprep.mubr.f32.mxu0 0.0
        %1425 = vmatmul.mubr.f32.gmra.mxu0 %v1240
        %v1426 = vpop.f32.mrf.mxu0
        %v1427 = vadd.f32 0.0, %v1426
        %v1428 = vpop.f32.mrf.mxu0
        %1429 = vmatprep.mubr.f32.mxu0 0.0
        %1430 = vmatmul.mubr.f32.gmra.mxu0 %v1243
        %v1431 = vpop.f32.mrf.mxu0
        %v1432 = vadd.f32 0.0, %v1431
        %v1433 = vpop.f32.mrf.mxu0
        %1434 = vmatprep.mubr.f32.mxu0 0.0
        %1435 = vmatmul.mubr.f32.gmra.mxu0 %v1246
        %v1436 = vpop.f32.mrf.mxu0
        %v1437 = vadd.f32 0.0, %v1436
        %v1438 = vpop.f32.mrf.mxu0
        %1439 = vmatprep.mubr.f32.mxu0 0.0
        %1440 = vmatmul.mubr.f32.gmra.mxu0 %v1249
        %v1441 = vpop.f32.mrf.mxu0
        %v1442 = vadd.f32 0.0, %v1441
        %v1443 = vpop.f32.mrf.mxu0
        %1444 = vmatprep.mubr.f32.mxu0 0.0
        %1445 = vmatmul.mubr.f32.gmra.mxu0 %v1252
        %v1446 = vpop.f32.mrf.mxu0
        %v1447 = vadd.f32 0.0, %v1446
        %v1448 = vpop.f32.mrf.mxu0
        %1449 = vmatprep.mubr.f32.mxu0 0.0
        %1450 = vmatmul.mubr.f32.gmra.mxu0 %v1255
        %v1451 = vpop.f32.mrf.mxu0
        %v1452 = vadd.f32 0.0, %v1451
        %v1453 = vpop.f32.mrf.mxu0
        %1454 = vmatprep.mubr.f32.mxu0 0.0
        %1455 = vmatmul.mubr.f32.gmra.mxu0 %v1258
        %v1456 = vpop.f32.mrf.mxu0
        %v1457 = vadd.f32 0.0, %v1456
        %v1458 = vpop.f32.mrf.mxu0
        %1459 = vmatprep.mubr.f32.mxu0 0.0
        %1460 = vmatmul.mubr.f32.gmra.mxu0 %v1261
        %v1461 = vpop.f32.mrf.mxu0
        %v1462 = vadd.f32 0.0, %v1461
        %v1463 = vpop.f32.mrf.mxu0
        %1464 = vmatprep.mubr.f32.mxu0 0.0
        %1465 = vmatmul.mubr.f32.gmra.mxu0 %v1264
        %v1466 = vpop.f32.mrf.mxu0
        %v1467 = vadd.f32 0.0, %v1466
        %v1468 = vpop.f32.mrf.mxu0
        %1469 = vmatprep.mubr.f32.mxu0 0.0
        %1470 = vmatmul.mubr.f32.gmra.mxu0 %v1267
        %v1471 = vpop.f32.mrf.mxu0
        %v1472 = vadd.f32 0.0, %v1471
        %v1473 = vpop.f32.mrf.mxu0
        %1474 = vmatprep.mubr.f32.mxu0 0.0
        %1475 = vmatmul.mubr.f32.gmra.mxu0 %v1270
        %v1476 = vpop.f32.mrf.mxu0
        %v1477 = vadd.f32 0.0, %v1476
        %v1478 = vpop.f32.mrf.mxu0
        %1479 = vmatprep.mubr.f32.mxu0 0.0
        %1480 = vmatmul.mubr.f32.gmra.mxu0 %v1273
        %v1481 = vpop.f32.mrf.mxu0
        %v1482 = vadd.f32 0.0, %v1481
        %v1483 = vpop.f32.mrf.mxu0
        %1484 = vmatprep.mubr.f32.mxu0 0.0
        %1485 = vmatmul.mubr.f32.gmra.mxu0 %v1276
        %v1486 = vpop.f32.mrf.mxu0
        %v1487 = vadd.f32 0.0, %v1486
        %v1488 = vpop.f32.mrf.mxu0
        %1489 = vmatprep.mubr.f32.mxu0 0.0
        %1490 = vmatmul.mubr.f32.gmra.mxu0 %v1279
        %v1491 = vpop.f32.mrf.mxu0
        %v1492 = vadd.f32 0.0, %v1491
        %v1493 = vpop.f32.mrf.mxu0
        %1494 = vmatprep.mubr.f32.mxu0 0.0
        %1495 = vmatmul.mubr.f32.gmra.mxu0 %v1282
        %v1496 = vpop.f32.mrf.mxu0
        %v1497 = vadd.f32 0.0, %v1496
        %v1498 = vpop.f32.mrf.mxu0
        %1499 = vmatprep.mubr.f32.mxu0 0.0
        %1500 = vmatmul.mubr.f32.gmra.mxu0 %v1285
        %v1501 = vpop.f32.mrf.mxu0
        %v1502 = vadd.f32 0.0, %v1501
        %v1503 = vpop.f32.mrf.mxu0
        %1504 = vmatprep.mubr.f32.mxu0 0.0
        %1505 = vmatmul.mubr.f32.gmra.mxu0 %v1288
        %v1506 = vpop.f32.mrf.mxu0
        %v1507 = vadd.f32 0.0, %v1506
        %v1508 = vpop.f32.mrf.mxu0
        %1509 = vmatprep.mubr.f32.mxu0 0.0
        %1510 = vmatmul.mubr.f32.gmra.mxu0 %v1291
        %v1511 = vpop.f32.mrf.mxu0
        %v1512 = vadd.f32 0.0, %v1511
        %v1513 = vpop.f32.mrf.mxu0
        %1514 = vmatprep.mubr.f32.mxu0 0.0
        %1515 = vmatmul.mubr.f32.gmra.mxu0 %v1294
        %v1516 = vpop.f32.mrf.mxu0
        %v1517 = vadd.f32 0.0, %v1516
        %v1518 = vpop.f32.mrf.mxu0
        %1519 = vmatprep.mubr.f32.mxu0 0.0
        %1520 = vmatmul.mubr.f32.gmra.mxu0 %v1297
        %v1521 = vpop.f32.mrf.mxu0
        %v1522 = vadd.f32 0.0, %v1521
        %v1523 = vpop.f32.mrf.mxu0
        %1524 = vmatprep.mubr.f32.mxu0 0.0
        %1525 = vmatmul.mubr.f32.gmra.mxu0 %v1300
        %v1526 = vpop.f32.mrf.mxu0
        %v1527 = vadd.f32 0.0, %v1526
        %v1528 = vpop.f32.mrf.mxu0
        %1529 = vdwg.mxu0
        %v1530 = vadd.f32 %v1014, %v1372
        %v1531 = vadd.f32 %v1019, %v1377
        %v1532 = vadd.f32 %v1024, %v1382
        %v1533 = vadd.f32 %v1029, %v1387
        %v1534 = vadd.f32 %v1034, %v1392
        %v1535 = vadd.f32 %v1039, %v1397
        %v1536 = vadd.f32 %v1044, %v1402
        %v1537 = vadd.f32 %v1049, %v1407
        %v1538 = vadd.f32 %v1054, %v1412
        %v1539 = vadd.f32 %v1059, %v1417
        %v1540 = vadd.f32 %v1064, %v1422
        %v1541 = vadd.f32 %v1069, %v1427
        %v1542 = vadd.f32 %v1074, %v1432
        %v1543 = vadd.f32 %v1079, %v1437
        %v1544 = vadd.f32 %v1084, %v1442
        %v1545 = vadd.f32 %v1089, %v1447
        %v1546 = vadd.f32 %v1094, %v1452
        %v1547 = vadd.f32 %v1099, %v1457
        %v1548 = vadd.f32 %v1104, %v1462
        %v1549 = vadd.f32 %v1109, %v1467
        %v1550 = vadd.f32 %v1114, %v1472
        %v1551 = vadd.f32 %v1119, %v1477
        %v1552 = vadd.f32 %v1124, %v1482
        %v1553 = vadd.f32 %v1129, %v1487
        %v1554 = vadd.f32 %v1134, %v1492
        %v1555 = vadd.f32 %v1139, %v1497
        %v1556 = vadd.f32 %v1144, %v1502
        %v1557 = vadd.f32 %v1149, %v1507
        %v1558 = vadd.f32 %v1154, %v1512
        %v1559 = vadd.f32 %v1159, %v1517
        %v1560 = vadd.f32 %v1164, %v1522
        %v1561 = vadd.f32 %v1169, %v1527
        %v1562 = vld [vmem:[%s423] sm:$0xff]
        %v1563 = vld [vmem:[%s423 + $0x8] sm:$0xff]
        %v1564 = vld [vmem:[%s423 + $0x18] sm:$0xff]
        %v1565 = vld [vmem:[%s423 + $0x20] sm:$0xff]
        %v1566 = vld [vmem:[%s423 + $0x30] sm:$0xff]
        %v1567 = vld [vmem:[%s423 + $0x38] sm:$0xff]
        %v1568 = vld [vmem:[%s423 + $0x48] sm:$0xff]
        %v1569 = vld [vmem:[%s423 + $0x50] sm:$0xff]
        %v1570 = vld [vmem:[%s423 + $0x60] sm:$0xff]
        %v1571 = vld [vmem:[%s423 + $0x68] sm:$0xff]
        %v1572 = vld [vmem:[%s423 + $0x78] sm:$0xff]
        %v1573 = vld [vmem:[%s423 + $0x80] sm:$0xff]
        %v1574 = vld [vmem:[%s423 + $0x90] sm:$0xff]
        %v1575 = vld [vmem:[%s423 + $0x98] sm:$0xff]
        %v1576 = vld [vmem:[%s423 + $0xa8] sm:$0xff]
        %v1577 = vld [vmem:[%s423 + $0xb0] sm:$0xff]
        %v1578 = vld [vmem:[%s423 + $0xf0] sm:$0xff]
        %v1579 = vld [vmem:[%s423 + $0xf8] sm:$0xff]
        %v1580 = vld [vmem:[%s423 + $0x108] sm:$0xff]
        %v1581 = vld [vmem:[%s423 + $0x110] sm:$0xff]
        %v1582 = vld [vmem:[%s423 + $0x120] sm:$0xff]
        %v1583 = vld [vmem:[%s423 + $0x128] sm:$0xff]
        %v1584 = vld [vmem:[%s423 + $0x138] sm:$0xff]
        %v1585 = vld [vmem:[%s423 + $0x140] sm:$0xff]
        %v1586 = vld [vmem:[%s423 + $0x150] sm:$0xff]
        %v1587 = vld [vmem:[%s423 + $0x158] sm:$0xff]
        %v1588 = vld [vmem:[%s423 + $0x168] sm:$0xff]
        %v1589 = vld [vmem:[%s423 + $0x170] sm:$0xff]
        %v1590 = vld [vmem:[%s423 + $0x180] sm:$0xff]
        %v1591 = vld [vmem:[%s423 + $0x188] sm:$0xff]
        %v1592 = vld [vmem:[%s423 + $0x198] sm:$0xff]
        %v1593 = vld [vmem:[%s423 + $0x1a0] sm:$0xff]
        %s1594 = scalar_lea.vmem %s1, 12
        %v1595 = vld [vmem:[%s1594] sm:$0xf]
        %v1597 = vsel %vm329, %v1562, 0
        %v1600 = vsel %vm329, %v1563, 0
        %v1603 = vsel %vm329, %v1564, 0
        %v1606 = vsel %vm329, %v1565, 0
        %v1609 = vsel %vm329, %v1566, 0
        %v1612 = vsel %vm329, %v1567, 0
        %v1615 = vsel %vm329, %v1568, 0
        %v1618 = vsel %vm329, %v1569, 0
        %v1621 = vsel %vm329, %v1570, 0
        %v1624 = vsel %vm329, %v1571, 0
        %v1627 = vsel %vm329, %v1572, 0
        %v1630 = vsel %vm329, %v1573, 0
        %v1633 = vsel %vm329, %v1574, 0
        %v1636 = vsel %vm329, %v1575, 0
        %v1639 = vsel %vm329, %v1576, 0
        %v1642 = vsel %vm329, %v1577, 0
        %v1645 = vsel %vm329, %v1578, 0
        %v1648 = vsel %vm329, %v1579, 0
        %v1651 = vsel %vm329, %v1580, 0
        %v1654 = vsel %vm329, %v1581, 0
        %v1657 = vsel %vm329, %v1582, 0
        %v1660 = vsel %vm329, %v1583, 0
        %v1663 = vsel %vm329, %v1584, 0
        %v1666 = vsel %vm329, %v1585, 0
        %v1669 = vsel %vm329, %v1586, 0
        %v1672 = vsel %vm329, %v1587, 0
        %v1675 = vsel %vm329, %v1588, 0
        %v1678 = vsel %vm329, %v1589, 0
        %v1681 = vsel %vm329, %v1590, 0
        %v1684 = vsel %vm329, %v1591, 0
        %v1687 = vsel %vm329, %v1592, 0
        %v1690 = vsel %vm329, %v1593, 0
        %v1693 = vsel %vm619, %v1595, 0
        %1695 = vmatprep.subr.mxu0 0.0
        %1696 = vmatpush1.msra.mxu0 0.0
        %1697 = vmatprep.subr.mxu0 0.0
        %1698 = vmatpush1.msra.mxu0 0.0
        %1699 = vmatprep.subr.mxu0 0.0
        %1700 = vmatpush1.msra.mxu0 0.0
        %1701 = vmatprep.subr.mxu0 0.0
        %1702 = vmatpush1.msra.mxu0 0.0
        %1703 = vmatprep.subr.mxu0 0.0
        %1704 = vmatpush1.msra.mxu0 0.0
        %1705 = vmatprep.subr.mxu0 0.0
        %1706 = vmatpush1.msra.mxu0 0.0
        %1707 = vmatprep.subr.mxu0 0.0
        %1708 = vmatpush1.msra.mxu0 0.0
        %1709 = vmatprep.subr.mxu0 0.0
        %1710 = vmatpush1.msra.mxu0 0.0
        %1711 = vmatprep.subr.mxu0 0.0
        %1712 = vmatpush1.msra.mxu0 0.0
        %1713 = vmatprep.subr.mxu0 0.0
        %1714 = vmatpush1.msra.mxu0 0.0
        %1715 = vmatprep.subr.mxu0 0.0
        %1716 = vmatpush1.msra.mxu0 0.0
        %1717 = vmatprep.subr.mxu0 0.0
        %1718 = vmatpush1.msra.mxu0 0.0
        %1719 = vmatprep.subr.mxu0 0.0
        %1720 = vmatpush1.msra.mxu0 0.0
        %1721 = vmatprep.subr.mxu0 0.0
        %1722 = vmatpush1.msra.mxu0 0.0
        %1723 = vmatprep.subr.mxu0 0.0
        %1724 = vmatpush1.msra.mxu0 0.0
        %1725 = vmatprep.subr.mxu0 0.0
        %1726 = vmatpush1.msra.mxu0 %v1693
        %1727 = vmatprep.subr.mxu0 0.0
        %1728 = vmatpush2.msra.mxu0 0.0
        %1729 = vmatprep.subr.mxu0 0.0
        %1730 = vmatpush2.msra.mxu0 0.0
        %1731 = vmatprep.subr.mxu0 0.0
        %1732 = vmatpush2.msra.mxu0 0.0
        %1733 = vmatprep.subr.mxu0 0.0
        %1734 = vmatpush2.msra.mxu0 0.0
        %1735 = vmatprep.subr.mxu0 0.0
        %1736 = vmatpush2.msra.mxu0 0.0
        %1737 = vmatprep.subr.mxu0 0.0
        %1738 = vmatpush2.msra.mxu0 0.0
        %1739 = vmatprep.subr.mxu0 0.0
        %1740 = vmatpush2.msra.mxu0 0.0
        %1741 = vmatprep.subr.mxu0 0.0
        %1742 = vmatpush2.msra.mxu0 0.0
        %1743 = vmatprep.subr.mxu0 0.0
        %1744 = vmatpush2.msra.mxu0 0.0
        %1745 = vmatprep.subr.mxu0 0.0
        %1746 = vmatpush2.msra.mxu0 0.0
        %1747 = vmatprep.subr.mxu0 0.0
        %1748 = vmatpush2.msra.mxu0 0.0
        %1749 = vmatprep.subr.mxu0 0.0
        %1750 = vmatpush2.msra.mxu0 0.0
        %1751 = vmatprep.subr.mxu0 0.0
        %1752 = vmatpush2.msra.mxu0 0.0
        %1753 = vmatprep.subr.mxu0 0.0
        %1754 = vmatpush2.msra.mxu0 0.0
        %1755 = vmatprep.subr.mxu0 0.0
        %1756 = vmatpush2.msra.mxu0 0.0
        %1757 = vmatprep.subr.mxu0 0.0
        %1758 = vmatpush2.msra.mxu0 0.0
        %1759 = vmatprep.mubr.f32.mxu0 0.0
        %1760 = vmatmul.mubr.f32.gmra.mxu0 %v1597
        %v1761 = vpop.f32.mrf.mxu0
        %v1762 = vadd.f32 0.0, %v1761
        %v1763 = vpop.f32.mrf.mxu0
        %1764 = vmatprep.mubr.f32.mxu0 0.0
        %1765 = vmatmul.mubr.f32.gmra.mxu0 %v1600
        %v1766 = vpop.f32.mrf.mxu0
        %v1767 = vadd.f32 0.0, %v1766
        %v1768 = vpop.f32.mrf.mxu0
        %1769 = vmatprep.mubr.f32.mxu0 0.0
        %1770 = vmatmul.mubr.f32.gmra.mxu0 %v1603
        %v1771 = vpop.f32.mrf.mxu0
        %v1772 = vadd.f32 0.0, %v1771
        %v1773 = vpop.f32.mrf.mxu0
        %1774 = vmatprep.mubr.f32.mxu0 0.0
        %1775 = vmatmul.mubr.f32.gmra.mxu0 %v1606
        %v1776 = vpop.f32.mrf.mxu0
        %v1777 = vadd.f32 0.0, %v1776
        %v1778 = vpop.f32.mrf.mxu0
        %1779 = vmatprep.mubr.f32.mxu0 0.0
        %1780 = vmatmul.mubr.f32.gmra.mxu0 %v1609
        %v1781 = vpop.f32.mrf.mxu0
        %v1782 = vadd.f32 0.0, %v1781
        %v1783 = vpop.f32.mrf.mxu0
        %1784 = vmatprep.mubr.f32.mxu0 0.0
        %1785 = vmatmul.mubr.f32.gmra.mxu0 %v1612
        %v1786 = vpop.f32.mrf.mxu0
        %v1787 = vadd.f32 0.0, %v1786
        %v1788 = vpop.f32.mrf.mxu0
        %1789 = vmatprep.mubr.f32.mxu0 0.0
        %1790 = vmatmul.mubr.f32.gmra.mxu0 %v1615
        %v1791 = vpop.f32.mrf.mxu0
        %v1792 = vadd.f32 0.0, %v1791
        %v1793 = vpop.f32.mrf.mxu0
        %1794 = vmatprep.mubr.f32.mxu0 0.0
        %1795 = vmatmul.mubr.f32.gmra.mxu0 %v1618
        %v1796 = vpop.f32.mrf.mxu0
        %v1797 = vadd.f32 0.0, %v1796
        %v1798 = vpop.f32.mrf.mxu0
        %1799 = vmatprep.mubr.f32.mxu0 0.0
        %1800 = vmatmul.mubr.f32.gmra.mxu0 %v1621
        %v1801 = vpop.f32.mrf.mxu0
        %v1802 = vadd.f32 0.0, %v1801
        %v1803 = vpop.f32.mrf.mxu0
        %1804 = vmatprep.mubr.f32.mxu0 0.0
        %1805 = vmatmul.mubr.f32.gmra.mxu0 %v1624
        %v1806 = vpop.f32.mrf.mxu0
        %v1807 = vadd.f32 0.0, %v1806
        %v1808 = vpop.f32.mrf.mxu0
        %1809 = vmatprep.mubr.f32.mxu0 0.0
        %1810 = vmatmul.mubr.f32.gmra.mxu0 %v1627
        %v1811 = vpop.f32.mrf.mxu0
        %v1812 = vadd.f32 0.0, %v1811
        %v1813 = vpop.f32.mrf.mxu0
        %1814 = vmatprep.mubr.f32.mxu0 0.0
        %1815 = vmatmul.mubr.f32.gmra.mxu0 %v1630
        %v1816 = vpop.f32.mrf.mxu0
        %v1817 = vadd.f32 0.0, %v1816
        %v1818 = vpop.f32.mrf.mxu0
        %1819 = vmatprep.mubr.f32.mxu0 0.0
        %1820 = vmatmul.mubr.f32.gmra.mxu0 %v1633
        %v1821 = vpop.f32.mrf.mxu0
        %v1822 = vadd.f32 0.0, %v1821
        %v1823 = vpop.f32.mrf.mxu0
        %1824 = vmatprep.mubr.f32.mxu0 0.0
        %1825 = vmatmul.mubr.f32.gmra.mxu0 %v1636
        %v1826 = vpop.f32.mrf.mxu0
        %v1827 = vadd.f32 0.0, %v1826
        %v1828 = vpop.f32.mrf.mxu0
        %1829 = vmatprep.mubr.f32.mxu0 0.0
        %1830 = vmatmul.mubr.f32.gmra.mxu0 %v1639
        %v1831 = vpop.f32.mrf.mxu0
        %v1832 = vadd.f32 0.0, %v1831
        %v1833 = vpop.f32.mrf.mxu0
        %1834 = vmatprep.mubr.f32.mxu0 0.0
        %1835 = vmatmul.mubr.f32.gmra.mxu0 %v1642
        %v1836 = vpop.f32.mrf.mxu0
        %v1837 = vadd.f32 0.0, %v1836
        %v1838 = vpop.f32.mrf.mxu0
        %1839 = vmatprep.mubr.f32.mxu0 0.0
        %1840 = vmatmul.mubr.f32.gmra.mxu0 %v1645
        %v1841 = vpop.f32.mrf.mxu0
        %v1842 = vadd.f32 0.0, %v1841
        %v1843 = vpop.f32.mrf.mxu0
        %1844 = vmatprep.mubr.f32.mxu0 0.0
        %1845 = vmatmul.mubr.f32.gmra.mxu0 %v1648
        %v1846 = vpop.f32.mrf.mxu0
        %v1847 = vadd.f32 0.0, %v1846
        %v1848 = vpop.f32.mrf.mxu0
        %1849 = vmatprep.mubr.f32.mxu0 0.0
        %1850 = vmatmul.mubr.f32.gmra.mxu0 %v1651
        %v1851 = vpop.f32.mrf.mxu0
        %v1852 = vadd.f32 0.0, %v1851
        %v1853 = vpop.f32.mrf.mxu0
        %1854 = vmatprep.mubr.f32.mxu0 0.0
        %1855 = vmatmul.mubr.f32.gmra.mxu0 %v1654
        %v1856 = vpop.f32.mrf.mxu0
        %v1857 = vadd.f32 0.0, %v1856
        %v1858 = vpop.f32.mrf.mxu0
        %1859 = vmatprep.mubr.f32.mxu0 0.0
        %1860 = vmatmul.mubr.f32.gmra.mxu0 %v1657
        %v1861 = vpop.f32.mrf.mxu0
        %v1862 = vadd.f32 0.0, %v1861
        %v1863 = vpop.f32.mrf.mxu0
        %1864 = vmatprep.mubr.f32.mxu0 0.0
        %1865 = vmatmul.mubr.f32.gmra.mxu0 %v1660
        %v1866 = vpop.f32.mrf.mxu0
        %v1867 = vadd.f32 0.0, %v1866
        %v1868 = vpop.f32.mrf.mxu0
        %1869 = vmatprep.mubr.f32.mxu0 0.0
        %1870 = vmatmul.mubr.f32.gmra.mxu0 %v1663
        %v1871 = vpop.f32.mrf.mxu0
        %v1872 = vadd.f32 0.0, %v1871
        %v1873 = vpop.f32.mrf.mxu0
        %1874 = vmatprep.mubr.f32.mxu0 0.0
        %1875 = vmatmul.mubr.f32.gmra.mxu0 %v1666
        %v1876 = vpop.f32.mrf.mxu0
        %v1877 = vadd.f32 0.0, %v1876
        %v1878 = vpop.f32.mrf.mxu0
        %1879 = vmatprep.mubr.f32.mxu0 0.0
        %1880 = vmatmul.mubr.f32.gmra.mxu0 %v1669
        %v1881 = vpop.f32.mrf.mxu0
        %v1882 = vadd.f32 0.0, %v1881
        %v1883 = vpop.f32.mrf.mxu0
        %1884 = vmatprep.mubr.f32.mxu0 0.0
        %1885 = vmatmul.mubr.f32.gmra.mxu0 %v1672
        %v1886 = vpop.f32.mrf.mxu0
        %v1887 = vadd.f32 0.0, %v1886
        %v1888 = vpop.f32.mrf.mxu0
        %1889 = vmatprep.mubr.f32.mxu0 0.0
        %1890 = vmatmul.mubr.f32.gmra.mxu0 %v1675
        %v1891 = vpop.f32.mrf.mxu0
        %v1892 = vadd.f32 0.0, %v1891
        %v1893 = vpop.f32.mrf.mxu0
        %1894 = vmatprep.mubr.f32.mxu0 0.0
        %1895 = vmatmul.mubr.f32.gmra.mxu0 %v1678
        %v1896 = vpop.f32.mrf.mxu0
        %v1897 = vadd.f32 0.0, %v1896
        %v1898 = vpop.f32.mrf.mxu0
        %1899 = vmatprep.mubr.f32.mxu0 0.0
        %1900 = vmatmul.mubr.f32.gmra.mxu0 %v1681
        %v1901 = vpop.f32.mrf.mxu0
        %v1902 = vadd.f32 0.0, %v1901
        %v1903 = vpop.f32.mrf.mxu0
        %1904 = vmatprep.mubr.f32.mxu0 0.0
        %1905 = vmatmul.mubr.f32.gmra.mxu0 %v1684
        %v1906 = vpop.f32.mrf.mxu0
        %v1907 = vadd.f32 0.0, %v1906
        %v1908 = vpop.f32.mrf.mxu0
        %1909 = vmatprep.mubr.f32.mxu0 0.0
        %1910 = vmatmul.mubr.f32.gmra.mxu0 %v1687
        %v1911 = vpop.f32.mrf.mxu0
        %v1912 = vadd.f32 0.0, %v1911
        %v1913 = vpop.f32.mrf.mxu0
        %1914 = vmatprep.mubr.f32.mxu0 0.0
        %1915 = vmatmul.mubr.f32.gmra.mxu0 %v1690
        %v1916 = vpop.f32.mrf.mxu0
        %v1917 = vadd.f32 0.0, %v1916
        %v1918 = vpop.f32.mrf.mxu0
        %1919 = vdwg.mxu0
        %v1920 = vadd.f32 %v1530, %v1762
        %v1921 = vadd.f32 %v1531, %v1767
        %v1922 = vadd.f32 %v1532, %v1772
        %v1923 = vadd.f32 %v1533, %v1777
        %v1924 = vadd.f32 %v1534, %v1782
        %v1925 = vadd.f32 %v1535, %v1787
        %v1926 = vadd.f32 %v1536, %v1792
        %v1927 = vadd.f32 %v1537, %v1797
        %v1928 = vadd.f32 %v1538, %v1802
        %v1929 = vadd.f32 %v1539, %v1807
        %v1930 = vadd.f32 %v1540, %v1812
        %v1931 = vadd.f32 %v1541, %v1817
        %v1932 = vadd.f32 %v1542, %v1822
        %v1933 = vadd.f32 %v1543, %v1827
        %v1934 = vadd.f32 %v1544, %v1832
        %v1935 = vadd.f32 %v1545, %v1837
        %v1936 = vadd.f32 %v1546, %v1842
        %v1937 = vadd.f32 %v1547, %v1847
        %v1938 = vadd.f32 %v1548, %v1852
        %v1939 = vadd.f32 %v1549, %v1857
        %v1940 = vadd.f32 %v1550, %v1862
        %v1941 = vadd.f32 %v1551, %v1867
        %v1942 = vadd.f32 %v1552, %v1872
        %v1943 = vadd.f32 %v1553, %v1877
        %v1944 = vadd.f32 %v1554, %v1882
        %v1945 = vadd.f32 %v1555, %v1887
        %v1946 = vadd.f32 %v1556, %v1892
        %v1947 = vadd.f32 %v1557, %v1897
        %v1948 = vadd.f32 %v1558, %v1902
        %v1949 = vadd.f32 %v1559, %v1907
        %v1950 = vadd.f32 %v1560, %v1912
        %v1951 = vadd.f32 %v1561, %v1917
        %v1952 = vld [vmem:[%s423 + $0x1] sm:$0xff]
        %v1953 = vld [vmem:[%s423 + $0x9] sm:$0xff]
        %v1954 = vld [vmem:[%s423 + $0x19] sm:$0xff]
        %v1955 = vld [vmem:[%s423 + $0x21] sm:$0xff]
        %v1956 = vld [vmem:[%s423 + $0x31] sm:$0xff]
        %v1957 = vld [vmem:[%s423 + $0x39] sm:$0xff]
        %v1958 = vld [vmem:[%s423 + $0x49] sm:$0xff]
        %v1959 = vld [vmem:[%s423 + $0x51] sm:$0xff]
        %v1960 = vld [vmem:[%s423 + $0x61] sm:$0xff]
        %v1961 = vld [vmem:[%s423 + $0x69] sm:$0xff]
        %v1962 = vld [vmem:[%s423 + $0x79] sm:$0xff]
        %v1963 = vld [vmem:[%s423 + $0x81] sm:$0xff]
        %v1964 = vld [vmem:[%s423 + $0x91] sm:$0xff]
        %v1965 = vld [vmem:[%s423 + $0x99] sm:$0xff]
        %v1966 = vld [vmem:[%s423 + $0xa9] sm:$0xff]
        %v1967 = vld [vmem:[%s423 + $0xb1] sm:$0xff]
        %v1968 = vld [vmem:[%s423 + $0xf1] sm:$0xff]
        %v1969 = vld [vmem:[%s423 + $0xf9] sm:$0xff]
        %v1970 = vld [vmem:[%s423 + $0x109] sm:$0xff]
        %v1971 = vld [vmem:[%s423 + $0x111] sm:$0xff]
        %v1972 = vld [vmem:[%s423 + $0x121] sm:$0xff]
        %v1973 = vld [vmem:[%s423 + $0x129] sm:$0xff]
        %v1974 = vld [vmem:[%s423 + $0x139] sm:$0xff]
        %v1975 = vld [vmem:[%s423 + $0x141] sm:$0xff]
        %v1976 = vld [vmem:[%s423 + $0x151] sm:$0xff]
        %v1977 = vld [vmem:[%s423 + $0x159] sm:$0xff]
        %v1978 = vld [vmem:[%s423 + $0x169] sm:$0xff]
        %v1979 = vld [vmem:[%s423 + $0x171] sm:$0xff]
        %v1980 = vld [vmem:[%s423 + $0x181] sm:$0xff]
        %v1981 = vld [vmem:[%s423 + $0x189] sm:$0xff]
        %v1982 = vld [vmem:[%s423 + $0x199] sm:$0xff]
        %v1983 = vld [vmem:[%s423 + $0x1a1] sm:$0xff]
        %s1984 = scalar_lea.vmem %s1, 16
        %v1985 = vld [vmem:[%s1984] sm:$0xf]
        %v1987 = vsel %vm329, %v1952, 0
        %v1990 = vsel %vm329, %v1953, 0
        %v1993 = vsel %vm329, %v1954, 0
        %v1996 = vsel %vm329, %v1955, 0
        %v1999 = vsel %vm329, %v1956, 0
        %v2002 = vsel %vm329, %v1957, 0
        %v2005 = vsel %vm329, %v1958, 0
        %v2008 = vsel %vm329, %v1959, 0
        %v2011 = vsel %vm329, %v1960, 0
        %v2014 = vsel %vm329, %v1961, 0
        %v2017 = vsel %vm329, %v1962, 0
        %v2020 = vsel %vm329, %v1963, 0
        %v2023 = vsel %vm329, %v1964, 0
        %v2026 = vsel %vm329, %v1965, 0
        %v2029 = vsel %vm329, %v1966, 0
        %v2032 = vsel %vm329, %v1967, 0
        %v2035 = vsel %vm329, %v1968, 0
        %v2038 = vsel %vm329, %v1969, 0
        %v2041 = vsel %vm329, %v1970, 0
        %v2044 = vsel %vm329, %v1971, 0
        %v2047 = vsel %vm329, %v1972, 0
        %v2050 = vsel %vm329, %v1973, 0
        %v2053 = vsel %vm329, %v1974, 0
        %v2056 = vsel %vm329, %v1975, 0
        %v2059 = vsel %vm329, %v1976, 0
        %v2062 = vsel %vm329, %v1977, 0
        %v2065 = vsel %vm329, %v1978, 0
        %v2068 = vsel %vm329, %v1979, 0
        %v2071 = vsel %vm329, %v1980, 0
        %v2074 = vsel %vm329, %v1981, 0
        %v2077 = vsel %vm329, %v1982, 0
        %v2080 = vsel %vm329, %v1983, 0
        %v2083 = vsel %vm619, %v1985, 0
        %2085 = vmatprep.subr.mxu0 0.0
        %2086 = vmatpush1.msra.mxu0 0.0
        %2087 = vmatprep.subr.mxu0 0.0
        %2088 = vmatpush1.msra.mxu0 0.0
        %2089 = vmatprep.subr.mxu0 0.0
        %2090 = vmatpush1.msra.mxu0 0.0
        %2091 = vmatprep.subr.mxu0 0.0
        %2092 = vmatpush1.msra.mxu0 0.0
        %2093 = vmatprep.subr.mxu0 0.0
        %2094 = vmatpush1.msra.mxu0 0.0
        %2095 = vmatprep.subr.mxu0 0.0
        %2096 = vmatpush1.msra.mxu0 0.0
        %2097 = vmatprep.subr.mxu0 0.0
        %2098 = vmatpush1.msra.mxu0 0.0
        %2099 = vmatprep.subr.mxu0 0.0
        %2100 = vmatpush1.msra.mxu0 0.0
        %2101 = vmatprep.subr.mxu0 0.0
        %2102 = vmatpush1.msra.mxu0 0.0
        %2103 = vmatprep.subr.mxu0 0.0
        %2104 = vmatpush1.msra.mxu0 0.0
        %2105 = vmatprep.subr.mxu0 0.0
        %2106 = vmatpush1.msra.mxu0 0.0
        %2107 = vmatprep.subr.mxu0 0.0
        %2108 = vmatpush1.msra.mxu0 0.0
        %2109 = vmatprep.subr.mxu0 0.0
        %2110 = vmatpush1.msra.mxu0 0.0
        %2111 = vmatprep.subr.mxu0 0.0
        %2112 = vmatpush1.msra.mxu0 0.0
        %2113 = vmatprep.subr.mxu0 0.0
        %2114 = vmatpush1.msra.mxu0 0.0
        %2115 = vmatprep.subr.mxu0 0.0
        %2116 = vmatpush1.msra.mxu0 %v2083
        %2117 = vmatprep.subr.mxu0 0.0
        %2118 = vmatpush2.msra.mxu0 0.0
        %2119 = vmatprep.subr.mxu0 0.0
        %2120 = vmatpush2.msra.mxu0 0.0
        %2121 = vmatprep.subr.mxu0 0.0
        %2122 = vmatpush2.msra.mxu0 0.0
        %2123 = vmatprep.subr.mxu0 0.0
        %2124 = vmatpush2.msra.mxu0 0.0
        %2125 = vmatprep.subr.mxu0 0.0
        %2126 = vmatpush2.msra.mxu0 0.0
        %2127 = vmatprep.subr.mxu0 0.0
        %2128 = vmatpush2.msra.mxu0 0.0
        %2129 = vmatprep.subr.mxu0 0.0
        %2130 = vmatpush2.msra.mxu0 0.0
        %2131 = vmatprep.subr.mxu0 0.0
        %2132 = vmatpush2.msra.mxu0 0.0
        %2133 = vmatprep.subr.mxu0 0.0
        %2134 = vmatpush2.msra.mxu0 0.0
        %2135 = vmatprep.subr.mxu0 0.0
        %2136 = vmatpush2.msra.mxu0 0.0
        %2137 = vmatprep.subr.mxu0 0.0
        %2138 = vmatpush2.msra.mxu0 0.0
        %2139 = vmatprep.subr.mxu0 0.0
        %2140 = vmatpush2.msra.mxu0 0.0
        %2141 = vmatprep.subr.mxu0 0.0
        %2142 = vmatpush2.msra.mxu0 0.0
        %2143 = vmatprep.subr.mxu0 0.0
        %2144 = vmatpush2.msra.mxu0 0.0
        %2145 = vmatprep.subr.mxu0 0.0
        %2146 = vmatpush2.msra.mxu0 0.0
        %2147 = vmatprep.subr.mxu0 0.0
        %2148 = vmatpush2.msra.mxu0 0.0
        %2149 = vmatprep.mubr.f32.mxu0 0.0
        %2150 = vmatmul.mubr.f32.gmra.mxu0 %v1987
        %v2151 = vpop.f32.mrf.mxu0
        %v2152 = vadd.f32 0.0, %v2151
        %v2153 = vpop.f32.mrf.mxu0
        %2154 = vmatprep.mubr.f32.mxu0 0.0
        %2155 = vmatmul.mubr.f32.gmra.mxu0 %v1990
        %v2156 = vpop.f32.mrf.mxu0
        %v2157 = vadd.f32 0.0, %v2156
        %v2158 = vpop.f32.mrf.mxu0
        %2159 = vmatprep.mubr.f32.mxu0 0.0
        %2160 = vmatmul.mubr.f32.gmra.mxu0 %v1993
        %v2161 = vpop.f32.mrf.mxu0
        %v2162 = vadd.f32 0.0, %v2161
        %v2163 = vpop.f32.mrf.mxu0
        %2164 = vmatprep.mubr.f32.mxu0 0.0
        %2165 = vmatmul.mubr.f32.gmra.mxu0 %v1996
        %v2166 = vpop.f32.mrf.mxu0
        %v2167 = vadd.f32 0.0, %v2166
        %v2168 = vpop.f32.mrf.mxu0
        %2169 = vmatprep.mubr.f32.mxu0 0.0
        %2170 = vmatmul.mubr.f32.gmra.mxu0 %v1999
        %v2171 = vpop.f32.mrf.mxu0
        %v2172 = vadd.f32 0.0, %v2171
        %v2173 = vpop.f32.mrf.mxu0
        %2174 = vmatprep.mubr.f32.mxu0 0.0
        %2175 = vmatmul.mubr.f32.gmra.mxu0 %v2002
        %v2176 = vpop.f32.mrf.mxu0
        %v2177 = vadd.f32 0.0, %v2176
        %v2178 = vpop.f32.mrf.mxu0
        %2179 = vmatprep.mubr.f32.mxu0 0.0
        %2180 = vmatmul.mubr.f32.gmra.mxu0 %v2005
        %v2181 = vpop.f32.mrf.mxu0
        %v2182 = vadd.f32 0.0, %v2181
        %v2183 = vpop.f32.mrf.mxu0
        %2184 = vmatprep.mubr.f32.mxu0 0.0
        %2185 = vmatmul.mubr.f32.gmra.mxu0 %v2008
        %v2186 = vpop.f32.mrf.mxu0
        %v2187 = vadd.f32 0.0, %v2186
        %v2188 = vpop.f32.mrf.mxu0
        %2189 = vmatprep.mubr.f32.mxu0 0.0
        %2190 = vmatmul.mubr.f32.gmra.mxu0 %v2011
        %v2191 = vpop.f32.mrf.mxu0
        %v2192 = vadd.f32 0.0, %v2191
        %v2193 = vpop.f32.mrf.mxu0
        %2194 = vmatprep.mubr.f32.mxu0 0.0
        %2195 = vmatmul.mubr.f32.gmra.mxu0 %v2014
        %v2196 = vpop.f32.mrf.mxu0
        %v2197 = vadd.f32 0.0, %v2196
        %v2198 = vpop.f32.mrf.mxu0
        %2199 = vmatprep.mubr.f32.mxu0 0.0
        %2200 = vmatmul.mubr.f32.gmra.mxu0 %v2017
        %v2201 = vpop.f32.mrf.mxu0
        %v2202 = vadd.f32 0.0, %v2201
        %v2203 = vpop.f32.mrf.mxu0
        %2204 = vmatprep.mubr.f32.mxu0 0.0
        %2205 = vmatmul.mubr.f32.gmra.mxu0 %v2020
        %v2206 = vpop.f32.mrf.mxu0
        %v2207 = vadd.f32 0.0, %v2206
        %v2208 = vpop.f32.mrf.mxu0
        %2209 = vmatprep.mubr.f32.mxu0 0.0
        %2210 = vmatmul.mubr.f32.gmra.mxu0 %v2023
        %v2211 = vpop.f32.mrf.mxu0
        %v2212 = vadd.f32 0.0, %v2211
        %v2213 = vpop.f32.mrf.mxu0
        %2214 = vmatprep.mubr.f32.mxu0 0.0
        %2215 = vmatmul.mubr.f32.gmra.mxu0 %v2026
        %v2216 = vpop.f32.mrf.mxu0
        %v2217 = vadd.f32 0.0, %v2216
        %v2218 = vpop.f32.mrf.mxu0
        %2219 = vmatprep.mubr.f32.mxu0 0.0
        %2220 = vmatmul.mubr.f32.gmra.mxu0 %v2029
        %v2221 = vpop.f32.mrf.mxu0
        %v2222 = vadd.f32 0.0, %v2221
        %v2223 = vpop.f32.mrf.mxu0
        %2224 = vmatprep.mubr.f32.mxu0 0.0
        %2225 = vmatmul.mubr.f32.gmra.mxu0 %v2032
        %v2226 = vpop.f32.mrf.mxu0
        %v2227 = vadd.f32 0.0, %v2226
        %v2228 = vpop.f32.mrf.mxu0
        %2229 = vmatprep.mubr.f32.mxu0 0.0
        %2230 = vmatmul.mubr.f32.gmra.mxu0 %v2035
        %v2231 = vpop.f32.mrf.mxu0
        %v2232 = vadd.f32 0.0, %v2231
        %v2233 = vpop.f32.mrf.mxu0
        %2234 = vmatprep.mubr.f32.mxu0 0.0
        %2235 = vmatmul.mubr.f32.gmra.mxu0 %v2038
        %v2236 = vpop.f32.mrf.mxu0
        %v2237 = vadd.f32 0.0, %v2236
        %v2238 = vpop.f32.mrf.mxu0
        %2239 = vmatprep.mubr.f32.mxu0 0.0
        %2240 = vmatmul.mubr.f32.gmra.mxu0 %v2041
        %v2241 = vpop.f32.mrf.mxu0
        %v2242 = vadd.f32 0.0, %v2241
        %v2243 = vpop.f32.mrf.mxu0
        %2244 = vmatprep.mubr.f32.mxu0 0.0
        %2245 = vmatmul.mubr.f32.gmra.mxu0 %v2044
        %v2246 = vpop.f32.mrf.mxu0
        %v2247 = vadd.f32 0.0, %v2246
        %v2248 = vpop.f32.mrf.mxu0
        %2249 = vmatprep.mubr.f32.mxu0 0.0
        %2250 = vmatmul.mubr.f32.gmra.mxu0 %v2047
        %v2251 = vpop.f32.mrf.mxu0
        %v2252 = vadd.f32 0.0, %v2251
        %v2253 = vpop.f32.mrf.mxu0
        %2254 = vmatprep.mubr.f32.mxu0 0.0
        %2255 = vmatmul.mubr.f32.gmra.mxu0 %v2050
        %v2256 = vpop.f32.mrf.mxu0
        %v2257 = vadd.f32 0.0, %v2256
        %v2258 = vpop.f32.mrf.mxu0
        %2259 = vmatprep.mubr.f32.mxu0 0.0
        %2260 = vmatmul.mubr.f32.gmra.mxu0 %v2053
        %v2261 = vpop.f32.mrf.mxu0
        %v2262 = vadd.f32 0.0, %v2261
        %v2263 = vpop.f32.mrf.mxu0
        %2264 = vmatprep.mubr.f32.mxu0 0.0
        %2265 = vmatmul.mubr.f32.gmra.mxu0 %v2056
        %v2266 = vpop.f32.mrf.mxu0
        %v2267 = vadd.f32 0.0, %v2266
        %v2268 = vpop.f32.mrf.mxu0
        %2269 = vmatprep.mubr.f32.mxu0 0.0
        %2270 = vmatmul.mubr.f32.gmra.mxu0 %v2059
        %v2271 = vpop.f32.mrf.mxu0
        %v2272 = vadd.f32 0.0, %v2271
        %v2273 = vpop.f32.mrf.mxu0
        %2274 = vmatprep.mubr.f32.mxu0 0.0
        %2275 = vmatmul.mubr.f32.gmra.mxu0 %v2062
        %v2276 = vpop.f32.mrf.mxu0
        %v2277 = vadd.f32 0.0, %v2276
        %v2278 = vpop.f32.mrf.mxu0
        %2279 = vmatprep.mubr.f32.mxu0 0.0
        %2280 = vmatmul.mubr.f32.gmra.mxu0 %v2065
        %v2281 = vpop.f32.mrf.mxu0
        %v2282 = vadd.f32 0.0, %v2281
        %v2283 = vpop.f32.mrf.mxu0
        %2284 = vmatprep.mubr.f32.mxu0 0.0
        %2285 = vmatmul.mubr.f32.gmra.mxu0 %v2068
        %v2286 = vpop.f32.mrf.mxu0
        %v2287 = vadd.f32 0.0, %v2286
        %v2288 = vpop.f32.mrf.mxu0
        %2289 = vmatprep.mubr.f32.mxu0 0.0
        %2290 = vmatmul.mubr.f32.gmra.mxu0 %v2071
        %v2291 = vpop.f32.mrf.mxu0
        %v2292 = vadd.f32 0.0, %v2291
        %v2293 = vpop.f32.mrf.mxu0
        %2294 = vmatprep.mubr.f32.mxu0 0.0
        %2295 = vmatmul.mubr.f32.gmra.mxu0 %v2074
        %v2296 = vpop.f32.mrf.mxu0
        %v2297 = vadd.f32 0.0, %v2296
        %v2298 = vpop.f32.mrf.mxu0
        %2299 = vmatprep.mubr.f32.mxu0 0.0
        %2300 = vmatmul.mubr.f32.gmra.mxu0 %v2077
        %v2301 = vpop.f32.mrf.mxu0
        %v2302 = vadd.f32 0.0, %v2301
        %v2303 = vpop.f32.mrf.mxu0
        %2304 = vmatprep.mubr.f32.mxu0 0.0
        %2305 = vmatmul.mubr.f32.gmra.mxu0 %v2080
        %v2306 = vpop.f32.mrf.mxu0
        %v2307 = vadd.f32 0.0, %v2306
        %v2308 = vpop.f32.mrf.mxu0
        %2309 = vdwg.mxu0
        %v2310 = vadd.f32 %v1920, %v2152
        %v2311 = vadd.f32 %v1921, %v2157
        %v2312 = vadd.f32 %v1922, %v2162
        %v2313 = vadd.f32 %v1923, %v2167
        %v2314 = vadd.f32 %v1924, %v2172
        %v2315 = vadd.f32 %v1925, %v2177
        %v2316 = vadd.f32 %v1926, %v2182
        %v2317 = vadd.f32 %v1927, %v2187
        %v2318 = vadd.f32 %v1928, %v2192
        %v2319 = vadd.f32 %v1929, %v2197
        %v2320 = vadd.f32 %v1930, %v2202
        %v2321 = vadd.f32 %v1931, %v2207
        %v2322 = vadd.f32 %v1932, %v2212
        %v2323 = vadd.f32 %v1933, %v2217
        %v2324 = vadd.f32 %v1934, %v2222
        %v2325 = vadd.f32 %v1935, %v2227
        %v2326 = vadd.f32 %v1936, %v2232
        %v2327 = vadd.f32 %v1937, %v2237
        %v2328 = vadd.f32 %v1938, %v2242
        %v2329 = vadd.f32 %v1939, %v2247
        %v2330 = vadd.f32 %v1940, %v2252
        %v2331 = vadd.f32 %v1941, %v2257
        %v2332 = vadd.f32 %v1942, %v2262
        %v2333 = vadd.f32 %v1943, %v2267
        %v2334 = vadd.f32 %v1944, %v2272
        %v2335 = vadd.f32 %v1945, %v2277
        %v2336 = vadd.f32 %v1946, %v2282
        %v2337 = vadd.f32 %v1947, %v2287
        %v2338 = vadd.f32 %v1948, %v2292
        %v2339 = vadd.f32 %v1949, %v2297
        %v2340 = vadd.f32 %v1950, %v2302
        %v2341 = vadd.f32 %v1951, %v2307
        %v2342 = vld [vmem:[%s423 + $0x2] sm:$0xff]
        %v2343 = vld [vmem:[%s423 + $0xa] sm:$0xff]
        %v2344 = vld [vmem:[%s423 + $0x1a] sm:$0xff]
        %v2345 = vld [vmem:[%s423 + $0x22] sm:$0xff]
        %v2346 = vld [vmem:[%s423 + $0x32] sm:$0xff]
        %v2347 = vld [vmem:[%s423 + $0x3a] sm:$0xff]
        %v2348 = vld [vmem:[%s423 + $0x4a] sm:$0xff]
        %v2349 = vld [vmem:[%s423 + $0x52] sm:$0xff]
        %v2350 = vld [vmem:[%s423 + $0x62] sm:$0xff]
        %v2351 = vld [vmem:[%s423 + $0x6a] sm:$0xff]
        %v2352 = vld [vmem:[%s423 + $0x7a] sm:$0xff]
        %v2353 = vld [vmem:[%s423 + $0x82] sm:$0xff]
        %v2354 = vld [vmem:[%s423 + $0x92] sm:$0xff]
        %v2355 = vld [vmem:[%s423 + $0x9a] sm:$0xff]
        %v2356 = vld [vmem:[%s423 + $0xaa] sm:$0xff]
        %v2357 = vld [vmem:[%s423 + $0xb2] sm:$0xff]
        %v2358 = vld [vmem:[%s423 + $0xf2] sm:$0xff]
        %v2359 = vld [vmem:[%s423 + $0xfa] sm:$0xff]
        %v2360 = vld [vmem:[%s423 + $0x10a] sm:$0xff]
        %v2361 = vld [vmem:[%s423 + $0x112] sm:$0xff]
        %v2362 = vld [vmem:[%s423 + $0x122] sm:$0xff]
        %v2363 = vld [vmem:[%s423 + $0x12a] sm:$0xff]
        %v2364 = vld [vmem:[%s423 + $0x13a] sm:$0xff]
        %v2365 = vld [vmem:[%s423 + $0x142] sm:$0xff]
        %v2366 = vld [vmem:[%s423 + $0x152] sm:$0xff]
        %v2367 = vld [vmem:[%s423 + $0x15a] sm:$0xff]
        %v2368 = vld [vmem:[%s423 + $0x16a] sm:$0xff]
        %v2369 = vld [vmem:[%s423 + $0x172] sm:$0xff]
        %v2370 = vld [vmem:[%s423 + $0x182] sm:$0xff]
        %v2371 = vld [vmem:[%s423 + $0x18a] sm:$0xff]
        %v2372 = vld [vmem:[%s423 + $0x19a] sm:$0xff]
        %v2373 = vld [vmem:[%s423 + $0x1a2] sm:$0xff]
        %s2374 = scalar_lea.vmem %s1, 20
        %v2375 = vld [vmem:[%s2374] sm:$0xf]
        %v2377 = vsel %vm329, %v2342, 0
        %v2380 = vsel %vm329, %v2343, 0
        %v2383 = vsel %vm329, %v2344, 0
        %v2386 = vsel %vm329, %v2345, 0
        %v2389 = vsel %vm329, %v2346, 0
        %v2392 = vsel %vm329, %v2347, 0
        %v2395 = vsel %vm329, %v2348, 0
        %v2398 = vsel %vm329, %v2349, 0
        %v2401 = vsel %vm329, %v2350, 0
        %v2404 = vsel %vm329, %v2351, 0
        %v2407 = vsel %vm329, %v2352, 0
        %v2410 = vsel %vm329, %v2353, 0
        %v2413 = vsel %vm329, %v2354, 0
        %v2416 = vsel %vm329, %v2355, 0
        %v2419 = vsel %vm329, %v2356, 0
        %v2422 = vsel %vm329, %v2357, 0
        %v2425 = vsel %vm329, %v2358, 0
        %v2428 = vsel %vm329, %v2359, 0
        %v2431 = vsel %vm329, %v2360, 0
        %v2434 = vsel %vm329, %v2361, 0
        %v2437 = vsel %vm329, %v2362, 0
        %v2440 = vsel %vm329, %v2363, 0
        %v2443 = vsel %vm329, %v2364, 0
        %v2446 = vsel %vm329, %v2365, 0
        %v2449 = vsel %vm329, %v2366, 0
        %v2452 = vsel %vm329, %v2367, 0
        %v2455 = vsel %vm329, %v2368, 0
        %v2458 = vsel %vm329, %v2369, 0
        %v2461 = vsel %vm329, %v2370, 0
        %v2464 = vsel %vm329, %v2371, 0
        %v2467 = vsel %vm329, %v2372, 0
        %v2470 = vsel %vm329, %v2373, 0
        %v2473 = vsel %vm619, %v2375, 0
        %2475 = vmatprep.subr.mxu0 0.0
        %2476 = vmatpush1.msra.mxu0 0.0
        %2477 = vmatprep.subr.mxu0 0.0
        %2478 = vmatpush1.msra.mxu0 0.0
        %2479 = vmatprep.subr.mxu0 0.0
        %2480 = vmatpush1.msra.mxu0 0.0
        %2481 = vmatprep.subr.mxu0 0.0
        %2482 = vmatpush1.msra.mxu0 0.0
        %2483 = vmatprep.subr.mxu0 0.0
        %2484 = vmatpush1.msra.mxu0 0.0
        %2485 = vmatprep.subr.mxu0 0.0
        %2486 = vmatpush1.msra.mxu0 0.0
        %2487 = vmatprep.subr.mxu0 0.0
        %2488 = vmatpush1.msra.mxu0 0.0
        %2489 = vmatprep.subr.mxu0 0.0
        %2490 = vmatpush1.msra.mxu0 0.0
        %2491 = vmatprep.subr.mxu0 0.0
        %2492 = vmatpush1.msra.mxu0 0.0
        %2493 = vmatprep.subr.mxu0 0.0
        %2494 = vmatpush1.msra.mxu0 0.0
        %2495 = vmatprep.subr.mxu0 0.0
        %2496 = vmatpush1.msra.mxu0 0.0
        %2497 = vmatprep.subr.mxu0 0.0
        %2498 = vmatpush1.msra.mxu0 0.0
        %2499 = vmatprep.subr.mxu0 0.0
        %2500 = vmatpush1.msra.mxu0 0.0
        %2501 = vmatprep.subr.mxu0 0.0
        %2502 = vmatpush1.msra.mxu0 0.0
        %2503 = vmatprep.subr.mxu0 0.0
        %2504 = vmatpush1.msra.mxu0 0.0
        %2505 = vmatprep.subr.mxu0 0.0
        %2506 = vmatpush1.msra.mxu0 %v2473
        %2507 = vmatprep.subr.mxu0 0.0
        %2508 = vmatpush2.msra.mxu0 0.0
        %2509 = vmatprep.subr.mxu0 0.0
        %2510 = vmatpush2.msra.mxu0 0.0
        %2511 = vmatprep.subr.mxu0 0.0
        %2512 = vmatpush2.msra.mxu0 0.0
        %2513 = vmatprep.subr.mxu0 0.0
        %2514 = vmatpush2.msra.mxu0 0.0
        %2515 = vmatprep.subr.mxu0 0.0
        %2516 = vmatpush2.msra.mxu0 0.0
        %2517 = vmatprep.subr.mxu0 0.0
        %2518 = vmatpush2.msra.mxu0 0.0
        %2519 = vmatprep.subr.mxu0 0.0
        %2520 = vmatpush2.msra.mxu0 0.0
        %2521 = vmatprep.subr.mxu0 0.0
        %2522 = vmatpush2.msra.mxu0 0.0
        %2523 = vmatprep.subr.mxu0 0.0
        %2524 = vmatpush2.msra.mxu0 0.0
        %2525 = vmatprep.subr.mxu0 0.0
        %2526 = vmatpush2.msra.mxu0 0.0
        %2527 = vmatprep.subr.mxu0 0.0
        %2528 = vmatpush2.msra.mxu0 0.0
        %2529 = vmatprep.subr.mxu0 0.0
        %2530 = vmatpush2.msra.mxu0 0.0
        %2531 = vmatprep.subr.mxu0 0.0
        %2532 = vmatpush2.msra.mxu0 0.0
        %2533 = vmatprep.subr.mxu0 0.0
        %2534 = vmatpush2.msra.mxu0 0.0
        %2535 = vmatprep.subr.mxu0 0.0
        %2536 = vmatpush2.msra.mxu0 0.0
        %2537 = vmatprep.subr.mxu0 0.0
        %2538 = vmatpush2.msra.mxu0 0.0
        %2539 = vmatprep.mubr.f32.mxu0 0.0
        %2540 = vmatmul.mubr.f32.gmra.mxu0 %v2377
        %v2541 = vpop.f32.mrf.mxu0
        %v2542 = vadd.f32 0.0, %v2541
        %v2543 = vpop.f32.mrf.mxu0
        %2544 = vmatprep.mubr.f32.mxu0 0.0
        %2545 = vmatmul.mubr.f32.gmra.mxu0 %v2380
        %v2546 = vpop.f32.mrf.mxu0
        %v2547 = vadd.f32 0.0, %v2546
        %v2548 = vpop.f32.mrf.mxu0
        %2549 = vmatprep.mubr.f32.mxu0 0.0
        %2550 = vmatmul.mubr.f32.gmra.mxu0 %v2383
        %v2551 = vpop.f32.mrf.mxu0
        %v2552 = vadd.f32 0.0, %v2551
        %v2553 = vpop.f32.mrf.mxu0
        %2554 = vmatprep.mubr.f32.mxu0 0.0
        %2555 = vmatmul.mubr.f32.gmra.mxu0 %v2386
        %v2556 = vpop.f32.mrf.mxu0
        %v2557 = vadd.f32 0.0, %v2556
        %v2558 = vpop.f32.mrf.mxu0
        %2559 = vmatprep.mubr.f32.mxu0 0.0
        %2560 = vmatmul.mubr.f32.gmra.mxu0 %v2389
        %v2561 = vpop.f32.mrf.mxu0
        %v2562 = vadd.f32 0.0, %v2561
        %v2563 = vpop.f32.mrf.mxu0
        %2564 = vmatprep.mubr.f32.mxu0 0.0
        %2565 = vmatmul.mubr.f32.gmra.mxu0 %v2392
        %v2566 = vpop.f32.mrf.mxu0
        %v2567 = vadd.f32 0.0, %v2566
        %v2568 = vpop.f32.mrf.mxu0
        %2569 = vmatprep.mubr.f32.mxu0 0.0
        %2570 = vmatmul.mubr.f32.gmra.mxu0 %v2395
        %v2571 = vpop.f32.mrf.mxu0
        %v2572 = vadd.f32 0.0, %v2571
        %v2573 = vpop.f32.mrf.mxu0
        %2574 = vmatprep.mubr.f32.mxu0 0.0
        %2575 = vmatmul.mubr.f32.gmra.mxu0 %v2398
        %v2576 = vpop.f32.mrf.mxu0
        %v2577 = vadd.f32 0.0, %v2576
        %v2578 = vpop.f32.mrf.mxu0
        %2579 = vmatprep.mubr.f32.mxu0 0.0
        %2580 = vmatmul.mubr.f32.gmra.mxu0 %v2401
        %v2581 = vpop.f32.mrf.mxu0
        %v2582 = vadd.f32 0.0, %v2581
        %v2583 = vpop.f32.mrf.mxu0
        %2584 = vmatprep.mubr.f32.mxu0 0.0
        %2585 = vmatmul.mubr.f32.gmra.mxu0 %v2404
        %v2586 = vpop.f32.mrf.mxu0
        %v2587 = vadd.f32 0.0, %v2586
        %v2588 = vpop.f32.mrf.mxu0
        %2589 = vmatprep.mubr.f32.mxu0 0.0
        %2590 = vmatmul.mubr.f32.gmra.mxu0 %v2407
        %v2591 = vpop.f32.mrf.mxu0
        %v2592 = vadd.f32 0.0, %v2591
        %v2593 = vpop.f32.mrf.mxu0
        %2594 = vmatprep.mubr.f32.mxu0 0.0
        %2595 = vmatmul.mubr.f32.gmra.mxu0 %v2410
        %v2596 = vpop.f32.mrf.mxu0
        %v2597 = vadd.f32 0.0, %v2596
        %v2598 = vpop.f32.mrf.mxu0
        %2599 = vmatprep.mubr.f32.mxu0 0.0
        %2600 = vmatmul.mubr.f32.gmra.mxu0 %v2413
        %v2601 = vpop.f32.mrf.mxu0
        %v2602 = vadd.f32 0.0, %v2601
        %v2603 = vpop.f32.mrf.mxu0
        %2604 = vmatprep.mubr.f32.mxu0 0.0
        %2605 = vmatmul.mubr.f32.gmra.mxu0 %v2416
        %v2606 = vpop.f32.mrf.mxu0
        %v2607 = vadd.f32 0.0, %v2606
        %v2608 = vpop.f32.mrf.mxu0
        %2609 = vmatprep.mubr.f32.mxu0 0.0
        %2610 = vmatmul.mubr.f32.gmra.mxu0 %v2419
        %v2611 = vpop.f32.mrf.mxu0
        %v2612 = vadd.f32 0.0, %v2611
        %v2613 = vpop.f32.mrf.mxu0
        %2614 = vmatprep.mubr.f32.mxu0 0.0
        %2615 = vmatmul.mubr.f32.gmra.mxu0 %v2422
        %v2616 = vpop.f32.mrf.mxu0
        %v2617 = vadd.f32 0.0, %v2616
        %v2618 = vpop.f32.mrf.mxu0
        %2619 = vmatprep.mubr.f32.mxu0 0.0
        %2620 = vmatmul.mubr.f32.gmra.mxu0 %v2425
        %v2621 = vpop.f32.mrf.mxu0
        %v2622 = vadd.f32 0.0, %v2621
        %v2623 = vpop.f32.mrf.mxu0
        %2624 = vmatprep.mubr.f32.mxu0 0.0
        %2625 = vmatmul.mubr.f32.gmra.mxu0 %v2428
        %v2626 = vpop.f32.mrf.mxu0
        %v2627 = vadd.f32 0.0, %v2626
        %v2628 = vpop.f32.mrf.mxu0
        %2629 = vmatprep.mubr.f32.mxu0 0.0
        %2630 = vmatmul.mubr.f32.gmra.mxu0 %v2431
        %v2631 = vpop.f32.mrf.mxu0
        %v2632 = vadd.f32 0.0, %v2631
        %v2633 = vpop.f32.mrf.mxu0
        %2634 = vmatprep.mubr.f32.mxu0 0.0
        %2635 = vmatmul.mubr.f32.gmra.mxu0 %v2434
        %v2636 = vpop.f32.mrf.mxu0
        %v2637 = vadd.f32 0.0, %v2636
        %v2638 = vpop.f32.mrf.mxu0
        %2639 = vmatprep.mubr.f32.mxu0 0.0
        %2640 = vmatmul.mubr.f32.gmra.mxu0 %v2437
        %v2641 = vpop.f32.mrf.mxu0
        %v2642 = vadd.f32 0.0, %v2641
        %v2643 = vpop.f32.mrf.mxu0
        %2644 = vmatprep.mubr.f32.mxu0 0.0
        %2645 = vmatmul.mubr.f32.gmra.mxu0 %v2440
        %v2646 = vpop.f32.mrf.mxu0
        %v2647 = vadd.f32 0.0, %v2646
        %v2648 = vpop.f32.mrf.mxu0
        %2649 = vmatprep.mubr.f32.mxu0 0.0
        %2650 = vmatmul.mubr.f32.gmra.mxu0 %v2443
        %v2651 = vpop.f32.mrf.mxu0
        %v2652 = vadd.f32 0.0, %v2651
        %v2653 = vpop.f32.mrf.mxu0
        %2654 = vmatprep.mubr.f32.mxu0 0.0
        %2655 = vmatmul.mubr.f32.gmra.mxu0 %v2446
        %v2656 = vpop.f32.mrf.mxu0
        %v2657 = vadd.f32 0.0, %v2656
        %v2658 = vpop.f32.mrf.mxu0
        %2659 = vmatprep.mubr.f32.mxu0 0.0
        %2660 = vmatmul.mubr.f32.gmra.mxu0 %v2449
        %v2661 = vpop.f32.mrf.mxu0
        %v2662 = vadd.f32 0.0, %v2661
        %v2663 = vpop.f32.mrf.mxu0
        %2664 = vmatprep.mubr.f32.mxu0 0.0
        %2665 = vmatmul.mubr.f32.gmra.mxu0 %v2452
        %v2666 = vpop.f32.mrf.mxu0
        %v2667 = vadd.f32 0.0, %v2666
        %v2668 = vpop.f32.mrf.mxu0
        %2669 = vmatprep.mubr.f32.mxu0 0.0
        %2670 = vmatmul.mubr.f32.gmra.mxu0 %v2455
        %v2671 = vpop.f32.mrf.mxu0
        %v2672 = vadd.f32 0.0, %v2671
        %v2673 = vpop.f32.mrf.mxu0
        %2674 = vmatprep.mubr.f32.mxu0 0.0
        %2675 = vmatmul.mubr.f32.gmra.mxu0 %v2458
        %v2676 = vpop.f32.mrf.mxu0
        %v2677 = vadd.f32 0.0, %v2676
        %v2678 = vpop.f32.mrf.mxu0
        %2679 = vmatprep.mubr.f32.mxu0 0.0
        %2680 = vmatmul.mubr.f32.gmra.mxu0 %v2461
        %v2681 = vpop.f32.mrf.mxu0
        %v2682 = vadd.f32 0.0, %v2681
        %v2683 = vpop.f32.mrf.mxu0
        %2684 = vmatprep.mubr.f32.mxu0 0.0
        %2685 = vmatmul.mubr.f32.gmra.mxu0 %v2464
        %v2686 = vpop.f32.mrf.mxu0
        %v2687 = vadd.f32 0.0, %v2686
        %v2688 = vpop.f32.mrf.mxu0
        %2689 = vmatprep.mubr.f32.mxu0 0.0
        %2690 = vmatmul.mubr.f32.gmra.mxu0 %v2467
        %v2691 = vpop.f32.mrf.mxu0
        %v2692 = vadd.f32 0.0, %v2691
        %v2693 = vpop.f32.mrf.mxu0
        %2694 = vmatprep.mubr.f32.mxu0 0.0
        %2695 = vmatmul.mubr.f32.gmra.mxu0 %v2470
        %v2696 = vpop.f32.mrf.mxu0
        %v2697 = vadd.f32 0.0, %v2696
        %v2698 = vpop.f32.mrf.mxu0
        %2699 = vdwg.mxu0
        %v2700 = vadd.f32 %v2310, %v2542
        %v2701 = vadd.f32 %v2311, %v2547
        %v2702 = vadd.f32 %v2312, %v2552
        %v2703 = vadd.f32 %v2313, %v2557
        %v2704 = vadd.f32 %v2314, %v2562
        %v2705 = vadd.f32 %v2315, %v2567
        %v2706 = vadd.f32 %v2316, %v2572
        %v2707 = vadd.f32 %v2317, %v2577
        %v2708 = vadd.f32 %v2318, %v2582
        %v2709 = vadd.f32 %v2319, %v2587
        %v2710 = vadd.f32 %v2320, %v2592
        %v2711 = vadd.f32 %v2321, %v2597
        %v2712 = vadd.f32 %v2322, %v2602
        %v2713 = vadd.f32 %v2323, %v2607
        %v2714 = vadd.f32 %v2324, %v2612
        %v2715 = vadd.f32 %v2325, %v2617
        %v2716 = vadd.f32 %v2326, %v2622
        %v2717 = vadd.f32 %v2327, %v2627
        %v2718 = vadd.f32 %v2328, %v2632
        %v2719 = vadd.f32 %v2329, %v2637
        %v2720 = vadd.f32 %v2330, %v2642
        %v2721 = vadd.f32 %v2331, %v2647
        %v2722 = vadd.f32 %v2332, %v2652
        %v2723 = vadd.f32 %v2333, %v2657
        %v2724 = vadd.f32 %v2334, %v2662
        %v2725 = vadd.f32 %v2335, %v2667
        %v2726 = vadd.f32 %v2336, %v2672
        %v2727 = vadd.f32 %v2337, %v2677
        %v2728 = vadd.f32 %v2338, %v2682
        %v2729 = vadd.f32 %v2339, %v2687
        %v2730 = vadd.f32 %v2340, %v2692
        %v2731 = vadd.f32 %v2341, %v2697
        %s2732 = scalar_lea.vmem [#allocation2], 48
        %v2733 = vld [vmem:[%s2732] sm:$0xff]
        %v2734 = vld [vmem:[%s2732 + $0x8] sm:$0xff]
        %v2735 = vld [vmem:[%s2732 + $0x18] sm:$0xff]
        %v2736 = vld [vmem:[%s2732 + $0x20] sm:$0xff]
        %v2737 = vld [vmem:[%s2732 + $0x30] sm:$0xff]
        %v2738 = vld [vmem:[%s2732 + $0x38] sm:$0xff]
        %v2739 = vld [vmem:[%s2732 + $0x48] sm:$0xff]
        %v2740 = vld [vmem:[%s2732 + $0x50] sm:$0xff]
        %v2741 = vld [vmem:[%s2732 + $0x60] sm:$0xff]
        %v2742 = vld [vmem:[%s2732 + $0x68] sm:$0xff]
        %v2743 = vld [vmem:[%s2732 + $0x78] sm:$0xff]
        %v2744 = vld [vmem:[%s2732 + $0x80] sm:$0xff]
        %v2745 = vld [vmem:[%s2732 + $0x90] sm:$0xff]
        %v2746 = vld [vmem:[%s2732 + $0x98] sm:$0xff]
        %v2747 = vld [vmem:[%s2732 + $0xa8] sm:$0xff]
        %v2748 = vld [vmem:[%s2732 + $0xb0] sm:$0xff]
        %v2749 = vld [vmem:[%s2732 + $0xf0] sm:$0xff]
        %v2750 = vld [vmem:[%s2732 + $0xf8] sm:$0xff]
        %v2751 = vld [vmem:[%s2732 + $0x108] sm:$0xff]
        %v2752 = vld [vmem:[%s2732 + $0x110] sm:$0xff]
        %v2753 = vld [vmem:[%s2732 + $0x120] sm:$0xff]
        %v2754 = vld [vmem:[%s2732 + $0x128] sm:$0xff]
        %v2755 = vld [vmem:[%s2732 + $0x138] sm:$0xff]
        %v2756 = vld [vmem:[%s2732 + $0x140] sm:$0xff]
        %v2757 = vld [vmem:[%s2732 + $0x150] sm:$0xff]
        %v2758 = vld [vmem:[%s2732 + $0x158] sm:$0xff]
        %v2759 = vld [vmem:[%s2732 + $0x168] sm:$0xff]
        %v2760 = vld [vmem:[%s2732 + $0x170] sm:$0xff]
        %v2761 = vld [vmem:[%s2732 + $0x180] sm:$0xff]
        %v2762 = vld [vmem:[%s2732 + $0x188] sm:$0xff]
        %v2763 = vld [vmem:[%s2732 + $0x198] sm:$0xff]
        %v2764 = vld [vmem:[%s2732 + $0x1a0] sm:$0xff]
        %s2765 = scalar_lea.vmem %s1, 24
        %v2766 = vld [vmem:[%s2765] sm:$0xf]
        %v2768 = vsel %vm329, %v2733, 0
        %v2771 = vsel %vm329, %v2734, 0
        %v2774 = vsel %vm329, %v2735, 0
        %v2777 = vsel %vm329, %v2736, 0
        %v2780 = vsel %vm329, %v2737, 0
        %v2783 = vsel %vm329, %v2738, 0
        %v2786 = vsel %vm329, %v2739, 0
        %v2789 = vsel %vm329, %v2740, 0
        %v2792 = vsel %vm329, %v2741, 0
        %v2795 = vsel %vm329, %v2742, 0
        %v2798 = vsel %vm329, %v2743, 0
        %v2801 = vsel %vm329, %v2744, 0
        %v2804 = vsel %vm329, %v2745, 0
        %v2807 = vsel %vm329, %v2746, 0
        %v2810 = vsel %vm329, %v2747, 0
        %v2813 = vsel %vm329, %v2748, 0
        %v2816 = vsel %vm329, %v2749, 0
        %v2819 = vsel %vm329, %v2750, 0
        %v2822 = vsel %vm329, %v2751, 0
        %v2825 = vsel %vm329, %v2752, 0
        %v2828 = vsel %vm329, %v2753, 0
        %v2831 = vsel %vm329, %v2754, 0
        %v2834 = vsel %vm329, %v2755, 0
        %v2837 = vsel %vm329, %v2756, 0
        %v2840 = vsel %vm329, %v2757, 0
        %v2843 = vsel %vm329, %v2758, 0
        %v2846 = vsel %vm329, %v2759, 0
        %v2849 = vsel %vm329, %v2760, 0
        %v2852 = vsel %vm329, %v2761, 0
        %v2855 = vsel %vm329, %v2762, 0
        %v2858 = vsel %vm329, %v2763, 0
        %v2861 = vsel %vm329, %v2764, 0
        %v2864 = vsel %vm619, %v2766, 0
        %2866 = vmatprep.subr.mxu0 0.0
        %2867 = vmatpush1.msra.mxu0 0.0
        %2868 = vmatprep.subr.mxu0 0.0
        %2869 = vmatpush1.msra.mxu0 0.0
        %2870 = vmatprep.subr.mxu0 0.0
        %2871 = vmatpush1.msra.mxu0 0.0
        %2872 = vmatprep.subr.mxu0 0.0
        %2873 = vmatpush1.msra.mxu0 0.0
        %2874 = vmatprep.subr.mxu0 0.0
        %2875 = vmatpush1.msra.mxu0 0.0
        %2876 = vmatprep.subr.mxu0 0.0
        %2877 = vmatpush1.msra.mxu0 0.0
        %2878 = vmatprep.subr.mxu0 0.0
        %2879 = vmatpush1.msra.mxu0 0.0
        %2880 = vmatprep.subr.mxu0 0.0
        %2881 = vmatpush1.msra.mxu0 0.0
        %2882 = vmatprep.subr.mxu0 0.0
        %2883 = vmatpush1.msra.mxu0 0.0
        %2884 = vmatprep.subr.mxu0 0.0
        %2885 = vmatpush1.msra.mxu0 0.0
        %2886 = vmatprep.subr.mxu0 0.0
        %2887 = vmatpush1.msra.mxu0 0.0
        %2888 = vmatprep.subr.mxu0 0.0
        %2889 = vmatpush1.msra.mxu0 0.0
        %2890 = vmatprep.subr.mxu0 0.0
        %2891 = vmatpush1.msra.mxu0 0.0
        %2892 = vmatprep.subr.mxu0 0.0
        %2893 = vmatpush1.msra.mxu0 0.0
        %2894 = vmatprep.subr.mxu0 0.0
        %2895 = vmatpush1.msra.mxu0 0.0
        %2896 = vmatprep.subr.mxu0 0.0
        %2897 = vmatpush1.msra.mxu0 %v2864
        %2898 = vmatprep.subr.mxu0 0.0
        %2899 = vmatpush2.msra.mxu0 0.0
        %2900 = vmatprep.subr.mxu0 0.0
        %2901 = vmatpush2.msra.mxu0 0.0
        %2902 = vmatprep.subr.mxu0 0.0
        %2903 = vmatpush2.msra.mxu0 0.0
        %2904 = vmatprep.subr.mxu0 0.0
        %2905 = vmatpush2.msra.mxu0 0.0
        %2906 = vmatprep.subr.mxu0 0.0
        %2907 = vmatpush2.msra.mxu0 0.0
        %2908 = vmatprep.subr.mxu0 0.0
        %2909 = vmatpush2.msra.mxu0 0.0
        %2910 = vmatprep.subr.mxu0 0.0
        %2911 = vmatpush2.msra.mxu0 0.0
        %2912 = vmatprep.subr.mxu0 0.0
        %2913 = vmatpush2.msra.mxu0 0.0
        %2914 = vmatprep.subr.mxu0 0.0
        %2915 = vmatpush2.msra.mxu0 0.0
        %2916 = vmatprep.subr.mxu0 0.0
        %2917 = vmatpush2.msra.mxu0 0.0
        %2918 = vmatprep.subr.mxu0 0.0
        %2919 = vmatpush2.msra.mxu0 0.0
        %2920 = vmatprep.subr.mxu0 0.0
        %2921 = vmatpush2.msra.mxu0 0.0
        %2922 = vmatprep.subr.mxu0 0.0
        %2923 = vmatpush2.msra.mxu0 0.0
        %2924 = vmatprep.subr.mxu0 0.0
        %2925 = vmatpush2.msra.mxu0 0.0
        %2926 = vmatprep.subr.mxu0 0.0
        %2927 = vmatpush2.msra.mxu0 0.0
        %2928 = vmatprep.subr.mxu0 0.0
        %2929 = vmatpush2.msra.mxu0 0.0
        %2930 = vmatprep.mubr.f32.mxu0 0.0
        %2931 = vmatmul.mubr.f32.gmra.mxu0 %v2768
        %v2932 = vpop.f32.mrf.mxu0
        %v2933 = vadd.f32 0.0, %v2932
        %v2934 = vpop.f32.mrf.mxu0
        %2935 = vmatprep.mubr.f32.mxu0 0.0
        %2936 = vmatmul.mubr.f32.gmra.mxu0 %v2771
        %v2937 = vpop.f32.mrf.mxu0
        %v2938 = vadd.f32 0.0, %v2937
        %v2939 = vpop.f32.mrf.mxu0
        %2940 = vmatprep.mubr.f32.mxu0 0.0
        %2941 = vmatmul.mubr.f32.gmra.mxu0 %v2774
        %v2942 = vpop.f32.mrf.mxu0
        %v2943 = vadd.f32 0.0, %v2942
        %v2944 = vpop.f32.mrf.mxu0
        %2945 = vmatprep.mubr.f32.mxu0 0.0
        %2946 = vmatmul.mubr.f32.gmra.mxu0 %v2777
        %v2947 = vpop.f32.mrf.mxu0
        %v2948 = vadd.f32 0.0, %v2947
        %v2949 = vpop.f32.mrf.mxu0
        %2950 = vmatprep.mubr.f32.mxu0 0.0
        %2951 = vmatmul.mubr.f32.gmra.mxu0 %v2780
        %v2952 = vpop.f32.mrf.mxu0
        %v2953 = vadd.f32 0.0, %v2952
        %v2954 = vpop.f32.mrf.mxu0
        %2955 = vmatprep.mubr.f32.mxu0 0.0
        %2956 = vmatmul.mubr.f32.gmra.mxu0 %v2783
        %v2957 = vpop.f32.mrf.mxu0
        %v2958 = vadd.f32 0.0, %v2957
        %v2959 = vpop.f32.mrf.mxu0
        %2960 = vmatprep.mubr.f32.mxu0 0.0
        %2961 = vmatmul.mubr.f32.gmra.mxu0 %v2786
        %v2962 = vpop.f32.mrf.mxu0
        %v2963 = vadd.f32 0.0, %v2962
        %v2964 = vpop.f32.mrf.mxu0
        %2965 = vmatprep.mubr.f32.mxu0 0.0
        %2966 = vmatmul.mubr.f32.gmra.mxu0 %v2789
        %v2967 = vpop.f32.mrf.mxu0
        %v2968 = vadd.f32 0.0, %v2967
        %v2969 = vpop.f32.mrf.mxu0
        %2970 = vmatprep.mubr.f32.mxu0 0.0
        %2971 = vmatmul.mubr.f32.gmra.mxu0 %v2792
        %v2972 = vpop.f32.mrf.mxu0
        %v2973 = vadd.f32 0.0, %v2972
        %v2974 = vpop.f32.mrf.mxu0
        %2975 = vmatprep.mubr.f32.mxu0 0.0
        %2976 = vmatmul.mubr.f32.gmra.mxu0 %v2795
        %v2977 = vpop.f32.mrf.mxu0
        %v2978 = vadd.f32 0.0, %v2977
        %v2979 = vpop.f32.mrf.mxu0
        %2980 = vmatprep.mubr.f32.mxu0 0.0
        %2981 = vmatmul.mubr.f32.gmra.mxu0 %v2798
        %v2982 = vpop.f32.mrf.mxu0
        %v2983 = vadd.f32 0.0, %v2982
        %v2984 = vpop.f32.mrf.mxu0
        %2985 = vmatprep.mubr.f32.mxu0 0.0
        %2986 = vmatmul.mubr.f32.gmra.mxu0 %v2801
        %v2987 = vpop.f32.mrf.mxu0
        %v2988 = vadd.f32 0.0, %v2987
        %v2989 = vpop.f32.mrf.mxu0
        %2990 = vmatprep.mubr.f32.mxu0 0.0
        %2991 = vmatmul.mubr.f32.gmra.mxu0 %v2804
        %v2992 = vpop.f32.mrf.mxu0
        %v2993 = vadd.f32 0.0, %v2992
        %v2994 = vpop.f32.mrf.mxu0
        %2995 = vmatprep.mubr.f32.mxu0 0.0
        %2996 = vmatmul.mubr.f32.gmra.mxu0 %v2807
        %v2997 = vpop.f32.mrf.mxu0
        %v2998 = vadd.f32 0.0, %v2997
        %v2999 = vpop.f32.mrf.mxu0
        %3000 = vmatprep.mubr.f32.mxu0 0.0
        %3001 = vmatmul.mubr.f32.gmra.mxu0 %v2810
        %v3002 = vpop.f32.mrf.mxu0
        %v3003 = vadd.f32 0.0, %v3002
        %v3004 = vpop.f32.mrf.mxu0
        %3005 = vmatprep.mubr.f32.mxu0 0.0
        %3006 = vmatmul.mubr.f32.gmra.mxu0 %v2813
        %v3007 = vpop.f32.mrf.mxu0
        %v3008 = vadd.f32 0.0, %v3007
        %v3009 = vpop.f32.mrf.mxu0
        %3010 = vmatprep.mubr.f32.mxu0 0.0
        %3011 = vmatmul.mubr.f32.gmra.mxu0 %v2816
        %v3012 = vpop.f32.mrf.mxu0
        %v3013 = vadd.f32 0.0, %v3012
        %v3014 = vpop.f32.mrf.mxu0
        %3015 = vmatprep.mubr.f32.mxu0 0.0
        %3016 = vmatmul.mubr.f32.gmra.mxu0 %v2819
        %v3017 = vpop.f32.mrf.mxu0
        %v3018 = vadd.f32 0.0, %v3017
        %v3019 = vpop.f32.mrf.mxu0
        %3020 = vmatprep.mubr.f32.mxu0 0.0
        %3021 = vmatmul.mubr.f32.gmra.mxu0 %v2822
        %v3022 = vpop.f32.mrf.mxu0
        %v3023 = vadd.f32 0.0, %v3022
        %v3024 = vpop.f32.mrf.mxu0
        %3025 = vmatprep.mubr.f32.mxu0 0.0
        %3026 = vmatmul.mubr.f32.gmra.mxu0 %v2825
        %v3027 = vpop.f32.mrf.mxu0
        %v3028 = vadd.f32 0.0, %v3027
        %v3029 = vpop.f32.mrf.mxu0
        %3030 = vmatprep.mubr.f32.mxu0 0.0
        %3031 = vmatmul.mubr.f32.gmra.mxu0 %v2828
        %v3032 = vpop.f32.mrf.mxu0
        %v3033 = vadd.f32 0.0, %v3032
        %v3034 = vpop.f32.mrf.mxu0
        %3035 = vmatprep.mubr.f32.mxu0 0.0
        %3036 = vmatmul.mubr.f32.gmra.mxu0 %v2831
        %v3037 = vpop.f32.mrf.mxu0
        %v3038 = vadd.f32 0.0, %v3037
        %v3039 = vpop.f32.mrf.mxu0
        %3040 = vmatprep.mubr.f32.mxu0 0.0
        %3041 = vmatmul.mubr.f32.gmra.mxu0 %v2834
        %v3042 = vpop.f32.mrf.mxu0
        %v3043 = vadd.f32 0.0, %v3042
        %v3044 = vpop.f32.mrf.mxu0
        %3045 = vmatprep.mubr.f32.mxu0 0.0
        %3046 = vmatmul.mubr.f32.gmra.mxu0 %v2837
        %v3047 = vpop.f32.mrf.mxu0
        %v3048 = vadd.f32 0.0, %v3047
        %v3049 = vpop.f32.mrf.mxu0
        %3050 = vmatprep.mubr.f32.mxu0 0.0
        %3051 = vmatmul.mubr.f32.gmra.mxu0 %v2840
        %v3052 = vpop.f32.mrf.mxu0
        %v3053 = vadd.f32 0.0, %v3052
        %v3054 = vpop.f32.mrf.mxu0
        %3055 = vmatprep.mubr.f32.mxu0 0.0
        %3056 = vmatmul.mubr.f32.gmra.mxu0 %v2843
        %v3057 = vpop.f32.mrf.mxu0
        %v3058 = vadd.f32 0.0, %v3057
        %v3059 = vpop.f32.mrf.mxu0
        %3060 = vmatprep.mubr.f32.mxu0 0.0
        %3061 = vmatmul.mubr.f32.gmra.mxu0 %v2846
        %v3062 = vpop.f32.mrf.mxu0
        %v3063 = vadd.f32 0.0, %v3062
        %v3064 = vpop.f32.mrf.mxu0
        %3065 = vmatprep.mubr.f32.mxu0 0.0
        %3066 = vmatmul.mubr.f32.gmra.mxu0 %v2849
        %v3067 = vpop.f32.mrf.mxu0
        %v3068 = vadd.f32 0.0, %v3067
        %v3069 = vpop.f32.mrf.mxu0
        %3070 = vmatprep.mubr.f32.mxu0 0.0
        %3071 = vmatmul.mubr.f32.gmra.mxu0 %v2852
        %v3072 = vpop.f32.mrf.mxu0
        %v3073 = vadd.f32 0.0, %v3072
        %v3074 = vpop.f32.mrf.mxu0
        %3075 = vmatprep.mubr.f32.mxu0 0.0
        %3076 = vmatmul.mubr.f32.gmra.mxu0 %v2855
        %v3077 = vpop.f32.mrf.mxu0
        %v3078 = vadd.f32 0.0, %v3077
        %v3079 = vpop.f32.mrf.mxu0
        %3080 = vmatprep.mubr.f32.mxu0 0.0
        %3081 = vmatmul.mubr.f32.gmra.mxu0 %v2858
        %v3082 = vpop.f32.mrf.mxu0
        %v3083 = vadd.f32 0.0, %v3082
        %v3084 = vpop.f32.mrf.mxu0
        %3085 = vmatprep.mubr.f32.mxu0 0.0
        %3086 = vmatmul.mubr.f32.gmra.mxu0 %v2861
        %v3087 = vpop.f32.mrf.mxu0
        %v3088 = vadd.f32 0.0, %v3087
        %v3089 = vpop.f32.mrf.mxu0
        %3090 = vdwg.mxu0
        %v3091 = vadd.f32 %v2700, %v2933
        %v3092 = vadd.f32 %v2701, %v2938
        %v3093 = vadd.f32 %v2702, %v2943
        %v3094 = vadd.f32 %v2703, %v2948
        %v3095 = vadd.f32 %v2704, %v2953
        %v3096 = vadd.f32 %v2705, %v2958
        %v3097 = vadd.f32 %v2706, %v2963
        %v3098 = vadd.f32 %v2707, %v2968
        %v3099 = vadd.f32 %v2708, %v2973
        %v3100 = vadd.f32 %v2709, %v2978
        %v3101 = vadd.f32 %v2710, %v2983
        %v3102 = vadd.f32 %v2711, %v2988
        %v3103 = vadd.f32 %v2712, %v2993
        %v3104 = vadd.f32 %v2713, %v2998
        %v3105 = vadd.f32 %v2714, %v3003
        %v3106 = vadd.f32 %v2715, %v3008
        %v3107 = vadd.f32 %v2716, %v3013
        %v3108 = vadd.f32 %v2717, %v3018
        %v3109 = vadd.f32 %v2718, %v3023
        %v3110 = vadd.f32 %v2719, %v3028
        %v3111 = vadd.f32 %v2720, %v3033
        %v3112 = vadd.f32 %v2721, %v3038
        %v3113 = vadd.f32 %v2722, %v3043
        %v3114 = vadd.f32 %v2723, %v3048
        %v3115 = vadd.f32 %v2724, %v3053
        %v3116 = vadd.f32 %v2725, %v3058
        %v3117 = vadd.f32 %v2726, %v3063
        %v3118 = vadd.f32 %v2727, %v3068
        %v3119 = vadd.f32 %v2728, %v3073
        %v3120 = vadd.f32 %v2729, %v3078
        %v3121 = vadd.f32 %v2730, %v3083
        %v3122 = vadd.f32 %v2731, %v3088
        %v3123 = vld [vmem:[%s2732 + $0x1] sm:$0xff]
        %v3124 = vld [vmem:[%s2732 + $0x9] sm:$0xff]
        %v3125 = vld [vmem:[%s2732 + $0x19] sm:$0xff]
        %v3126 = vld [vmem:[%s2732 + $0x21] sm:$0xff]
        %v3127 = vld [vmem:[%s2732 + $0x31] sm:$0xff]
        %v3128 = vld [vmem:[%s2732 + $0x39] sm:$0xff]
        %v3129 = vld [vmem:[%s2732 + $0x49] sm:$0xff]
        %v3130 = vld [vmem:[%s2732 + $0x51] sm:$0xff]
        %v3131 = vld [vmem:[%s2732 + $0x61] sm:$0xff]
        %v3132 = vld [vmem:[%s2732 + $0x69] sm:$0xff]
        %v3133 = vld [vmem:[%s2732 + $0x79] sm:$0xff]
        %v3134 = vld [vmem:[%s2732 + $0x81] sm:$0xff]
        %v3135 = vld [vmem:[%s2732 + $0x91] sm:$0xff]
        %v3136 = vld [vmem:[%s2732 + $0x99] sm:$0xff]
        %v3137 = vld [vmem:[%s2732 + $0xa9] sm:$0xff]
        %v3138 = vld [vmem:[%s2732 + $0xb1] sm:$0xff]
        %v3139 = vld [vmem:[%s2732 + $0xf1] sm:$0xff]
        %v3140 = vld [vmem:[%s2732 + $0xf9] sm:$0xff]
        %v3141 = vld [vmem:[%s2732 + $0x109] sm:$0xff]
        %v3142 = vld [vmem:[%s2732 + $0x111] sm:$0xff]
        %v3143 = vld [vmem:[%s2732 + $0x121] sm:$0xff]
        %v3144 = vld [vmem:[%s2732 + $0x129] sm:$0xff]
        %v3145 = vld [vmem:[%s2732 + $0x139] sm:$0xff]
        %v3146 = vld [vmem:[%s2732 + $0x141] sm:$0xff]
        %v3147 = vld [vmem:[%s2732 + $0x151] sm:$0xff]
        %v3148 = vld [vmem:[%s2732 + $0x159] sm:$0xff]
        %v3149 = vld [vmem:[%s2732 + $0x169] sm:$0xff]
        %v3150 = vld [vmem:[%s2732 + $0x171] sm:$0xff]
        %v3151 = vld [vmem:[%s2732 + $0x181] sm:$0xff]
        %v3152 = vld [vmem:[%s2732 + $0x189] sm:$0xff]
        %v3153 = vld [vmem:[%s2732 + $0x199] sm:$0xff]
        %v3154 = vld [vmem:[%s2732 + $0x1a1] sm:$0xff]
        %s3155 = scalar_lea.vmem %s1, 28
        %v3156 = vld [vmem:[%s3155] sm:$0xf]
        %v3158 = vsel %vm329, %v3123, 0
        %v3161 = vsel %vm329, %v3124, 0
        %v3164 = vsel %vm329, %v3125, 0
        %v3167 = vsel %vm329, %v3126, 0
        %v3170 = vsel %vm329, %v3127, 0
        %v3173 = vsel %vm329, %v3128, 0
        %v3176 = vsel %vm329, %v3129, 0
        %v3179 = vsel %vm329, %v3130, 0
        %v3182 = vsel %vm329, %v3131, 0
        %v3185 = vsel %vm329, %v3132, 0
        %v3188 = vsel %vm329, %v3133, 0
        %v3191 = vsel %vm329, %v3134, 0
        %v3194 = vsel %vm329, %v3135, 0
        %v3197 = vsel %vm329, %v3136, 0
        %v3200 = vsel %vm329, %v3137, 0
        %v3203 = vsel %vm329, %v3138, 0
        %v3206 = vsel %vm329, %v3139, 0
        %v3209 = vsel %vm329, %v3140, 0
        %v3212 = vsel %vm329, %v3141, 0
        %v3215 = vsel %vm329, %v3142, 0
        %v3218 = vsel %vm329, %v3143, 0
        %v3221 = vsel %vm329, %v3144, 0
        %v3224 = vsel %vm329, %v3145, 0
        %v3227 = vsel %vm329, %v3146, 0
        %v3230 = vsel %vm329, %v3147, 0
        %v3233 = vsel %vm329, %v3148, 0
        %v3236 = vsel %vm329, %v3149, 0
        %v3239 = vsel %vm329, %v3150, 0
        %v3242 = vsel %vm329, %v3151, 0
        %v3245 = vsel %vm329, %v3152, 0
        %v3248 = vsel %vm329, %v3153, 0
        %v3251 = vsel %vm329, %v3154, 0
        %v3254 = vsel %vm619, %v3156, 0
        %3256 = vmatprep.subr.mxu0 0.0
        %3257 = vmatpush1.msra.mxu0 0.0
        %3258 = vmatprep.subr.mxu0 0.0
        %3259 = vmatpush1.msra.mxu0 0.0
        %3260 = vmatprep.subr.mxu0 0.0
        %3261 = vmatpush1.msra.mxu0 0.0
        %3262 = vmatprep.subr.mxu0 0.0
        %3263 = vmatpush1.msra.mxu0 0.0
        %3264 = vmatprep.subr.mxu0 0.0
        %3265 = vmatpush1.msra.mxu0 0.0
        %3266 = vmatprep.subr.mxu0 0.0
        %3267 = vmatpush1.msra.mxu0 0.0
        %3268 = vmatprep.subr.mxu0 0.0
        %3269 = vmatpush1.msra.mxu0 0.0
        %3270 = vmatprep.subr.mxu0 0.0
        %3271 = vmatpush1.msra.mxu0 0.0
        %3272 = vmatprep.subr.mxu0 0.0
        %3273 = vmatpush1.msra.mxu0 0.0
        %3274 = vmatprep.subr.mxu0 0.0
        %3275 = vmatpush1.msra.mxu0 0.0
        %3276 = vmatprep.subr.mxu0 0.0
        %3277 = vmatpush1.msra.mxu0 0.0
        %3278 = vmatprep.subr.mxu0 0.0
        %3279 = vmatpush1.msra.mxu0 0.0
        %3280 = vmatprep.subr.mxu0 0.0
        %3281 = vmatpush1.msra.mxu0 0.0
        %3282 = vmatprep.subr.mxu0 0.0
        %3283 = vmatpush1.msra.mxu0 0.0
        %3284 = vmatprep.subr.mxu0 0.0
        %3285 = vmatpush1.msra.mxu0 0.0
        %3286 = vmatprep.subr.mxu0 0.0
        %3287 = vmatpush1.msra.mxu0 %v3254
        %3288 = vmatprep.subr.mxu0 0.0
        %3289 = vmatpush2.msra.mxu0 0.0
        %3290 = vmatprep.subr.mxu0 0.0
        %3291 = vmatpush2.msra.mxu0 0.0
        %3292 = vmatprep.subr.mxu0 0.0
        %3293 = vmatpush2.msra.mxu0 0.0
        %3294 = vmatprep.subr.mxu0 0.0
        %3295 = vmatpush2.msra.mxu0 0.0
        %3296 = vmatprep.subr.mxu0 0.0
        %3297 = vmatpush2.msra.mxu0 0.0
        %3298 = vmatprep.subr.mxu0 0.0
        %3299 = vmatpush2.msra.mxu0 0.0
        %3300 = vmatprep.subr.mxu0 0.0
        %3301 = vmatpush2.msra.mxu0 0.0
        %3302 = vmatprep.subr.mxu0 0.0
        %3303 = vmatpush2.msra.mxu0 0.0
        %3304 = vmatprep.subr.mxu0 0.0
        %3305 = vmatpush2.msra.mxu0 0.0
        %3306 = vmatprep.subr.mxu0 0.0
        %3307 = vmatpush2.msra.mxu0 0.0
        %3308 = vmatprep.subr.mxu0 0.0
        %3309 = vmatpush2.msra.mxu0 0.0
        %3310 = vmatprep.subr.mxu0 0.0
        %3311 = vmatpush2.msra.mxu0 0.0
        %3312 = vmatprep.subr.mxu0 0.0
        %3313 = vmatpush2.msra.mxu0 0.0
        %3314 = vmatprep.subr.mxu0 0.0
        %3315 = vmatpush2.msra.mxu0 0.0
        %3316 = vmatprep.subr.mxu0 0.0
        %3317 = vmatpush2.msra.mxu0 0.0
        %3318 = vmatprep.subr.mxu0 0.0
        %3319 = vmatpush2.msra.mxu0 0.0
        %3320 = vmatprep.mubr.f32.mxu0 0.0
        %3321 = vmatmul.mubr.f32.gmra.mxu0 %v3158
        %v3322 = vpop.f32.mrf.mxu0
        %v3323 = vadd.f32 0.0, %v3322
        %v3324 = vpop.f32.mrf.mxu0
        %3325 = vmatprep.mubr.f32.mxu0 0.0
        %3326 = vmatmul.mubr.f32.gmra.mxu0 %v3161
        %v3327 = vpop.f32.mrf.mxu0
        %v3328 = vadd.f32 0.0, %v3327
        %v3329 = vpop.f32.mrf.mxu0
        %3330 = vmatprep.mubr.f32.mxu0 0.0
        %3331 = vmatmul.mubr.f32.gmra.mxu0 %v3164
        %v3332 = vpop.f32.mrf.mxu0
        %v3333 = vadd.f32 0.0, %v3332
        %v3334 = vpop.f32.mrf.mxu0
        %3335 = vmatprep.mubr.f32.mxu0 0.0
        %3336 = vmatmul.mubr.f32.gmra.mxu0 %v3167
        %v3337 = vpop.f32.mrf.mxu0
        %v3338 = vadd.f32 0.0, %v3337
        %v3339 = vpop.f32.mrf.mxu0
        %3340 = vmatprep.mubr.f32.mxu0 0.0
        %3341 = vmatmul.mubr.f32.gmra.mxu0 %v3170
        %v3342 = vpop.f32.mrf.mxu0
        %v3343 = vadd.f32 0.0, %v3342
        %v3344 = vpop.f32.mrf.mxu0
        %3345 = vmatprep.mubr.f32.mxu0 0.0
        %3346 = vmatmul.mubr.f32.gmra.mxu0 %v3173
        %v3347 = vpop.f32.mrf.mxu0
        %v3348 = vadd.f32 0.0, %v3347
        %v3349 = vpop.f32.mrf.mxu0
        %3350 = vmatprep.mubr.f32.mxu0 0.0
        %3351 = vmatmul.mubr.f32.gmra.mxu0 %v3176
        %v3352 = vpop.f32.mrf.mxu0
        %v3353 = vadd.f32 0.0, %v3352
        %v3354 = vpop.f32.mrf.mxu0
        %3355 = vmatprep.mubr.f32.mxu0 0.0
        %3356 = vmatmul.mubr.f32.gmra.mxu0 %v3179
        %v3357 = vpop.f32.mrf.mxu0
        %v3358 = vadd.f32 0.0, %v3357
        %v3359 = vpop.f32.mrf.mxu0
        %3360 = vmatprep.mubr.f32.mxu0 0.0
        %3361 = vmatmul.mubr.f32.gmra.mxu0 %v3182
        %v3362 = vpop.f32.mrf.mxu0
        %v3363 = vadd.f32 0.0, %v3362
        %v3364 = vpop.f32.mrf.mxu0
        %3365 = vmatprep.mubr.f32.mxu0 0.0
        %3366 = vmatmul.mubr.f32.gmra.mxu0 %v3185
        %v3367 = vpop.f32.mrf.mxu0
        %v3368 = vadd.f32 0.0, %v3367
        %v3369 = vpop.f32.mrf.mxu0
        %3370 = vmatprep.mubr.f32.mxu0 0.0
        %3371 = vmatmul.mubr.f32.gmra.mxu0 %v3188
        %v3372 = vpop.f32.mrf.mxu0
        %v3373 = vadd.f32 0.0, %v3372
        %v3374 = vpop.f32.mrf.mxu0
        %3375 = vmatprep.mubr.f32.mxu0 0.0
        %3376 = vmatmul.mubr.f32.gmra.mxu0 %v3191
        %v3377 = vpop.f32.mrf.mxu0
        %v3378 = vadd.f32 0.0, %v3377
        %v3379 = vpop.f32.mrf.mxu0
        %3380 = vmatprep.mubr.f32.mxu0 0.0
        %3381 = vmatmul.mubr.f32.gmra.mxu0 %v3194
        %v3382 = vpop.f32.mrf.mxu0
        %v3383 = vadd.f32 0.0, %v3382
        %v3384 = vpop.f32.mrf.mxu0
        %3385 = vmatprep.mubr.f32.mxu0 0.0
        %3386 = vmatmul.mubr.f32.gmra.mxu0 %v3197
        %v3387 = vpop.f32.mrf.mxu0
        %v3388 = vadd.f32 0.0, %v3387
        %v3389 = vpop.f32.mrf.mxu0
        %3390 = vmatprep.mubr.f32.mxu0 0.0
        %3391 = vmatmul.mubr.f32.gmra.mxu0 %v3200
        %v3392 = vpop.f32.mrf.mxu0
        %v3393 = vadd.f32 0.0, %v3392
        %v3394 = vpop.f32.mrf.mxu0
        %3395 = vmatprep.mubr.f32.mxu0 0.0
        %3396 = vmatmul.mubr.f32.gmra.mxu0 %v3203
        %v3397 = vpop.f32.mrf.mxu0
        %v3398 = vadd.f32 0.0, %v3397
        %v3399 = vpop.f32.mrf.mxu0
        %3400 = vmatprep.mubr.f32.mxu0 0.0
        %3401 = vmatmul.mubr.f32.gmra.mxu0 %v3206
        %v3402 = vpop.f32.mrf.mxu0
        %v3403 = vadd.f32 0.0, %v3402
        %v3404 = vpop.f32.mrf.mxu0
        %3405 = vmatprep.mubr.f32.mxu0 0.0
        %3406 = vmatmul.mubr.f32.gmra.mxu0 %v3209
        %v3407 = vpop.f32.mrf.mxu0
        %v3408 = vadd.f32 0.0, %v3407
        %v3409 = vpop.f32.mrf.mxu0
        %3410 = vmatprep.mubr.f32.mxu0 0.0
        %3411 = vmatmul.mubr.f32.gmra.mxu0 %v3212
        %v3412 = vpop.f32.mrf.mxu0
        %v3413 = vadd.f32 0.0, %v3412
        %v3414 = vpop.f32.mrf.mxu0
        %3415 = vmatprep.mubr.f32.mxu0 0.0
        %3416 = vmatmul.mubr.f32.gmra.mxu0 %v3215
        %v3417 = vpop.f32.mrf.mxu0
        %v3418 = vadd.f32 0.0, %v3417
        %v3419 = vpop.f32.mrf.mxu0
        %3420 = vmatprep.mubr.f32.mxu0 0.0
        %3421 = vmatmul.mubr.f32.gmra.mxu0 %v3218
        %v3422 = vpop.f32.mrf.mxu0
        %v3423 = vadd.f32 0.0, %v3422
        %v3424 = vpop.f32.mrf.mxu0
        %3425 = vmatprep.mubr.f32.mxu0 0.0
        %3426 = vmatmul.mubr.f32.gmra.mxu0 %v3221
        %v3427 = vpop.f32.mrf.mxu0
        %v3428 = vadd.f32 0.0, %v3427
        %v3429 = vpop.f32.mrf.mxu0
        %3430 = vmatprep.mubr.f32.mxu0 0.0
        %3431 = vmatmul.mubr.f32.gmra.mxu0 %v3224
        %v3432 = vpop.f32.mrf.mxu0
        %v3433 = vadd.f32 0.0, %v3432
        %v3434 = vpop.f32.mrf.mxu0
        %3435 = vmatprep.mubr.f32.mxu0 0.0
        %3436 = vmatmul.mubr.f32.gmra.mxu0 %v3227
        %v3437 = vpop.f32.mrf.mxu0
        %v3438 = vadd.f32 0.0, %v3437
        %v3439 = vpop.f32.mrf.mxu0
        %3440 = vmatprep.mubr.f32.mxu0 0.0
        %3441 = vmatmul.mubr.f32.gmra.mxu0 %v3230
        %v3442 = vpop.f32.mrf.mxu0
        %v3443 = vadd.f32 0.0, %v3442
        %v3444 = vpop.f32.mrf.mxu0
        %3445 = vmatprep.mubr.f32.mxu0 0.0
        %3446 = vmatmul.mubr.f32.gmra.mxu0 %v3233
        %v3447 = vpop.f32.mrf.mxu0
        %v3448 = vadd.f32 0.0, %v3447
        %v3449 = vpop.f32.mrf.mxu0
        %3450 = vmatprep.mubr.f32.mxu0 0.0
        %3451 = vmatmul.mubr.f32.gmra.mxu0 %v3236
        %v3452 = vpop.f32.mrf.mxu0
        %v3453 = vadd.f32 0.0, %v3452
        %v3454 = vpop.f32.mrf.mxu0
        %3455 = vmatprep.mubr.f32.mxu0 0.0
        %3456 = vmatmul.mubr.f32.gmra.mxu0 %v3239
        %v3457 = vpop.f32.mrf.mxu0
        %v3458 = vadd.f32 0.0, %v3457
        %v3459 = vpop.f32.mrf.mxu0
        %3460 = vmatprep.mubr.f32.mxu0 0.0
        %3461 = vmatmul.mubr.f32.gmra.mxu0 %v3242
        %v3462 = vpop.f32.mrf.mxu0
        %v3463 = vadd.f32 0.0, %v3462
        %v3464 = vpop.f32.mrf.mxu0
        %3465 = vmatprep.mubr.f32.mxu0 0.0
        %3466 = vmatmul.mubr.f32.gmra.mxu0 %v3245
        %v3467 = vpop.f32.mrf.mxu0
        %v3468 = vadd.f32 0.0, %v3467
        %v3469 = vpop.f32.mrf.mxu0
        %3470 = vmatprep.mubr.f32.mxu0 0.0
        %3471 = vmatmul.mubr.f32.gmra.mxu0 %v3248
        %v3472 = vpop.f32.mrf.mxu0
        %v3473 = vadd.f32 0.0, %v3472
        %v3474 = vpop.f32.mrf.mxu0
        %3475 = vmatprep.mubr.f32.mxu0 0.0
        %3476 = vmatmul.mubr.f32.gmra.mxu0 %v3251
        %v3477 = vpop.f32.mrf.mxu0
        %v3478 = vadd.f32 0.0, %v3477
        %v3479 = vpop.f32.mrf.mxu0
        %3480 = vdwg.mxu0
        %v3481 = vadd.f32 %v3091, %v3323
        %v3482 = vadd.f32 %v3092, %v3328
        %v3483 = vadd.f32 %v3093, %v3333
        %v3484 = vadd.f32 %v3094, %v3338
        %v3485 = vadd.f32 %v3095, %v3343
        %v3486 = vadd.f32 %v3096, %v3348
        %v3487 = vadd.f32 %v3097, %v3353
        %v3488 = vadd.f32 %v3098, %v3358
        %v3489 = vadd.f32 %v3099, %v3363
        %v3490 = vadd.f32 %v3100, %v3368
        %v3491 = vadd.f32 %v3101, %v3373
        %v3492 = vadd.f32 %v3102, %v3378
        %v3493 = vadd.f32 %v3103, %v3383
        %v3494 = vadd.f32 %v3104, %v3388
        %v3495 = vadd.f32 %v3105, %v3393
        %v3496 = vadd.f32 %v3106, %v3398
        %v3497 = vadd.f32 %v3107, %v3403
        %v3498 = vadd.f32 %v3108, %v3408
        %v3499 = vadd.f32 %v3109, %v3413
        %v3500 = vadd.f32 %v3110, %v3418
        %v3501 = vadd.f32 %v3111, %v3423
        %v3502 = vadd.f32 %v3112, %v3428
        %v3503 = vadd.f32 %v3113, %v3433
        %v3504 = vadd.f32 %v3114, %v3438
        %v3505 = vadd.f32 %v3115, %v3443
        %v3506 = vadd.f32 %v3116, %v3448
        %v3507 = vadd.f32 %v3117, %v3453
        %v3508 = vadd.f32 %v3118, %v3458
        %v3509 = vadd.f32 %v3119, %v3463
        %v3510 = vadd.f32 %v3120, %v3468
        %v3511 = vadd.f32 %v3121, %v3473
        %v3512 = vadd.f32 %v3122, %v3478
        %v3513 = vld [vmem:[%s2732 + $0x2] sm:$0xff]
        %v3514 = vld [vmem:[%s2732 + $0xa] sm:$0xff]
        %v3515 = vld [vmem:[%s2732 + $0x1a] sm:$0xff]
        %v3516 = vld [vmem:[%s2732 + $0x22] sm:$0xff]
        %v3517 = vld [vmem:[%s2732 + $0x32] sm:$0xff]
        %v3518 = vld [vmem:[%s2732 + $0x3a] sm:$0xff]
        %v3519 = vld [vmem:[%s2732 + $0x4a] sm:$0xff]
        %v3520 = vld [vmem:[%s2732 + $0x52] sm:$0xff]
        %v3521 = vld [vmem:[%s2732 + $0x62] sm:$0xff]
        %v3522 = vld [vmem:[%s2732 + $0x6a] sm:$0xff]
        %v3523 = vld [vmem:[%s2732 + $0x7a] sm:$0xff]
        %v3524 = vld [vmem:[%s2732 + $0x82] sm:$0xff]
        %v3525 = vld [vmem:[%s2732 + $0x92] sm:$0xff]
        %v3526 = vld [vmem:[%s2732 + $0x9a] sm:$0xff]
        %v3527 = vld [vmem:[%s2732 + $0xaa] sm:$0xff]
        %v3528 = vld [vmem:[%s2732 + $0xb2] sm:$0xff]
        %v3529 = vld [vmem:[%s2732 + $0xf2] sm:$0xff]
        %v3530 = vld [vmem:[%s2732 + $0xfa] sm:$0xff]
        %v3531 = vld [vmem:[%s2732 + $0x10a] sm:$0xff]
        %v3532 = vld [vmem:[%s2732 + $0x112] sm:$0xff]
        %v3533 = vld [vmem:[%s2732 + $0x122] sm:$0xff]
        %v3534 = vld [vmem:[%s2732 + $0x12a] sm:$0xff]
        %v3535 = vld [vmem:[%s2732 + $0x13a] sm:$0xff]
        %v3536 = vld [vmem:[%s2732 + $0x142] sm:$0xff]
        %v3537 = vld [vmem:[%s2732 + $0x152] sm:$0xff]
        %v3538 = vld [vmem:[%s2732 + $0x15a] sm:$0xff]
        %v3539 = vld [vmem:[%s2732 + $0x16a] sm:$0xff]
        %v3540 = vld [vmem:[%s2732 + $0x172] sm:$0xff]
        %v3541 = vld [vmem:[%s2732 + $0x182] sm:$0xff]
        %v3542 = vld [vmem:[%s2732 + $0x18a] sm:$0xff]
        %v3543 = vld [vmem:[%s2732 + $0x19a] sm:$0xff]
        %v3544 = vld [vmem:[%s2732 + $0x1a2] sm:$0xff]
        %s3545 = scalar_lea.vmem %s1, 32
        %v3546 = vld [vmem:[%s3545] sm:$0xf]
        %v3548 = vsel %vm329, %v3513, 0
        %v3551 = vsel %vm329, %v3514, 0
        %v3554 = vsel %vm329, %v3515, 0
        %v3557 = vsel %vm329, %v3516, 0
        %v3560 = vsel %vm329, %v3517, 0
        %v3563 = vsel %vm329, %v3518, 0
        %v3566 = vsel %vm329, %v3519, 0
        %v3569 = vsel %vm329, %v3520, 0
        %v3572 = vsel %vm329, %v3521, 0
        %v3575 = vsel %vm329, %v3522, 0
        %v3578 = vsel %vm329, %v3523, 0
        %v3581 = vsel %vm329, %v3524, 0
        %v3584 = vsel %vm329, %v3525, 0
        %v3587 = vsel %vm329, %v3526, 0
        %v3590 = vsel %vm329, %v3527, 0
        %v3593 = vsel %vm329, %v3528, 0
        %v3596 = vsel %vm329, %v3529, 0
        %v3599 = vsel %vm329, %v3530, 0
        %v3602 = vsel %vm329, %v3531, 0
        %v3605 = vsel %vm329, %v3532, 0
        %v3608 = vsel %vm329, %v3533, 0
        %v3611 = vsel %vm329, %v3534, 0
        %v3614 = vsel %vm329, %v3535, 0
        %v3617 = vsel %vm329, %v3536, 0
        %v3620 = vsel %vm329, %v3537, 0
        %v3623 = vsel %vm329, %v3538, 0
        %v3626 = vsel %vm329, %v3539, 0
        %v3629 = vsel %vm329, %v3540, 0
        %v3632 = vsel %vm329, %v3541, 0
        %v3635 = vsel %vm329, %v3542, 0
        %v3638 = vsel %vm329, %v3543, 0
        %v3641 = vsel %vm329, %v3544, 0
        %v3644 = vsel %vm619, %v3546, 0
        %3646 = vmatprep.subr.mxu0 0.0
        %3647 = vmatpush1.msra.mxu0 0.0
        %3648 = vmatprep.subr.mxu0 0.0
        %3649 = vmatpush1.msra.mxu0 0.0
        %3650 = vmatprep.subr.mxu0 0.0
        %3651 = vmatpush1.msra.mxu0 0.0
        %3652 = vmatprep.subr.mxu0 0.0
        %3653 = vmatpush1.msra.mxu0 0.0
        %3654 = vmatprep.subr.mxu0 0.0
        %3655 = vmatpush1.msra.mxu0 0.0
        %3656 = vmatprep.subr.mxu0 0.0
        %3657 = vmatpush1.msra.mxu0 0.0
        %3658 = vmatprep.subr.mxu0 0.0
        %3659 = vmatpush1.msra.mxu0 0.0
        %3660 = vmatprep.subr.mxu0 0.0
        %3661 = vmatpush1.msra.mxu0 0.0
        %3662 = vmatprep.subr.mxu0 0.0
        %3663 = vmatpush1.msra.mxu0 0.0
        %3664 = vmatprep.subr.mxu0 0.0
        %3665 = vmatpush1.msra.mxu0 0.0
        %3666 = vmatprep.subr.mxu0 0.0
        %3667 = vmatpush1.msra.mxu0 0.0
        %3668 = vmatprep.subr.mxu0 0.0
        %3669 = vmatpush1.msra.mxu0 0.0
        %3670 = vmatprep.subr.mxu0 0.0
        %3671 = vmatpush1.msra.mxu0 0.0
        %3672 = vmatprep.subr.mxu0 0.0
        %3673 = vmatpush1.msra.mxu0 0.0
        %3674 = vmatprep.subr.mxu0 0.0
        %3675 = vmatpush1.msra.mxu0 0.0
        %3676 = vmatprep.subr.mxu0 0.0
        %3677 = vmatpush1.msra.mxu0 %v3644
        %3678 = vmatprep.subr.mxu0 0.0
        %3679 = vmatpush2.msra.mxu0 0.0
        %3680 = vmatprep.subr.mxu0 0.0
        %3681 = vmatpush2.msra.mxu0 0.0
        %3682 = vmatprep.subr.mxu0 0.0
        %3683 = vmatpush2.msra.mxu0 0.0
        %3684 = vmatprep.subr.mxu0 0.0
        %3685 = vmatpush2.msra.mxu0 0.0
        %3686 = vmatprep.subr.mxu0 0.0
        %3687 = vmatpush2.msra.mxu0 0.0
        %3688 = vmatprep.subr.mxu0 0.0
        %3689 = vmatpush2.msra.mxu0 0.0
        %3690 = vmatprep.subr.mxu0 0.0
        %3691 = vmatpush2.msra.mxu0 0.0
        %3692 = vmatprep.subr.mxu0 0.0
        %3693 = vmatpush2.msra.mxu0 0.0
        %3694 = vmatprep.subr.mxu0 0.0
        %3695 = vmatpush2.msra.mxu0 0.0
        %3696 = vmatprep.subr.mxu0 0.0
        %3697 = vmatpush2.msra.mxu0 0.0
        %3698 = vmatprep.subr.mxu0 0.0
        %3699 = vmatpush2.msra.mxu0 0.0
        %3700 = vmatprep.subr.mxu0 0.0
        %3701 = vmatpush2.msra.mxu0 0.0
        %3702 = vmatprep.subr.mxu0 0.0
        %3703 = vmatpush2.msra.mxu0 0.0
        %3704 = vmatprep.subr.mxu0 0.0
        %3705 = vmatpush2.msra.mxu0 0.0
        %3706 = vmatprep.subr.mxu0 0.0
        %3707 = vmatpush2.msra.mxu0 0.0
        %3708 = vmatprep.subr.mxu0 0.0
        %3709 = vmatpush2.msra.mxu0 0.0
        %3710 = vmatprep.mubr.f32.mxu0 0.0
        %3711 = vmatmul.mubr.f32.gmra.mxu0 %v3548
        %v3712 = vpop.f32.mrf.mxu0
        %v3713 = vadd.f32 0.0, %v3712
        %v3714 = vpop.f32.mrf.mxu0
        %3715 = vmatprep.mubr.f32.mxu0 0.0
        %3716 = vmatmul.mubr.f32.gmra.mxu0 %v3551
        %v3717 = vpop.f32.mrf.mxu0
        %v3718 = vadd.f32 0.0, %v3717
        %v3719 = vpop.f32.mrf.mxu0
        %3720 = vmatprep.mubr.f32.mxu0 0.0
        %3721 = vmatmul.mubr.f32.gmra.mxu0 %v3554
        %v3722 = vpop.f32.mrf.mxu0
        %v3723 = vadd.f32 0.0, %v3722
        %v3724 = vpop.f32.mrf.mxu0
        %3725 = vmatprep.mubr.f32.mxu0 0.0
        %3726 = vmatmul.mubr.f32.gmra.mxu0 %v3557
        %v3727 = vpop.f32.mrf.mxu0
        %v3728 = vadd.f32 0.0, %v3727
        %v3729 = vpop.f32.mrf.mxu0
        %3730 = vmatprep.mubr.f32.mxu0 0.0
        %3731 = vmatmul.mubr.f32.gmra.mxu0 %v3560
        %v3732 = vpop.f32.mrf.mxu0
        %v3733 = vadd.f32 0.0, %v3732
        %v3734 = vpop.f32.mrf.mxu0
        %3735 = vmatprep.mubr.f32.mxu0 0.0
        %3736 = vmatmul.mubr.f32.gmra.mxu0 %v3563
        %v3737 = vpop.f32.mrf.mxu0
        %v3738 = vadd.f32 0.0, %v3737
        %v3739 = vpop.f32.mrf.mxu0
        %3740 = vmatprep.mubr.f32.mxu0 0.0
        %3741 = vmatmul.mubr.f32.gmra.mxu0 %v3566
        %v3742 = vpop.f32.mrf.mxu0
        %v3743 = vadd.f32 0.0, %v3742
        %v3744 = vpop.f32.mrf.mxu0
        %3745 = vmatprep.mubr.f32.mxu0 0.0
        %3746 = vmatmul.mubr.f32.gmra.mxu0 %v3569
        %v3747 = vpop.f32.mrf.mxu0
        %v3748 = vadd.f32 0.0, %v3747
        %v3749 = vpop.f32.mrf.mxu0
        %3750 = vmatprep.mubr.f32.mxu0 0.0
        %3751 = vmatmul.mubr.f32.gmra.mxu0 %v3572
        %v3752 = vpop.f32.mrf.mxu0
        %v3753 = vadd.f32 0.0, %v3752
        %v3754 = vpop.f32.mrf.mxu0
        %3755 = vmatprep.mubr.f32.mxu0 0.0
        %3756 = vmatmul.mubr.f32.gmra.mxu0 %v3575
        %v3757 = vpop.f32.mrf.mxu0
        %v3758 = vadd.f32 0.0, %v3757
        %v3759 = vpop.f32.mrf.mxu0
        %3760 = vmatprep.mubr.f32.mxu0 0.0
        %3761 = vmatmul.mubr.f32.gmra.mxu0 %v3578
        %v3762 = vpop.f32.mrf.mxu0
        %v3763 = vadd.f32 0.0, %v3762
        %v3764 = vpop.f32.mrf.mxu0
        %3765 = vmatprep.mubr.f32.mxu0 0.0
        %3766 = vmatmul.mubr.f32.gmra.mxu0 %v3581
        %v3767 = vpop.f32.mrf.mxu0
        %v3768 = vadd.f32 0.0, %v3767
        %v3769 = vpop.f32.mrf.mxu0
        %3770 = vmatprep.mubr.f32.mxu0 0.0
        %3771 = vmatmul.mubr.f32.gmra.mxu0 %v3584
        %v3772 = vpop.f32.mrf.mxu0
        %v3773 = vadd.f32 0.0, %v3772
        %v3774 = vpop.f32.mrf.mxu0
        %3775 = vmatprep.mubr.f32.mxu0 0.0
        %3776 = vmatmul.mubr.f32.gmra.mxu0 %v3587
        %v3777 = vpop.f32.mrf.mxu0
        %v3778 = vadd.f32 0.0, %v3777
        %v3779 = vpop.f32.mrf.mxu0
        %3780 = vmatprep.mubr.f32.mxu0 0.0
        %3781 = vmatmul.mubr.f32.gmra.mxu0 %v3590
        %v3782 = vpop.f32.mrf.mxu0
        %v3783 = vadd.f32 0.0, %v3782
        %v3784 = vpop.f32.mrf.mxu0
        %3785 = vmatprep.mubr.f32.mxu0 0.0
        %3786 = vmatmul.mubr.f32.gmra.mxu0 %v3593
        %v3787 = vpop.f32.mrf.mxu0
        %v3788 = vadd.f32 0.0, %v3787
        %v3789 = vpop.f32.mrf.mxu0
        %3790 = vmatprep.mubr.f32.mxu0 0.0
        %3791 = vmatmul.mubr.f32.gmra.mxu0 %v3596
        %v3792 = vpop.f32.mrf.mxu0
        %v3793 = vadd.f32 0.0, %v3792
        %v3794 = vpop.f32.mrf.mxu0
        %3795 = vmatprep.mubr.f32.mxu0 0.0
        %3796 = vmatmul.mubr.f32.gmra.mxu0 %v3599
        %v3797 = vpop.f32.mrf.mxu0
        %v3798 = vadd.f32 0.0, %v3797
        %v3799 = vpop.f32.mrf.mxu0
        %3800 = vmatprep.mubr.f32.mxu0 0.0
        %3801 = vmatmul.mubr.f32.gmra.mxu0 %v3602
        %v3802 = vpop.f32.mrf.mxu0
        %v3803 = vadd.f32 0.0, %v3802
        %v3804 = vpop.f32.mrf.mxu0
        %3805 = vmatprep.mubr.f32.mxu0 0.0
        %3806 = vmatmul.mubr.f32.gmra.mxu0 %v3605
        %v3807 = vpop.f32.mrf.mxu0
        %v3808 = vadd.f32 0.0, %v3807
        %v3809 = vpop.f32.mrf.mxu0
        %3810 = vmatprep.mubr.f32.mxu0 0.0
        %3811 = vmatmul.mubr.f32.gmra.mxu0 %v3608
        %v3812 = vpop.f32.mrf.mxu0
        %v3813 = vadd.f32 0.0, %v3812
        %v3814 = vpop.f32.mrf.mxu0
        %3815 = vmatprep.mubr.f32.mxu0 0.0
        %3816 = vmatmul.mubr.f32.gmra.mxu0 %v3611
        %v3817 = vpop.f32.mrf.mxu0
        %v3818 = vadd.f32 0.0, %v3817
        %v3819 = vpop.f32.mrf.mxu0
        %3820 = vmatprep.mubr.f32.mxu0 0.0
        %3821 = vmatmul.mubr.f32.gmra.mxu0 %v3614
        %v3822 = vpop.f32.mrf.mxu0
        %v3823 = vadd.f32 0.0, %v3822
        %v3824 = vpop.f32.mrf.mxu0
        %3825 = vmatprep.mubr.f32.mxu0 0.0
        %3826 = vmatmul.mubr.f32.gmra.mxu0 %v3617
        %v3827 = vpop.f32.mrf.mxu0
        %v3828 = vadd.f32 0.0, %v3827
        %v3829 = vpop.f32.mrf.mxu0
        %3830 = vmatprep.mubr.f32.mxu0 0.0
        %3831 = vmatmul.mubr.f32.gmra.mxu0 %v3620
        %v3832 = vpop.f32.mrf.mxu0
        %v3833 = vadd.f32 0.0, %v3832
        %v3834 = vpop.f32.mrf.mxu0
        %3835 = vmatprep.mubr.f32.mxu0 0.0
        %3836 = vmatmul.mubr.f32.gmra.mxu0 %v3623
        %v3837 = vpop.f32.mrf.mxu0
        %v3838 = vadd.f32 0.0, %v3837
        %v3839 = vpop.f32.mrf.mxu0
        %3840 = vmatprep.mubr.f32.mxu0 0.0
        %3841 = vmatmul.mubr.f32.gmra.mxu0 %v3626
        %v3842 = vpop.f32.mrf.mxu0
        %v3843 = vadd.f32 0.0, %v3842
        %v3844 = vpop.f32.mrf.mxu0
        %3845 = vmatprep.mubr.f32.mxu0 0.0
        %3846 = vmatmul.mubr.f32.gmra.mxu0 %v3629
        %v3847 = vpop.f32.mrf.mxu0
        %v3848 = vadd.f32 0.0, %v3847
        %v3849 = vpop.f32.mrf.mxu0
        %3850 = vmatprep.mubr.f32.mxu0 0.0
        %3851 = vmatmul.mubr.f32.gmra.mxu0 %v3632
        %v3852 = vpop.f32.mrf.mxu0
        %v3853 = vadd.f32 0.0, %v3852
        %v3854 = vpop.f32.mrf.mxu0
        %3855 = vmatprep.mubr.f32.mxu0 0.0
        %3856 = vmatmul.mubr.f32.gmra.mxu0 %v3635
        %v3857 = vpop.f32.mrf.mxu0
        %v3858 = vadd.f32 0.0, %v3857
        %v3859 = vpop.f32.mrf.mxu0
        %3860 = vmatprep.mubr.f32.mxu0 0.0
        %3861 = vmatmul.mubr.f32.gmra.mxu0 %v3638
        %v3862 = vpop.f32.mrf.mxu0
        %v3863 = vadd.f32 0.0, %v3862
        %v3864 = vpop.f32.mrf.mxu0
        %3865 = vmatprep.mubr.f32.mxu0 0.0
        %3866 = vmatmul.mubr.f32.gmra.mxu0 %v3641
        %v3867 = vpop.f32.mrf.mxu0
        %v3868 = vadd.f32 0.0, %v3867
        %v3869 = vpop.f32.mrf.mxu0
        %3870 = vdwg.mxu0
        %v3871 = vadd.f32 %v3481, %v3713
        %v3872 = vadd.f32 %v3482, %v3718
        %v3873 = vadd.f32 %v3483, %v3723
        %v3874 = vadd.f32 %v3484, %v3728
        %v3875 = vadd.f32 %v3485, %v3733
        %v3876 = vadd.f32 %v3486, %v3738
        %v3877 = vadd.f32 %v3487, %v3743
        %v3878 = vadd.f32 %v3488, %v3748
        %v3879 = vadd.f32 %v3489, %v3753
        %v3880 = vadd.f32 %v3490, %v3758
        %v3881 = vadd.f32 %v3491, %v3763
        %v3882 = vadd.f32 %v3492, %v3768
        %v3883 = vadd.f32 %v3493, %v3773
        %v3884 = vadd.f32 %v3494, %v3778
        %v3885 = vadd.f32 %v3495, %v3783
        %v3886 = vadd.f32 %v3496, %v3788
        %v3887 = vadd.f32 %v3497, %v3793
        %v3888 = vadd.f32 %v3498, %v3798
        %v3889 = vadd.f32 %v3499, %v3803
        %v3890 = vadd.f32 %v3500, %v3808
        %v3891 = vadd.f32 %v3501, %v3813
        %v3892 = vadd.f32 %v3502, %v3818
        %v3893 = vadd.f32 %v3503, %v3823
        %v3894 = vadd.f32 %v3504, %v3828
        %v3895 = vadd.f32 %v3505, %v3833
        %v3896 = vadd.f32 %v3506, %v3838
        %v3897 = vadd.f32 %v3507, %v3843
        %v3898 = vadd.f32 %v3508, %v3848
        %v3899 = vadd.f32 %v3509, %v3853
        %v3900 = vadd.f32 %v3510, %v3858
        %v3901 = vadd.f32 %v3511, %v3863
        %v3902 = vadd.f32 %v3512, %v3868
        %v3903 = vld [vmem:[%s2] sm:$0x1]
        %v3905 = vlaneseq
        %v3906 = vshrl.u32 %v3905, 7
        %v3907 = vsub.s32 0, %v3906
        %v3908 = vrot.slane %v3903, %v3907
        %v3910 = vadd.f32 %v3871, %v3908
        %v3911 = vadd.f32 %v3872, %v3908
        %v3912 = vadd.f32 %v3873, %v3908
        %v3913 = vadd.f32 %v3874, %v3908
        %v3914 = vadd.f32 %v3875, %v3908
        %v3915 = vadd.f32 %v3876, %v3908
        %v3916 = vadd.f32 %v3877, %v3908
        %v3917 = vadd.f32 %v3878, %v3908
        %v3918 = vadd.f32 %v3879, %v3908
        %v3919 = vadd.f32 %v3880, %v3908
        %v3920 = vadd.f32 %v3881, %v3908
        %v3921 = vadd.f32 %v3882, %v3908
        %v3922 = vadd.f32 %v3883, %v3908
        %v3923 = vadd.f32 %v3884, %v3908
        %v3924 = vadd.f32 %v3885, %v3908
        %v3925 = vadd.f32 %v3886, %v3908
        %v3926 = vadd.f32 %v3887, %v3908
        %v3927 = vadd.f32 %v3888, %v3908
        %v3928 = vadd.f32 %v3889, %v3908
        %v3929 = vadd.f32 %v3890, %v3908
        %v3930 = vadd.f32 %v3891, %v3908
        %v3931 = vadd.f32 %v3892, %v3908
        %v3932 = vadd.f32 %v3893, %v3908
        %v3933 = vadd.f32 %v3894, %v3908
        %v3934 = vadd.f32 %v3895, %v3908
        %v3935 = vadd.f32 %v3896, %v3908
        %v3936 = vadd.f32 %v3897, %v3908
        %v3937 = vadd.f32 %v3898, %v3908
        %v3938 = vadd.f32 %v3899, %v3908
        %v3939 = vadd.f32 %v3900, %v3908
        %v3940 = vadd.f32 %v3901, %v3908
        %v3941 = vadd.f32 %v3902, %v3908
        %vm3942 = vcmask 785408
        %3943 = vst.msk [vmem:[%s328] sm:$0xff] %vm3942, %v3910
        %3944 = vst.msk [vmem:[%s328 + $0x8] sm:$0xff] %vm3942, %v3911
        %3945 = vst.msk [vmem:[%s328 + $0x10] sm:$0xff] %vm3942, %v3912
        %3946 = vst.msk [vmem:[%s328 + $0x18] sm:$0xff] %vm3942, %v3913
        %3947 = vst.msk [vmem:[%s328 + $0x20] sm:$0xff] %vm3942, %v3914
        %3948 = vst.msk [vmem:[%s328 + $0x28] sm:$0xff] %vm3942, %v3915
        %3949 = vst.msk [vmem:[%s328 + $0x30] sm:$0xff] %vm3942, %v3916
        %3950 = vst.msk [vmem:[%s328 + $0x38] sm:$0xff] %vm3942, %v3917
        %3951 = vst.msk [vmem:[%s328 + $0x40] sm:$0xff] %vm3942, %v3918
        %3952 = vst.msk [vmem:[%s328 + $0x48] sm:$0xff] %vm3942, %v3919
        %3953 = vst.msk [vmem:[%s328 + $0x50] sm:$0xff] %vm3942, %v3920
        %3954 = vst.msk [vmem:[%s328 + $0x58] sm:$0xff] %vm3942, %v3921
        %3955 = vst.msk [vmem:[%s328 + $0x60] sm:$0xff] %vm3942, %v3922
        %3956 = vst.msk [vmem:[%s328 + $0x68] sm:$0xff] %vm3942, %v3923
        %3957 = vst.msk [vmem:[%s328 + $0x70] sm:$0xff] %vm3942, %v3924
        %3958 = vst.msk [vmem:[%s328 + $0x78] sm:$0xff] %vm3942, %v3925
        %3959 = vst.msk [vmem:[%s328 + $0x80] sm:$0xff] %vm3942, %v3926
        %3960 = vst.msk [vmem:[%s328 + $0x88] sm:$0xff] %vm3942, %v3927
        %3961 = vst.msk [vmem:[%s328 + $0x90] sm:$0xff] %vm3942, %v3928
        %3962 = vst.msk [vmem:[%s328 + $0x98] sm:$0xff] %vm3942, %v3929
        %3963 = vst.msk [vmem:[%s328 + $0xa0] sm:$0xff] %vm3942, %v3930
        %3964 = vst.msk [vmem:[%s328 + $0xa8] sm:$0xff] %vm3942, %v3931
        %3965 = vst.msk [vmem:[%s328 + $0xb0] sm:$0xff] %vm3942, %v3932
        %3966 = vst.msk [vmem:[%s328 + $0xb8] sm:$0xff] %vm3942, %v3933
        %3967 = vst.msk [vmem:[%s328 + $0xc0] sm:$0xff] %vm3942, %v3934
        %3968 = vst.msk [vmem:[%s328 + $0xc8] sm:$0xff] %vm3942, %v3935
        %3969 = vst.msk [vmem:[%s328 + $0xd0] sm:$0xff] %vm3942, %v3936
        %3970 = vst.msk [vmem:[%s328 + $0xd8] sm:$0xff] %vm3942, %v3937
        %3971 = vst.msk [vmem:[%s328 + $0xe0] sm:$0xff] %vm3942, %v3938
        %3972 = vst.msk [vmem:[%s328 + $0xe8] sm:$0xff] %vm3942, %v3939
        %3973 = vst.msk [vmem:[%s328 + $0xf0] sm:$0xff] %vm3942, %v3940
        %3974 = vst.msk [vmem:[%s328 + $0xf8] sm:$0xff] %vm3942, %v3941
        %s3975 = sand.u32 %s93, 1
        %s3976 = scalar_lea.sflag [#allocation5], %s3975
        %s3977 = sand.u32 %s93, 1
        %s3978 = smul.addr %s3977, 256
        %s3979 = scalar_lea.vmem [#allocation4], %s3978
        // Predicated region
        $region71: #{tpu_custom_call.1} parent=65 // pred_check
          %p3980 = pneg %p103
        $region72: #{tpu_custom_call.1} parent=65 // pred_check_branch
          %3982 = sbr.rel (%p3980) target = $region74
        $region73: #{tpu_custom_call.1} parent=65 // pred_region
          #allocation7 [shape = 'u32[6]{0}', space=smem, size = 0x18, scoped, tag = 'DMA stride descriptor']
          %s3984 = ssub.s32 4096, 4096
          %3985 = vsyncadd %s3976, %s3984
          %s3986 = smul.addr %s17, 16
          %s3987 = smul.addr %s3986, 128
          %s3988 = scalar_lea.hbm %s3, %s3987
          %s3990 = sshll.u32 1, 14
          %s3991 = sxor.u32 4294967295, %s3990
          %s3994 = sshll.u32 7, 18
          %s3995 = sxor.u32 4294967295, %s3994
          %s3996 = sand.u32 0, %s3995
          %s3998 = sor.u32 %s3996, 0
          %s3999 = sshll.u32 %s3979, 4
          %s4000 = int_to_ptr.vmem [resolvable:$true] %s3999
          %4006 = sst [smem:[#allocation7]] 2048
          %s4007 = scalar_lea.smem [#allocation7], 1
          %4008 = sst [smem:[%s4007]] 16384
          %s4009 = scalar_lea.smem [#allocation7], 2
          %4010 = sst [smem:[%s4009]] 16
          %s4011 = scalar_lea.smem [#allocation7], 3
          %4012 = sst [smem:[%s4011]] 128
          %s4013 = scalar_lea.smem [#allocation7], 4
          %4014 = sst [smem:[%s4013]] 128
          %s4015 = scalar_lea.smem [#allocation7], 5
          %4016 = sst [smem:[%s4015]] 8
          %4018 = dma.general %s4000, 4096, %s3988, %s3976, 131072, [#allocation7], %s3998, 0
        $region74: #{tpu_custom_call.1} parent=65 // pred_fallthru
          _
      $region66: #{tpu_custom_call.1} parent=5 // pred_fallthru
        _
      %p4019 = scmp.le.s32.totalorder 2, %s12
      // Predicated region
      $region75: #{tpu_custom_call.1} parent=5 // pred_check
        %p4020 = pneg %p4019
      $region76: #{tpu_custom_call.1} parent=5 // pred_check_branch
        %4022 = sbr.rel (%p4020) target = $region78
      $region77: #{tpu_custom_call.1} parent=5 // pred_region
        %s4023 = ssub.s32 %s12, 2
        // Predicated region
        $region79: #{tpu_custom_call.1} parent=77 // pred_check
          %p4024 = pneg %p109
        $region80: #{tpu_custom_call.1} parent=77 // pred_check_branch
          %4026 = sbr.rel (%p4024) target = $region82
        $region81: #{tpu_custom_call.1} parent=77 // pred_region
          %s4027 = sand.u32 %s94, 1
          %s4028 = scalar_lea.sflag [#allocation5], %s4027
          %s4029 = sand.u32 %s94, 1
          %s4030 = smul.addr %s4029, 256
          %s4031 = scalar_lea.vmem [#allocation4], %s4030
          %4032 = dma.done %s4028, 4096
        $region82: #{tpu_custom_call.1} parent=77 // pred_fallthru
          _
      $region78: #{tpu_custom_call.1} parent=5 // pred_fallthru
        _
    $region6: #{tpu_custom_call.1} parent=1 // loop_footer
      %s16 = sadd.s32 1, %s12
    $region7: #{tpu_custom_call.1} parent=1 // loop_footer_branch
      %11 = sbr.rel target = $region3
    $region8: #{tpu_custom_call.1} parent=1 // loop_exit
      _
    %4033 = vsyncpa [#allocation5], 1
    %s4034 = scalar_lea.sflag [#allocation5], 1
    %4035 = vsyncpa %s4034, 1

</llo_original>
